<compile_context>
chip_gen: v6e
topology: v6e:2x2x1
jax: 0.10.0
libtpu: 0.0.40
codegen_flags: <defaults>
</compile_context>

<pallas_src>
import jax
import jax.numpy as jnp
from jax import lax
from jax.experimental import pallas as pl
from jax.experimental.pallas import tpu as pltpu

# ---------------------------------------------------------------------------
# Static geometry (fixed by the PyTorch module; only batch N is free)
# ---------------------------------------------------------------------------
C_IN, H_IN, W_IN = 3, 32, 32            # input image (per batch element)
KH1 = 10                                # convt1 kernel (10, 1), stride 1, pad 0
H1, W1 = H_IN + KH1 - 1, W_IN           # v1 spatial: (41, 32)
K2, PH2, PW2, S2 = 5, 3, 2, 2           # convt2: 5x5 kernel, pad (3,2), stride 2
C_OUT = 3
H2 = (H1 - 1) * S2 - 2 * PH2 + K2       # 79
W2 = (W1 - 1) * S2 - 2 * PW2 + K2       # 63
H_OUT = (H2 - 4) // 2 + 1               # 38
W_OUT = (W2 - 4) // 2 + 1               # 30
# parity sub-image extents of v2
H_E, H_O = (H2 + 1) // 2, H2 // 2       # 40, 39   (even / odd output rows)
W_E, W_O = (W2 + 1) // 2, W2 // 2       # 32, 31   (even / odd output cols)

ODD_TAPS = (1, 3)                       # kernel-row/col taps of odd parity
EVEN_TAPS = (0, 2, 4)                   # kernel-row/col taps of even parity


# ---------------------------------------------------------------------------
# Fused kernel: convT1 -> convT2 (polyphase) -> maxpool, all in VMEM
# ---------------------------------------------------------------------------
def fused_kernel(x_ref, wf1_ref, b1_ref, wf2_ref, b2_ref, o_ref,
                 xpad_ref, v1p_ref):
    # x_ref   : (1, 3, 32, 32) VMEM block (one batch element)
    # wf1_ref : (30,)  SMEM  -- conv1 direct-conv weights, [ic, tap] flat (pre-flipped)
    # b1_ref  : (1,)   SMEM
    # wf2_ref : (75,)  SMEM  -- conv2 direct-conv weights, [oc, i, j] flat (pre-flipped)
    # b2_ref  : (3,)   SMEM
    # o_ref   : (1, 3, 38, 30) VMEM block
    # xpad_ref: (3, 50, 32) VMEM scratch  -- x padded by 9 rows top/bottom
    # v1p_ref : (41, 34)    VMEM scratch  -- v1 padded by 1 zero column each side

    # ---- stage 1: ConvTranspose2d(3->1, (10,1), stride 1) as a direct conv
    # on the 9-row zero-padded input (kw == 1, so it is a column-only conv).
    xpad_ref[...] = jnp.zeros_like(xpad_ref)
    xpad_ref[:, KH1 - 1:KH1 - 1 + H_IN, :] = x_ref[0]

    parts = []
    for ic in range(C_IN):                       # independent partial accumulators
        acc = xpad_ref[ic, 0:H1, :] * wf1_ref[ic * KH1]
        for i in range(1, KH1):
            acc = acc + xpad_ref[ic, i:i + H1, :] * wf1_ref[ic * KH1 + i]
        parts.append(acc)
    v1 = parts[0] + parts[1] + parts[2] + b1_ref[0]          # (41, 32)

    # One zero column on each side so the even-column phase never goes OOB.
    v1p_ref[...] = jnp.zeros_like(v1p_ref)
    v1p_ref[:, 1:1 + W1] = v1

    # ---- stage 2 (polyphase ConvTranspose2d(1->3, 5x5, stride 2, pad (3,2)))
    # fused with stage 3 (MaxPool2d(4, stride 2)) per output channel.
    def conv_parity(oc, i_taps, j_taps, h_par, w_par, col0):
        # v2_parity[m, n] = sum_{a,d} v1p[m+a, col0+n+d] * wflip[oc, i_taps[a], j_taps[d]]
        rows = []
        for a, i in enumerate(i_taps):           # per-kernel-row partial accumulators
            p = None
            for d, j in enumerate(j_taps):
                w = wf2_ref[(oc * K2 + i) * K2 + j]
                t = v1p_ref[a:a + h_par, col0 + d:col0 + d + w_par] * w
                p = t if p is None else p + t
            rows.append(p)
        out = rows[0]
        for p in rows[1:]:
            out = out + p
        return out

    def pool2x2(t):
        # max over a 2x2 / stride-1 window, separable (row max then col max)
        hm = jnp.maximum(t[:, 0:W_OUT], t[:, 1:W_OUT + 1])
        return jnp.maximum(hm[0:H_OUT, :], hm[1:H_OUT + 1, :])

    for oc in range(C_OUT):
        ee = conv_parity(oc, ODD_TAPS,  EVEN_TAPS, H_E, W_E, 0)   # v2[2m,   2n  ]
        eo = conv_parity(oc, ODD_TAPS,  ODD_TAPS,  H_E, W_O, 1)   # v2[2m,   2n+1]
        oe = conv_parity(oc, EVEN_TAPS, EVEN_TAPS, H_O, W_E, 0)   # v2[2m+1, 2n  ]
        oo = conv_parity(oc, EVEN_TAPS, ODD_TAPS,  H_O, W_O, 1)   # v2[2m+1, 2n+1]
        pooled = jnp.maximum(jnp.maximum(pool2x2(ee), pool2x2(eo)),
                             jnp.maximum(pool2x2(oe), pool2x2(oo)))
        # per-channel bias commutes with max -> add it once, after pooling
        o_ref[0, oc] = pooled + b2_ref[oc]


def _fused_forward(x, wf1, b1, wf2, b2):
    n = x.shape[0]
    return pl.pallas_call(
        fused_kernel,
        out_shape=jax.ShapeDtypeStruct((n, C_OUT, H_OUT, W_OUT), jnp.float32),
        grid_spec=pltpu.PrefetchScalarGridSpec(
            num_scalar_prefetch=0,
            grid=(n,),
            in_specs=[
                pl.BlockSpec((1, C_IN, H_IN, W_IN), lambda b: (b, 0, 0, 0)),
                pl.BlockSpec(memory_space=pltpu.MemorySpace.SMEM),
                pl.BlockSpec(memory_space=pltpu.MemorySpace.SMEM),
                pl.BlockSpec(memory_space=pltpu.MemorySpace.SMEM),
                pl.BlockSpec(memory_space=pltpu.MemorySpace.SMEM),
            ],
            out_specs=pl.BlockSpec((1, C_OUT, H_OUT, W_OUT),
                                   lambda b: (b, 0, 0, 0)),
            scratch_shapes=[
                pltpu.VMEM((C_IN, H_IN + 2 * (KH1 - 1), W_IN), jnp.float32),
                pltpu.VMEM((H1, W1 + 2), jnp.float32),
            ],
        ),
        compiler_params=pltpu.CompilerParams(
            dimension_semantics=("parallel",)),   # batch shards over TCs on v7x
    )(x, wf1, b1, wf2, b2)


@jax.jit
def model_forward(x, params):
    """x: (N, 3, 32, 32) f32 -> (N, 3, 38, 30) f32."""
    w1, b1, w2, b2 = params
    # Hoisted (once per trace) weight transforms: transposed-conv -> direct-conv.
    # wf1[ic*10 + i] = w1[ic, 0, 9-i, 0];  wf2[(oc*5+i)*5+j] = w2[0, oc, 4-i, 4-j]
    wf1 = jnp.flip(w1[:, 0, :, 0], axis=1).reshape(-1).astype(jnp.float32)
    wf2 = jnp.flip(w2[0], axis=(1, 2)).reshape(-1).astype(jnp.float32)
    return _fused_forward(x.astype(jnp.float32), wf1,
                          b1.astype(jnp.float32), wf2, b2.astype(jnp.float32))
    # TODO(synk): final HBM store stays (C,38,30) (30 lanes, masked); packing it
    # lane-dense would need an in-kernel (38,30)->(1140,) relayout that costs
    # more than the ~14 KiB masked store it would save.


# ---------------------------------------------------------------------------
# Pure-JAX reference (correctness check only)
# ---------------------------------------------------------------------------
def reference_forward(x, params):
    w1, b1, w2, b2 = params

    def convt(xx, w, b, stride, padding):
        kh, kw = w.shape[2], w.shape[3]
        ph, pw = padding
        w_conv = jnp.flip(jnp.transpose(w, (1, 0, 2, 3)), axis=(2, 3))
        y = lax.conv_general_dilated(
            xx, w_conv, window_strides=(1, 1),
            padding=[(kh - 1 - ph, kh - 1 - ph), (kw - 1 - pw, kw - 1 - pw)],
            lhs_dilation=stride, rhs_dilation=(1, 1),
            dimension_numbers=('NCHW', 'OIHW', 'NCHW'),
            precision=lax.Precision.HIGHEST)
        return y + b[None, :, None, None]

    v1 = convt(x, w1, b1, (1, 1), (0, 0))
    v2 = convt(v1, w2, b2, (2, 2), (3, 2))
    v3 = lax.reduce_window(v2, -jnp.inf, lax.max,
                           (1, 1, 4, 4), (1, 1, 2, 2), 'VALID')
    return v3


if __name__ == "__main__":
    key = jax.random.PRNGKey(0)
    k1, k2, k3, k4, kx = jax.random.split(key, 5)
    # Deterministic synthetic parameters (shapes from Model.__init__):
    w1 = jax.random.normal(k1, (3, 1, 10, 1), jnp.float32) * 0.1  # ConvT(3->1,(10,1))
    b1 = jax.random.normal(k2, (1,), jnp.float32) * 0.1
    w2 = jax.random.normal(k3, (1, 3, 5, 5), jnp.float32) * 0.1   # ConvT(1->3,(5,5))
    b2 = jax.random.normal(k4, (3,), jnp.float32) * 0.1
    params = (w1, b1, w2, b2)

    # batch=2 so the "parallel" batch grid axis exercises both TCs on v7x
    x = jax.random.normal(kx, (2, 3, 32, 32), jnp.float32)

    out = jax.block_until_ready(model_forward(x, params))
    assert out.shape == (2, 3, 38, 30), out.shape

    ref = jax.block_until_ready(reference_forward(x, params))
    assert jnp.allclose(out, ref, rtol=1e-3, atol=1e-3), \
        float(jnp.max(jnp.abs(out - ref)))

    print("KERNEL_OK")
</pallas_src>

<mosaic_0001>
module attributes {stable_mosaic.version = 11 : i64} {
  func.func @fused_kernel(%arg0: i32, %arg1: memref<1x3x32x32xf32, #tpu.memory_space<vmem>>, %arg2: memref<30xf32, #tpu.memory_space<smem>>, %arg3: memref<1xf32, #tpu.memory_space<smem>>, %arg4: memref<75xf32, #tpu.memory_space<smem>>, %arg5: memref<3xf32, #tpu.memory_space<smem>>, %arg6: memref<1x3x38x30xf32, #tpu.memory_space<vmem>>, %arg7: memref<3x50x32xf32, #tpu.memory_space<vmem>>, %arg8: memref<41x34xf32, #tpu.memory_space<vmem>>) attributes {dimension_semantics = [#tpu.dimension_semantics<parallel>], iteration_bounds = array<i64: 2>, scalar_prefetch = 0 : i64, scratch_operands = 2 : i64, tpu.core_type = #tpu.core_type<tc>, window_params = [{transform_indices = @transform_0, window_bounds = array<i64: 1, 3, 32, 32>}, {transform_indices = @transform_1, window_bounds = array<i64: 30>}, {transform_indices = @transform_2, window_bounds = array<i64: 1>}, {transform_indices = @transform_3, window_bounds = array<i64: 75>}, {transform_indices = @transform_4, window_bounds = array<i64: 3>}, {transform_indices = @transform_5, window_bounds = array<i64: 1, 3, 38, 30>}]} {
    %cst = arith.constant 0.000000e+00 : f32
    %0 = vector.broadcast %cst : f32 to vector<3x50x32xf32>
    %c0 = arith.constant 0 : index
    %c0_0 = arith.constant 0 : index
    %c0_1 = arith.constant 0 : index
    %1 = vector.load %arg7[%c0, %c0_0, %c0_1] : memref<3x50x32xf32, #tpu.memory_space<vmem>>, vector<3x50x32xf32>
    tpu.vector_store %arg7[%c0, %c0_0, %c0_1], %0 {strides = array<i32>} : memref<3x50x32xf32, #tpu.memory_space<vmem>>, vector<3x50x32xf32>,
    %c0_2 = arith.constant 0 : index
    %c0_3 = arith.constant 0 : index
    %c0_4 = arith.constant 0 : index
    %c0_5 = arith.constant 0 : index
    %2 = vector.load %arg1[%c0_2, %c0_3, %c0_4, %c0_5] : memref<1x3x32x32xf32, #tpu.memory_space<vmem>>, vector<1x3x32x32xf32>
    %3 = vector.shape_cast %2 : vector<1x3x32x32xf32> to vector<3x32x32xf32>
    %c0_6 = arith.constant 0 : index
    %c9 = arith.constant 9 : index
    %c0_7 = arith.constant 0 : index
    %4 = vector.load %arg7[%c0_6, %c9, %c0_7] : memref<3x50x32xf32, #tpu.memory_space<vmem>>, vector<3x32x32xf32>
    tpu.vector_store %arg7[%c0_6, %c9, %c0_7], %3 {strides = array<i32>} : memref<3x50x32xf32, #tpu.memory_space<vmem>>, vector<3x32x32xf32>,
    %c0_8 = arith.constant 0 : index
    %c0_9 = arith.constant 0 : index
    %c0_10 = arith.constant 0 : index
    %5 = vector.load %arg7[%c0_8, %c0_9, %c0_10] : memref<3x50x32xf32, #tpu.memory_space<vmem>>, vector<1x41x32xf32>
    %6 = vector.shape_cast %5 : vector<1x41x32xf32> to vector<41x32xf32>
    %c0_11 = arith.constant 0 : index
    %7 = memref.load %arg2[%c0_11] : memref<30xf32, #tpu.memory_space<smem>>
    %8 = vector.broadcast %7 : f32 to vector<41x32xf32>
    %9 = arith.mulf %6, %8 : vector<41x32xf32>
    %c0_12 = arith.constant 0 : index
    %c1 = arith.constant 1 : index
    %c0_13 = arith.constant 0 : index
    %10 = vector.load %arg7[%c0_12, %c1, %c0_13] : memref<3x50x32xf32, #tpu.memory_space<vmem>>, vector<1x41x32xf32>
    %11 = vector.shape_cast %10 : vector<1x41x32xf32> to vector<41x32xf32>
    %c1_14 = arith.constant 1 : index
    %12 = memref.load %arg2[%c1_14] : memref<30xf32, #tpu.memory_space<smem>>
    %13 = vector.broadcast %12 : f32 to vector<41x32xf32>
    %14 = arith.mulf %11, %13 : vector<41x32xf32>
    %15 = arith.addf %9, %14 : vector<41x32xf32>
    %c0_15 = arith.constant 0 : index
    %c2 = arith.constant 2 : index
    %c0_16 = arith.constant 0 : index
    %16 = vector.load %arg7[%c0_15, %c2, %c0_16] : memref<3x50x32xf32, #tpu.memory_space<vmem>>, vector<1x41x32xf32>
    %17 = vector.shape_cast %16 : vector<1x41x32xf32> to vector<41x32xf32>
    %c2_17 = arith.constant 2 : index
    %18 = memref.load %arg2[%c2_17] : memref<30xf32, #tpu.memory_space<smem>>
    %19 = vector.broadcast %18 : f32 to vector<41x32xf32>
    %20 = arith.mulf %17, %19 : vector<41x32xf32>
    %21 = arith.addf %15, %20 : vector<41x32xf32>
    %c0_18 = arith.constant 0 : index
    %c3 = arith.constant 3 : index
    %c0_19 = arith.constant 0 : index
    %22 = vector.load %arg7[%c0_18, %c3, %c0_19] : memref<3x50x32xf32, #tpu.memory_space<vmem>>, vector<1x41x32xf32>
    %23 = vector.shape_cast %22 : vector<1x41x32xf32> to vector<41x32xf32>
    %c3_20 = arith.constant 3 : index
    %24 = memref.load %arg2[%c3_20] : memref<30xf32, #tpu.memory_space<smem>>
    %25 = vector.broadcast %24 : f32 to vector<41x32xf32>
    %26 = arith.mulf %23, %25 : vector<41x32xf32>
    %27 = arith.addf %21, %26 : vector<41x32xf32>
    %c0_21 = arith.constant 0 : index
    %c4 = arith.constant 4 : index
    %c0_22 = arith.constant 0 : index
    %28 = vector.load %arg7[%c0_21, %c4, %c0_22] : memref<3x50x32xf32, #tpu.memory_space<vmem>>, vector<1x41x32xf32>
    %29 = vector.shape_cast %28 : vector<1x41x32xf32> to vector<41x32xf32>
    %c4_23 = arith.constant 4 : index
    %30 = memref.load %arg2[%c4_23] : memref<30xf32, #tpu.memory_space<smem>>
    %31 = vector.broadcast %30 : f32 to vector<41x32xf32>
    %32 = arith.mulf %29, %31 : vector<41x32xf32>
    %33 = arith.addf %27, %32 : vector<41x32xf32>
    %c0_24 = arith.constant 0 : index
    %c5 = arith.constant 5 : index
    %c0_25 = arith.constant 0 : index
    %34 = vector.load %arg7[%c0_24, %c5, %c0_25] : memref<3x50x32xf32, #tpu.memory_space<vmem>>, vector<1x41x32xf32>
    %35 = vector.shape_cast %34 : vector<1x41x32xf32> to vector<41x32xf32>
    %c5_26 = arith.constant 5 : index
    %36 = memref.load %arg2[%c5_26] : memref<30xf32, #tpu.memory_space<smem>>
    %37 = vector.broadcast %36 : f32 to vector<41x32xf32>
    %38 = arith.mulf %35, %37 : vector<41x32xf32>
    %39 = arith.addf %33, %38 : vector<41x32xf32>
    %c0_27 = arith.constant 0 : index
    %c6 = arith.constant 6 : index
    %c0_28 = arith.constant 0 : index
    %40 = vector.load %arg7[%c0_27, %c6, %c0_28] : memref<3x50x32xf32, #tpu.memory_space<vmem>>, vector<1x41x32xf32>
    %41 = vector.shape_cast %40 : vector<1x41x32xf32> to vector<41x32xf32>
    %c6_29 = arith.constant 6 : index
    %42 = memref.load %arg2[%c6_29] : memref<30xf32, #tpu.memory_space<smem>>
    %43 = vector.broadcast %42 : f32 to vector<41x32xf32>
    %44 = arith.mulf %41, %43 : vector<41x32xf32>
    %45 = arith.addf %39, %44 : vector<41x32xf32>
    %c0_30 = arith.constant 0 : index
    %c7 = arith.constant 7 : index
    %c0_31 = arith.constant 0 : index
    %46 = vector.load %arg7[%c0_30, %c7, %c0_31] : memref<3x50x32xf32, #tpu.memory_space<vmem>>, vector<1x41x32xf32>
    %47 = vector.shape_cast %46 : vector<1x41x32xf32> to vector<41x32xf32>
    %c7_32 = arith.constant 7 : index
    %48 = memref.load %arg2[%c7_32] : memref<30xf32, #tpu.memory_space<smem>>
    %49 = vector.broadcast %48 : f32 to vector<41x32xf32>
    %50 = arith.mulf %47, %49 : vector<41x32xf32>
    %51 = arith.addf %45, %50 : vector<41x32xf32>
    %c0_33 = arith.constant 0 : index
    %c8 = arith.constant 8 : index
    %c0_34 = arith.constant 0 : index
    %52 = vector.load %arg7[%c0_33, %c8, %c0_34] : memref<3x50x32xf32, #tpu.memory_space<vmem>>, vector<1x41x32xf32>
    %53 = vector.shape_cast %52 : vector<1x41x32xf32> to vector<41x32xf32>
    %c8_35 = arith.constant 8 : index
    %54 = memref.load %arg2[%c8_35] : memref<30xf32, #tpu.memory_space<smem>>
    %55 = vector.broadcast %54 : f32 to vector<41x32xf32>
    %56 = arith.mulf %53, %55 : vector<41x32xf32>
    %57 = arith.addf %51, %56 : vector<41x32xf32>
    %c0_36 = arith.constant 0 : index
    %c9_37 = arith.constant 9 : index
    %c0_38 = arith.constant 0 : index
    %58 = vector.load %arg7[%c0_36, %c9_37, %c0_38] : memref<3x50x32xf32, #tpu.memory_space<vmem>>, vector<1x41x32xf32>
    %59 = vector.shape_cast %58 : vector<1x41x32xf32> to vector<41x32xf32>
    %c9_39 = arith.constant 9 : index
    %60 = memref.load %arg2[%c9_39] : memref<30xf32, #tpu.memory_space<smem>>
    %61 = vector.broadcast %60 : f32 to vector<41x32xf32>
    %62 = arith.mulf %59, %61 : vector<41x32xf32>
    %63 = arith.addf %57, %62 : vector<41x32xf32>
    %c1_40 = arith.constant 1 : index
    %c0_41 = arith.constant 0 : index
    %c0_42 = arith.constant 0 : index
    %64 = vector.load %arg7[%c1_40, %c0_41, %c0_42] : memref<3x50x32xf32, #tpu.memory_space<vmem>>, vector<1x41x32xf32>
    %65 = vector.shape_cast %64 : vector<1x41x32xf32> to vector<41x32xf32>
    %c10 = arith.constant 10 : index
    %66 = memref.load %arg2[%c10] : memref<30xf32, #tpu.memory_space<smem>>
    %67 = vector.broadcast %66 : f32 to vector<41x32xf32>
    %68 = arith.mulf %65, %67 : vector<41x32xf32>
    %c1_43 = arith.constant 1 : index
    %c1_44 = arith.constant 1 : index
    %c0_45 = arith.constant 0 : index
    %69 = vector.load %arg7[%c1_43, %c1_44, %c0_45] : memref<3x50x32xf32, #tpu.memory_space<vmem>>, vector<1x41x32xf32>
    %70 = vector.shape_cast %69 : vector<1x41x32xf32> to vector<41x32xf32>
    %c11 = arith.constant 11 : index
    %71 = memref.load %arg2[%c11] : memref<30xf32, #tpu.memory_space<smem>>
    %72 = vector.broadcast %71 : f32 to vector<41x32xf32>
    %73 = arith.mulf %70, %72 : vector<41x32xf32>
    %74 = arith.addf %68, %73 : vector<41x32xf32>
    %c1_46 = arith.constant 1 : index
    %c2_47 = arith.constant 2 : index
    %c0_48 = arith.constant 0 : index
    %75 = vector.load %arg7[%c1_46, %c2_47, %c0_48] : memref<3x50x32xf32, #tpu.memory_space<vmem>>, vector<1x41x32xf32>
    %76 = vector.shape_cast %75 : vector<1x41x32xf32> to vector<41x32xf32>
    %c12 = arith.constant 12 : index
    %77 = memref.load %arg2[%c12] : memref<30xf32, #tpu.memory_space<smem>>
    %78 = vector.broadcast %77 : f32 to vector<41x32xf32>
    %79 = arith.mulf %76, %78 : vector<41x32xf32>
    %80 = arith.addf %74, %79 : vector<41x32xf32>
    %c1_49 = arith.constant 1 : index
    %c3_50 = arith.constant 3 : index
    %c0_51 = arith.constant 0 : index
    %81 = vector.load %arg7[%c1_49, %c3_50, %c0_51] : memref<3x50x32xf32, #tpu.memory_space<vmem>>, vector<1x41x32xf32>
    %82 = vector.shape_cast %81 : vector<1x41x32xf32> to vector<41x32xf32>
    %c13 = arith.constant 13 : index
    %83 = memref.load %arg2[%c13] : memref<30xf32, #tpu.memory_space<smem>>
    %84 = vector.broadcast %83 : f32 to vector<41x32xf32>
    %85 = arith.mulf %82, %84 : vector<41x32xf32>
    %86 = arith.addf %80, %85 : vector<41x32xf32>
    %c1_52 = arith.constant 1 : index
    %c4_53 = arith.constant 4 : index
    %c0_54 = arith.constant 0 : index
    %87 = vector.load %arg7[%c1_52, %c4_53, %c0_54] : memref<3x50x32xf32, #tpu.memory_space<vmem>>, vector<1x41x32xf32>
    %88 = vector.shape_cast %87 : vector<1x41x32xf32> to vector<41x32xf32>
    %c14 = arith.constant 14 : index
    %89 = memref.load %arg2[%c14] : memref<30xf32, #tpu.memory_space<smem>>
    %90 = vector.broadcast %89 : f32 to vector<41x32xf32>
    %91 = arith.mulf %88, %90 : vector<41x32xf32>
    %92 = arith.addf %86, %91 : vector<41x32xf32>
    %c1_55 = arith.constant 1 : index
    %c5_56 = arith.constant 5 : index
    %c0_57 = arith.constant 0 : index
    %93 = vector.load %arg7[%c1_55, %c5_56, %c0_57] : memref<3x50x32xf32, #tpu.memory_space<vmem>>, vector<1x41x32xf32>
    %94 = vector.shape_cast %93 : vector<1x41x32xf32> to vector<41x32xf32>
    %c15 = arith.constant 15 : index
    %95 = memref.load %arg2[%c15] : memref<30xf32, #tpu.memory_space<smem>>
    %96 = vector.broadcast %95 : f32 to vector<41x32xf32>
    %97 = arith.mulf %94, %96 : vector<41x32xf32>
    %98 = arith.addf %92, %97 : vector<41x32xf32>
    %c1_58 = arith.constant 1 : index
    %c6_59 = arith.constant 6 : index
    %c0_60 = arith.constant 0 : index
    %99 = vector.load %arg7[%c1_58, %c6_59, %c0_60] : memref<3x50x32xf32, #tpu.memory_space<vmem>>, vector<1x41x32xf32>
    %100 = vector.shape_cast %99 : vector<1x41x32xf32> to vector<41x32xf32>
    %c16 = arith.constant 16 : index
    %101 = memref.load %arg2[%c16] : memref<30xf32, #tpu.memory_space<smem>>
    %102 = vector.broadcast %101 : f32 to vector<41x32xf32>
    %103 = arith.mulf %100, %102 : vector<41x32xf32>
    %104 = arith.addf %98, %103 : vector<41x32xf32>
    %c1_61 = arith.constant 1 : index
    %c7_62 = arith.constant 7 : index
    %c0_63 = arith.constant 0 : index
    %105 = vector.load %arg7[%c1_61, %c7_62, %c0_63] : memref<3x50x32xf32, #tpu.memory_space<vmem>>, vector<1x41x32xf32>
    %106 = vector.shape_cast %105 : vector<1x41x32xf32> to vector<41x32xf32>
    %c17 = arith.constant 17 : index
    %107 = memref.load %arg2[%c17] : memref<30xf32, #tpu.memory_space<smem>>
    %108 = vector.broadcast %107 : f32 to vector<41x32xf32>
    %109 = arith.mulf %106, %108 : vector<41x32xf32>
    %110 = arith.addf %104, %109 : vector<41x32xf32>
    %c1_64 = arith.constant 1 : index
    %c8_65 = arith.constant 8 : index
    %c0_66 = arith.constant 0 : index
    %111 = vector.load %arg7[%c1_64, %c8_65, %c0_66] : memref<3x50x32xf32, #tpu.memory_space<vmem>>, vector<1x41x32xf32>
    %112 = vector.shape_cast %111 : vector<1x41x32xf32> to vector<41x32xf32>
    %c18 = arith.constant 18 : index
    %113 = memref.load %arg2[%c18] : memref<30xf32, #tpu.memory_space<smem>>
    %114 = vector.broadcast %113 : f32 to vector<41x32xf32>
    %115 = arith.mulf %112, %114 : vector<41x32xf32>
    %116 = arith.addf %110, %115 : vector<41x32xf32>
    %c1_67 = arith.constant 1 : index
    %c9_68 = arith.constant 9 : index
    %c0_69 = arith.constant 0 : index
    %117 = vector.load %arg7[%c1_67, %c9_68, %c0_69] : memref<3x50x32xf32, #tpu.memory_space<vmem>>, vector<1x41x32xf32>
    %118 = vector.shape_cast %117 : vector<1x41x32xf32> to vector<41x32xf32>
    %c19 = arith.constant 19 : index
    %119 = memref.load %arg2[%c19] : memref<30xf32, #tpu.memory_space<smem>>
    %120 = vector.broadcast %119 : f32 to vector<41x32xf32>
    %121 = arith.mulf %118, %120 : vector<41x32xf32>
    %122 = arith.addf %116, %121 : vector<41x32xf32>
    %c2_70 = arith.constant 2 : index
    %c0_71 = arith.constant 0 : index
    %c0_72 = arith.constant 0 : index
    %123 = vector.load %arg7[%c2_70, %c0_71, %c0_72] : memref<3x50x32xf32, #tpu.memory_space<vmem>>, vector<1x41x32xf32>
    %124 = vector.shape_cast %123 : vector<1x41x32xf32> to vector<41x32xf32>
    %c20 = arith.constant 20 : index
    %125 = memref.load %arg2[%c20] : memref<30xf32, #tpu.memory_space<smem>>
    %126 = vector.broadcast %125 : f32 to vector<41x32xf32>
    %127 = arith.mulf %124, %126 : vector<41x32xf32>
    %c2_73 = arith.constant 2 : index
    %c1_74 = arith.constant 1 : index
    %c0_75 = arith.constant 0 : index
    %128 = vector.load %arg7[%c2_73, %c1_74, %c0_75] : memref<3x50x32xf32, #tpu.memory_space<vmem>>, vector<1x41x32xf32>
    %129 = vector.shape_cast %128 : vector<1x41x32xf32> to vector<41x32xf32>
    %c21 = arith.constant 21 : index
    %130 = memref.load %arg2[%c21] : memref<30xf32, #tpu.memory_space<smem>>
    %131 = vector.broadcast %130 : f32 to vector<41x32xf32>
    %132 = arith.mulf %129, %131 : vector<41x32xf32>
    %133 = arith.addf %127, %132 : vector<41x32xf32>
    %c2_76 = arith.constant 2 : index
    %c2_77 = arith.constant 2 : index
    %c0_78 = arith.constant 0 : index
    %134 = vector.load %arg7[%c2_76, %c2_77, %c0_78] : memref<3x50x32xf32, #tpu.memory_space<vmem>>, vector<1x41x32xf32>
    %135 = vector.shape_cast %134 : vector<1x41x32xf32> to vector<41x32xf32>
    %c22 = arith.constant 22 : index
    %136 = memref.load %arg2[%c22] : memref<30xf32, #tpu.memory_space<smem>>
    %137 = vector.broadcast %136 : f32 to vector<41x32xf32>
    %138 = arith.mulf %135, %137 : vector<41x32xf32>
    %139 = arith.addf %133, %138 : vector<41x32xf32>
    %c2_79 = arith.constant 2 : index
    %c3_80 = arith.constant 3 : index
    %c0_81 = arith.constant 0 : index
    %140 = vector.load %arg7[%c2_79, %c3_80, %c0_81] : memref<3x50x32xf32, #tpu.memory_space<vmem>>, vector<1x41x32xf32>
    %141 = vector.shape_cast %140 : vector<1x41x32xf32> to vector<41x32xf32>
    %c23 = arith.constant 23 : index
    %142 = memref.load %arg2[%c23] : memref<30xf32, #tpu.memory_space<smem>>
    %143 = vector.broadcast %142 : f32 to vector<41x32xf32>
    %144 = arith.mulf %141, %143 : vector<41x32xf32>
    %145 = arith.addf %139, %144 : vector<41x32xf32>
    %c2_82 = arith.constant 2 : index
    %c4_83 = arith.constant 4 : index
    %c0_84 = arith.constant 0 : index
    %146 = vector.load %arg7[%c2_82, %c4_83, %c0_84] : memref<3x50x32xf32, #tpu.memory_space<vmem>>, vector<1x41x32xf32>
    %147 = vector.shape_cast %146 : vector<1x41x32xf32> to vector<41x32xf32>
    %c24 = arith.constant 24 : index
    %148 = memref.load %arg2[%c24] : memref<30xf32, #tpu.memory_space<smem>>
    %149 = vector.broadcast %148 : f32 to vector<41x32xf32>
    %150 = arith.mulf %147, %149 : vector<41x32xf32>
    %151 = arith.addf %145, %150 : vector<41x32xf32>
    %c2_85 = arith.constant 2 : index
    %c5_86 = arith.constant 5 : index
    %c0_87 = arith.constant 0 : index
    %152 = vector.load %arg7[%c2_85, %c5_86, %c0_87] : memref<3x50x32xf32, #tpu.memory_space<vmem>>, vector<1x41x32xf32>
    %153 = vector.shape_cast %152 : vector<1x41x32xf32> to vector<41x32xf32>
    %c25 = arith.constant 25 : index
    %154 = memref.load %arg2[%c25] : memref<30xf32, #tpu.memory_space<smem>>
    %155 = vector.broadcast %154 : f32 to vector<41x32xf32>
    %156 = arith.mulf %153, %155 : vector<41x32xf32>
    %157 = arith.addf %151, %156 : vector<41x32xf32>
    %c2_88 = arith.constant 2 : index
    %c6_89 = arith.constant 6 : index
    %c0_90 = arith.constant 0 : index
    %158 = vector.load %arg7[%c2_88, %c6_89, %c0_90] : memref<3x50x32xf32, #tpu.memory_space<vmem>>, vector<1x41x32xf32>
    %159 = vector.shape_cast %158 : vector<1x41x32xf32> to vector<41x32xf32>
    %c26 = arith.constant 26 : index
    %160 = memref.load %arg2[%c26] : memref<30xf32, #tpu.memory_space<smem>>
    %161 = vector.broadcast %160 : f32 to vector<41x32xf32>
    %162 = arith.mulf %159, %161 : vector<41x32xf32>
    %163 = arith.addf %157, %162 : vector<41x32xf32>
    %c2_91 = arith.constant 2 : index
    %c7_92 = arith.constant 7 : index
    %c0_93 = arith.constant 0 : index
    %164 = vector.load %arg7[%c2_91, %c7_92, %c0_93] : memref<3x50x32xf32, #tpu.memory_space<vmem>>, vector<1x41x32xf32>
    %165 = vector.shape_cast %164 : vector<1x41x32xf32> to vector<41x32xf32>
    %c27 = arith.constant 27 : index
    %166 = memref.load %arg2[%c27] : memref<30xf32, #tpu.memory_space<smem>>
    %167 = vector.broadcast %166 : f32 to vector<41x32xf32>
    %168 = arith.mulf %165, %167 : vector<41x32xf32>
    %169 = arith.addf %163, %168 : vector<41x32xf32>
    %c2_94 = arith.constant 2 : index
    %c8_95 = arith.constant 8 : index
    %c0_96 = arith.constant 0 : index
    %170 = vector.load %arg7[%c2_94, %c8_95, %c0_96] : memref<3x50x32xf32, #tpu.memory_space<vmem>>, vector<1x41x32xf32>
    %171 = vector.shape_cast %170 : vector<1x41x32xf32> to vector<41x32xf32>
    %c28 = arith.constant 28 : index
    %172 = memref.load %arg2[%c28] : memref<30xf32, #tpu.memory_space<smem>>
    %173 = vector.broadcast %172 : f32 to vector<41x32xf32>
    %174 = arith.mulf %171, %173 : vector<41x32xf32>
    %175 = arith.addf %169, %174 : vector<41x32xf32>
    %c2_97 = arith.constant 2 : index
    %c9_98 = arith.constant 9 : index
    %c0_99 = arith.constant 0 : index
    %176 = vector.load %arg7[%c2_97, %c9_98, %c0_99] : memref<3x50x32xf32, #tpu.memory_space<vmem>>, vector<1x41x32xf32>
    %177 = vector.shape_cast %176 : vector<1x41x32xf32> to vector<41x32xf32>
    %c29 = arith.constant 29 : index
    %178 = memref.load %arg2[%c29] : memref<30xf32, #tpu.memory_space<smem>>
    %179 = vector.broadcast %178 : f32 to vector<41x32xf32>
    %180 = arith.mulf %177, %179 : vector<41x32xf32>
    %181 = arith.addf %175, %180 : vector<41x32xf32>
    %182 = arith.addf %63, %122 : vector<41x32xf32>
    %183 = arith.addf %182, %181 : vector<41x32xf32>
    %c0_100 = arith.constant 0 : index
    %184 = memref.load %arg3[%c0_100] : memref<1xf32, #tpu.memory_space<smem>>
    %185 = vector.broadcast %184 : f32 to vector<41x32xf32>
    %186 = arith.addf %183, %185 : vector<41x32xf32>
    %cst_101 = arith.constant 0.000000e+00 : f32
    %187 = vector.broadcast %cst_101 : f32 to vector<41x34xf32>
    %c0_102 = arith.constant 0 : index
    %c0_103 = arith.constant 0 : index
    %188 = vector.load %arg8[%c0_102, %c0_103] : memref<41x34xf32, #tpu.memory_space<vmem>>, vector<41x34xf32>
    tpu.vector_store %arg8[%c0_102, %c0_103], %187 {strides = array<i32>} : memref<41x34xf32, #tpu.memory_space<vmem>>, vector<41x34xf32>,
    %c0_104 = arith.constant 0 : index
    %c1_105 = arith.constant 1 : index
    %189 = vector.load %arg8[%c0_104, %c1_105] : memref<41x34xf32, #tpu.memory_space<vmem>>, vector<41x32xf32>
    tpu.vector_store %arg8[%c0_104, %c1_105], %186 {strides = array<i32>} : memref<41x34xf32, #tpu.memory_space<vmem>>, vector<41x32xf32>,
    %c5_106 = arith.constant 5 : index
    %190 = memref.load %arg4[%c5_106] : memref<75xf32, #tpu.memory_space<smem>>
    %c0_107 = arith.constant 0 : index
    %c0_108 = arith.constant 0 : index
    %191 = vector.load %arg8[%c0_107, %c0_108] : memref<41x34xf32, #tpu.memory_space<vmem>>, vector<40x32xf32>
    %192 = vector.broadcast %190 : f32 to vector<40x32xf32>
    %193 = arith.mulf %191, %192 : vector<40x32xf32>
    %c7_109 = arith.constant 7 : index
    %194 = memref.load %arg4[%c7_109] : memref<75xf32, #tpu.memory_space<smem>>
    %c0_110 = arith.constant 0 : index
    %c1_111 = arith.constant 1 : index
    %195 = vector.load %arg8[%c0_110, %c1_111] : memref<41x34xf32, #tpu.memory_space<vmem>>, vector<40x32xf32>
    %196 = vector.broadcast %194 : f32 to vector<40x32xf32>
    %197 = arith.mulf %195, %196 : vector<40x32xf32>
    %198 = arith.addf %193, %197 : vector<40x32xf32>
    %c9_112 = arith.constant 9 : index
    %199 = memref.load %arg4[%c9_112] : memref<75xf32, #tpu.memory_space<smem>>
    %c0_113 = arith.constant 0 : index
    %c2_114 = arith.constant 2 : index
    %200 = vector.load %arg8[%c0_113, %c2_114] : memref<41x34xf32, #tpu.memory_space<vmem>>, vector<40x32xf32>
    %201 = vector.broadcast %199 : f32 to vector<40x32xf32>
    %202 = arith.mulf %200, %201 : vector<40x32xf32>
    %203 = arith.addf %198, %202 : vector<40x32xf32>
    %c15_115 = arith.constant 15 : index
    %204 = memref.load %arg4[%c15_115] : memref<75xf32, #tpu.memory_space<smem>>
    %c1_116 = arith.constant 1 : index
    %c0_117 = arith.constant 0 : index
    %205 = vector.load %arg8[%c1_116, %c0_117] : memref<41x34xf32, #tpu.memory_space<vmem>>, vector<40x32xf32>
    %206 = vector.broadcast %204 : f32 to vector<40x32xf32>
    %207 = arith.mulf %205, %206 : vector<40x32xf32>
    %c17_118 = arith.constant 17 : index
    %208 = memref.load %arg4[%c17_118] : memref<75xf32, #tpu.memory_space<smem>>
    %c1_119 = arith.constant 1 : index
    %c1_120 = arith.constant 1 : index
    %209 = vector.load %arg8[%c1_119, %c1_120] : memref<41x34xf32, #tpu.memory_space<vmem>>, vector<40x32xf32>
    %210 = vector.broadcast %208 : f32 to vector<40x32xf32>
    %211 = arith.mulf %209, %210 : vector<40x32xf32>
    %212 = arith.addf %207, %211 : vector<40x32xf32>
    %c19_121 = arith.constant 19 : index
    %213 = memref.load %arg4[%c19_121] : memref<75xf32, #tpu.memory_space<smem>>
    %c1_122 = arith.constant 1 : index
    %c2_123 = arith.constant 2 : index
    %214 = vector.load %arg8[%c1_122, %c2_123] : memref<41x34xf32, #tpu.memory_space<vmem>>, vector<40x32xf32>
    %215 = vector.broadcast %213 : f32 to vector<40x32xf32>
    %216 = arith.mulf %214, %215 : vector<40x32xf32>
    %217 = arith.addf %212, %216 : vector<40x32xf32>
    %218 = arith.addf %203, %217 : vector<40x32xf32>
    %c6_124 = arith.constant 6 : index
    %219 = memref.load %arg4[%c6_124] : memref<75xf32, #tpu.memory_space<smem>>
    %c0_125 = arith.constant 0 : index
    %c1_126 = arith.constant 1 : index
    %220 = vector.load %arg8[%c0_125, %c1_126] : memref<41x34xf32, #tpu.memory_space<vmem>>, vector<40x31xf32>
    %221 = vector.broadcast %219 : f32 to vector<40x31xf32>
    %222 = arith.mulf %220, %221 : vector<40x31xf32>
    %c8_127 = arith.constant 8 : index
    %223 = memref.load %arg4[%c8_127] : memref<75xf32, #tpu.memory_space<smem>>
    %c0_128 = arith.constant 0 : index
    %c2_129 = arith.constant 2 : index
    %224 = vector.load %arg8[%c0_128, %c2_129] : memref<41x34xf32, #tpu.memory_space<vmem>>, vector<40x31xf32>
    %225 = vector.broadcast %223 : f32 to vector<40x31xf32>
    %226 = arith.mulf %224, %225 : vector<40x31xf32>
    %227 = arith.addf %222, %226 : vector<40x31xf32>
    %c16_130 = arith.constant 16 : index
    %228 = memref.load %arg4[%c16_130] : memref<75xf32, #tpu.memory_space<smem>>
    %c1_131 = arith.constant 1 : index
    %c1_132 = arith.constant 1 : index
    %229 = vector.load %arg8[%c1_131, %c1_132] : memref<41x34xf32, #tpu.memory_space<vmem>>, vector<40x31xf32>
    %230 = vector.broadcast %228 : f32 to vector<40x31xf32>
    %231 = arith.mulf %229, %230 : vector<40x31xf32>
    %c18_133 = arith.constant 18 : index
    %232 = memref.load %arg4[%c18_133] : memref<75xf32, #tpu.memory_space<smem>>
    %c1_134 = arith.constant 1 : index
    %c2_135 = arith.constant 2 : index
    %233 = vector.load %arg8[%c1_134, %c2_135] : memref<41x34xf32, #tpu.memory_space<vmem>>, vector<40x31xf32>
    %234 = vector.broadcast %232 : f32 to vector<40x31xf32>
    %235 = arith.mulf %233, %234 : vector<40x31xf32>
    %236 = arith.addf %231, %235 : vector<40x31xf32>
    %237 = arith.addf %227, %236 : vector<40x31xf32>
    %c0_136 = arith.constant 0 : index
    %238 = memref.load %arg4[%c0_136] : memref<75xf32, #tpu.memory_space<smem>>
    %c0_137 = arith.constant 0 : index
    %c0_138 = arith.constant 0 : index
    %239 = vector.load %arg8[%c0_137, %c0_138] : memref<41x34xf32, #tpu.memory_space<vmem>>, vector<39x32xf32>
    %240 = vector.broadcast %238 : f32 to vector<39x32xf32>
    %241 = arith.mulf %239, %240 : vector<39x32xf32>
    %c2_139 = arith.constant 2 : index
    %242 = memref.load %arg4[%c2_139] : memref<75xf32, #tpu.memory_space<smem>>
    %c0_140 = arith.constant 0 : index
    %c1_141 = arith.constant 1 : index
    %243 = vector.load %arg8[%c0_140, %c1_141] : memref<41x34xf32, #tpu.memory_space<vmem>>, vector<39x32xf32>
    %244 = vector.broadcast %242 : f32 to vector<39x32xf32>
    %245 = arith.mulf %243, %244 : vector<39x32xf32>
    %246 = arith.addf %241, %245 : vector<39x32xf32>
    %c4_142 = arith.constant 4 : index
    %247 = memref.load %arg4[%c4_142] : memref<75xf32, #tpu.memory_space<smem>>
    %c0_143 = arith.constant 0 : index
    %c2_144 = arith.constant 2 : index
    %248 = vector.load %arg8[%c0_143, %c2_144] : memref<41x34xf32, #tpu.memory_space<vmem>>, vector<39x32xf32>
    %249 = vector.broadcast %247 : f32 to vector<39x32xf32>
    %250 = arith.mulf %248, %249 : vector<39x32xf32>
    %251 = arith.addf %246, %250 : vector<39x32xf32>
    %c10_145 = arith.constant 10 : index
    %252 = memref.load %arg4[%c10_145] : memref<75xf32, #tpu.memory_space<smem>>
    %c1_146 = arith.constant 1 : index
    %c0_147 = arith.constant 0 : index
    %253 = vector.load %arg8[%c1_146, %c0_147] : memref<41x34xf32, #tpu.memory_space<vmem>>, vector<39x32xf32>
    %254 = vector.broadcast %252 : f32 to vector<39x32xf32>
    %255 = arith.mulf %253, %254 : vector<39x32xf32>
    %c12_148 = arith.constant 12 : index
    %256 = memref.load %arg4[%c12_148] : memref<75xf32, #tpu.memory_space<smem>>
    %c1_149 = arith.constant 1 : index
    %c1_150 = arith.constant 1 : index
    %257 = vector.load %arg8[%c1_149, %c1_150] : memref<41x34xf32, #tpu.memory_space<vmem>>, vector<39x32xf32>
    %258 = vector.broadcast %256 : f32 to vector<39x32xf32>
    %259 = arith.mulf %257, %258 : vector<39x32xf32>
    %260 = arith.addf %255, %259 : vector<39x32xf32>
    %c14_151 = arith.constant 14 : index
    %261 = memref.load %arg4[%c14_151] : memref<75xf32, #tpu.memory_space<smem>>
    %c1_152 = arith.constant 1 : index
    %c2_153 = arith.constant 2 : index
    %262 = vector.load %arg8[%c1_152, %c2_153] : memref<41x34xf32, #tpu.memory_space<vmem>>, vector<39x32xf32>
    %263 = vector.broadcast %261 : f32 to vector<39x32xf32>
    %264 = arith.mulf %262, %263 : vector<39x32xf32>
    %265 = arith.addf %260, %264 : vector<39x32xf32>
    %c20_154 = arith.constant 20 : index
    %266 = memref.load %arg4[%c20_154] : memref<75xf32, #tpu.memory_space<smem>>
    %c2_155 = arith.constant 2 : index
    %c0_156 = arith.constant 0 : index
    %267 = vector.load %arg8[%c2_155, %c0_156] : memref<41x34xf32, #tpu.memory_space<vmem>>, vector<39x32xf32>
    %268 = vector.broadcast %266 : f32 to vector<39x32xf32>
    %269 = arith.mulf %267, %268 : vector<39x32xf32>
    %c22_157 = arith.constant 22 : index
    %270 = memref.load %arg4[%c22_157] : memref<75xf32, #tpu.memory_space<smem>>
    %c2_158 = arith.constant 2 : index
    %c1_159 = arith.constant 1 : index
    %271 = vector.load %arg8[%c2_158, %c1_159] : memref<41x34xf32, #tpu.memory_space<vmem>>, vector<39x32xf32>
    %272 = vector.broadcast %270 : f32 to vector<39x32xf32>
    %273 = arith.mulf %271, %272 : vector<39x32xf32>
    %274 = arith.addf %269, %273 : vector<39x32xf32>
    %c24_160 = arith.constant 24 : index
    %275 = memref.load %arg4[%c24_160] : memref<75xf32, #tpu.memory_space<smem>>
    %c2_161 = arith.constant 2 : index
    %c2_162 = arith.constant 2 : index
    %276 = vector.load %arg8[%c2_161, %c2_162] : memref<41x34xf32, #tpu.memory_space<vmem>>, vector<39x32xf32>
    %277 = vector.broadcast %275 : f32 to vector<39x32xf32>
    %278 = arith.mulf %276, %277 : vector<39x32xf32>
    %279 = arith.addf %274, %278 : vector<39x32xf32>
    %280 = arith.addf %251, %265 : vector<39x32xf32>
    %281 = arith.addf %280, %279 : vector<39x32xf32>
    %c1_163 = arith.constant 1 : index
    %282 = memref.load %arg4[%c1_163] : memref<75xf32, #tpu.memory_space<smem>>
    %c0_164 = arith.constant 0 : index
    %c1_165 = arith.constant 1 : index
    %283 = vector.load %arg8[%c0_164, %c1_165] : memref<41x34xf32, #tpu.memory_space<vmem>>, vector<39x31xf32>
    %284 = vector.broadcast %282 : f32 to vector<39x31xf32>
    %285 = arith.mulf %283, %284 : vector<39x31xf32>
    %c3_166 = arith.constant 3 : index
    %286 = memref.load %arg4[%c3_166] : memref<75xf32, #tpu.memory_space<smem>>
    %c0_167 = arith.constant 0 : index
    %c2_168 = arith.constant 2 : index
    %287 = vector.load %arg8[%c0_167, %c2_168] : memref<41x34xf32, #tpu.memory_space<vmem>>, vector<39x31xf32>
    %288 = vector.broadcast %286 : f32 to vector<39x31xf32>
    %289 = arith.mulf %287, %288 : vector<39x31xf32>
    %290 = arith.addf %285, %289 : vector<39x31xf32>
    %c11_169 = arith.constant 11 : index
    %291 = memref.load %arg4[%c11_169] : memref<75xf32, #tpu.memory_space<smem>>
    %c1_170 = arith.constant 1 : index
    %c1_171 = arith.constant 1 : index
    %292 = vector.load %arg8[%c1_170, %c1_171] : memref<41x34xf32, #tpu.memory_space<vmem>>, vector<39x31xf32>
    %293 = vector.broadcast %291 : f32 to vector<39x31xf32>
    %294 = arith.mulf %292, %293 : vector<39x31xf32>
    %c13_172 = arith.constant 13 : index
    %295 = memref.load %arg4[%c13_172] : memref<75xf32, #tpu.memory_space<smem>>
    %c1_173 = arith.constant 1 : index
    %c2_174 = arith.constant 2 : index
    %296 = vector.load %arg8[%c1_173, %c2_174] : memref<41x34xf32, #tpu.memory_space<vmem>>, vector<39x31xf32>
    %297 = vector.broadcast %295 : f32 to vector<39x31xf32>
    %298 = arith.mulf %296, %297 : vector<39x31xf32>
    %299 = arith.addf %294, %298 : vector<39x31xf32>
    %c21_175 = arith.constant 21 : index
    %300 = memref.load %arg4[%c21_175] : memref<75xf32, #tpu.memory_space<smem>>
    %c2_176 = arith.constant 2 : index
    %c1_177 = arith.constant 1 : index
    %301 = vector.load %arg8[%c2_176, %c1_177] : memref<41x34xf32, #tpu.memory_space<vmem>>, vector<39x31xf32>
    %302 = vector.broadcast %300 : f32 to vector<39x31xf32>
    %303 = arith.mulf %301, %302 : vector<39x31xf32>
    %c23_178 = arith.constant 23 : index
    %304 = memref.load %arg4[%c23_178] : memref<75xf32, #tpu.memory_space<smem>>
    %c2_179 = arith.constant 2 : index
    %c2_180 = arith.constant 2 : index
    %305 = vector.load %arg8[%c2_179, %c2_180] : memref<41x34xf32, #tpu.memory_space<vmem>>, vector<39x31xf32>
    %306 = vector.broadcast %304 : f32 to vector<39x31xf32>
    %307 = arith.mulf %305, %306 : vector<39x31xf32>
    %308 = arith.addf %303, %307 : vector<39x31xf32>
    %309 = arith.addf %290, %299 : vector<39x31xf32>
    %310 = arith.addf %309, %308 : vector<39x31xf32>
    %311 = vector.extract_strided_slice %218 {offsets = [0, 0], sizes = [40, 30], strides = [1, 1]} : vector<40x32xf32> to vector<40x30xf32>
    %312 = vector.extract_strided_slice %218 {offsets = [0, 1], sizes = [40, 30], strides = [1, 1]} : vector<40x32xf32> to vector<40x30xf32>
    %313 = arith.maximumf %311, %312 : vector<40x30xf32>
    %314 = vector.extract_strided_slice %313 {offsets = [0, 0], sizes = [38, 30], strides = [1, 1]} : vector<40x30xf32> to vector<38x30xf32>
    %315 = vector.extract_strided_slice %313 {offsets = [1, 0], sizes = [38, 30], strides = [1, 1]} : vector<40x30xf32> to vector<38x30xf32>
    %316 = arith.maximumf %314, %315 : vector<38x30xf32>
    %317 = vector.extract_strided_slice %237 {offsets = [0, 0], sizes = [40, 30], strides = [1, 1]} : vector<40x31xf32> to vector<40x30xf32>
    %318 = vector.extract_strided_slice %237 {offsets = [0, 1], sizes = [40, 30], strides = [1, 1]} : vector<40x31xf32> to vector<40x30xf32>
    %319 = arith.maximumf %317, %318 : vector<40x30xf32>
    %320 = vector.extract_strided_slice %319 {offsets = [0, 0], sizes = [38, 30], strides = [1, 1]} : vector<40x30xf32> to vector<38x30xf32>
    %321 = vector.extract_strided_slice %319 {offsets = [1, 0], sizes = [38, 30], strides = [1, 1]} : vector<40x30xf32> to vector<38x30xf32>
    %322 = arith.maximumf %320, %321 : vector<38x30xf32>
    %323 = arith.maximumf %316, %322 : vector<38x30xf32>
    %324 = vector.extract_strided_slice %281 {offsets = [0, 0], sizes = [39, 30], strides = [1, 1]} : vector<39x32xf32> to vector<39x30xf32>
    %325 = vector.extract_strided_slice %281 {offsets = [0, 1], sizes = [39, 30], strides = [1, 1]} : vector<39x32xf32> to vector<39x30xf32>
    %326 = arith.maximumf %324, %325 : vector<39x30xf32>
    %327 = vector.extract_strided_slice %326 {offsets = [0, 0], sizes = [38, 30], strides = [1, 1]} : vector<39x30xf32> to vector<38x30xf32>
    %328 = vector.extract_strided_slice %326 {offsets = [1, 0], sizes = [38, 30], strides = [1, 1]} : vector<39x30xf32> to vector<38x30xf32>
    %329 = arith.maximumf %327, %328 : vector<38x30xf32>
    %330 = vector.extract_strided_slice %310 {offsets = [0, 0], sizes = [39, 30], strides = [1, 1]} : vector<39x31xf32> to vector<39x30xf32>
    %331 = vector.extract_strided_slice %310 {offsets = [0, 1], sizes = [39, 30], strides = [1, 1]} : vector<39x31xf32> to vector<39x30xf32>
    %332 = arith.maximumf %330, %331 : vector<39x30xf32>
    %333 = vector.extract_strided_slice %332 {offsets = [0, 0], sizes = [38, 30], strides = [1, 1]} : vector<39x30xf32> to vector<38x30xf32>
    %334 = vector.extract_strided_slice %332 {offsets = [1, 0], sizes = [38, 30], strides = [1, 1]} : vector<39x30xf32> to vector<38x30xf32>
    %335 = arith.maximumf %333, %334 : vector<38x30xf32>
    %336 = arith.maximumf %329, %335 : vector<38x30xf32>
    %337 = arith.maximumf %323, %336 : vector<38x30xf32>
    %c0_181 = arith.constant 0 : index
    %338 = memref.load %arg5[%c0_181] : memref<3xf32, #tpu.memory_space<smem>>
    %339 = vector.broadcast %338 : f32 to vector<38x30xf32>
    %340 = arith.addf %337, %339 : vector<38x30xf32>
    %c0_182 = arith.constant 0 : index
    %c0_183 = arith.constant 0 : index
    %c0_184 = arith.constant 0 : index
    %c0_185 = arith.constant 0 : index
    %341 = vector.load %arg6[%c0_182, %c0_183, %c0_184, %c0_185] : memref<1x3x38x30xf32, #tpu.memory_space<vmem>>, vector<1x1x38x30xf32>
    %342 = vector.shape_cast %341 : vector<1x1x38x30xf32> to vector<38x30xf32>
    %343 = vector.shape_cast %340 : vector<38x30xf32> to vector<1x1x38x30xf32>
    tpu.vector_store %arg6[%c0_182, %c0_183, %c0_184, %c0_185], %343 {strides = array<i32>} : memref<1x3x38x30xf32, #tpu.memory_space<vmem>>, vector<1x1x38x30xf32>,
    %c30 = arith.constant 30 : index
    %344 = memref.load %arg4[%c30] : memref<75xf32, #tpu.memory_space<smem>>
    %c0_186 = arith.constant 0 : index
    %c0_187 = arith.constant 0 : index
    %345 = vector.load %arg8[%c0_186, %c0_187] : memref<41x34xf32, #tpu.memory_space<vmem>>, vector<40x32xf32>
    %346 = vector.broadcast %344 : f32 to vector<40x32xf32>
    %347 = arith.mulf %345, %346 : vector<40x32xf32>
    %c32 = arith.constant 32 : index
    %348 = memref.load %arg4[%c32] : memref<75xf32, #tpu.memory_space<smem>>
    %c0_188 = arith.constant 0 : index
    %c1_189 = arith.constant 1 : index
    %349 = vector.load %arg8[%c0_188, %c1_189] : memref<41x34xf32, #tpu.memory_space<vmem>>, vector<40x32xf32>
    %350 = vector.broadcast %348 : f32 to vector<40x32xf32>
    %351 = arith.mulf %349, %350 : vector<40x32xf32>
    %352 = arith.addf %347, %351 : vector<40x32xf32>
    %c34 = arith.constant 34 : index
    %353 = memref.load %arg4[%c34] : memref<75xf32, #tpu.memory_space<smem>>
    %c0_190 = arith.constant 0 : index
    %c2_191 = arith.constant 2 : index
    %354 = vector.load %arg8[%c0_190, %c2_191] : memref<41x34xf32, #tpu.memory_space<vmem>>, vector<40x32xf32>
    %355 = vector.broadcast %353 : f32 to vector<40x32xf32>
    %356 = arith.mulf %354, %355 : vector<40x32xf32>
    %357 = arith.addf %352, %356 : vector<40x32xf32>
    %c40 = arith.constant 40 : index
    %358 = memref.load %arg4[%c40] : memref<75xf32, #tpu.memory_space<smem>>
    %c1_192 = arith.constant 1 : index
    %c0_193 = arith.constant 0 : index
    %359 = vector.load %arg8[%c1_192, %c0_193] : memref<41x34xf32, #tpu.memory_space<vmem>>, vector<40x32xf32>
    %360 = vector.broadcast %358 : f32 to vector<40x32xf32>
    %361 = arith.mulf %359, %360 : vector<40x32xf32>
    %c42 = arith.constant 42 : index
    %362 = memref.load %arg4[%c42] : memref<75xf32, #tpu.memory_space<smem>>
    %c1_194 = arith.constant 1 : index
    %c1_195 = arith.constant 1 : index
    %363 = vector.load %arg8[%c1_194, %c1_195] : memref<41x34xf32, #tpu.memory_space<vmem>>, vector<40x32xf32>
    %364 = vector.broadcast %362 : f32 to vector<40x32xf32>
    %365 = arith.mulf %363, %364 : vector<40x32xf32>
    %366 = arith.addf %361, %365 : vector<40x32xf32>
    %c44 = arith.constant 44 : index
    %367 = memref.load %arg4[%c44] : memref<75xf32, #tpu.memory_space<smem>>
    %c1_196 = arith.constant 1 : index
    %c2_197 = arith.constant 2 : index
    %368 = vector.load %arg8[%c1_196, %c2_197] : memref<41x34xf32, #tpu.memory_space<vmem>>, vector<40x32xf32>
    %369 = vector.broadcast %367 : f32 to vector<40x32xf32>
    %370 = arith.mulf %368, %369 : vector<40x32xf32>
    %371 = arith.addf %366, %370 : vector<40x32xf32>
    %372 = arith.addf %357, %371 : vector<40x32xf32>
    %c31 = arith.constant 31 : index
    %373 = memref.load %arg4[%c31] : memref<75xf32, #tpu.memory_space<smem>>
    %c0_198 = arith.constant 0 : index
    %c1_199 = arith.constant 1 : index
    %374 = vector.load %arg8[%c0_198, %c1_199] : memref<41x34xf32, #tpu.memory_space<vmem>>, vector<40x31xf32>
    %375 = vector.broadcast %373 : f32 to vector<40x31xf32>
    %376 = arith.mulf %374, %375 : vector<40x31xf32>
    %c33 = arith.constant 33 : index
    %377 = memref.load %arg4[%c33] : memref<75xf32, #tpu.memory_space<smem>>
    %c0_200 = arith.constant 0 : index
    %c2_201 = arith.constant 2 : index
    %378 = vector.load %arg8[%c0_200, %c2_201] : memref<41x34xf32, #tpu.memory_space<vmem>>, vector<40x31xf32>
    %379 = vector.broadcast %377 : f32 to vector<40x31xf32>
    %380 = arith.mulf %378, %379 : vector<40x31xf32>
    %381 = arith.addf %376, %380 : vector<40x31xf32>
    %c41 = arith.constant 41 : index
    %382 = memref.load %arg4[%c41] : memref<75xf32, #tpu.memory_space<smem>>
    %c1_202 = arith.constant 1 : index
    %c1_203 = arith.constant 1 : index
    %383 = vector.load %arg8[%c1_202, %c1_203] : memref<41x34xf32, #tpu.memory_space<vmem>>, vector<40x31xf32>
    %384 = vector.broadcast %382 : f32 to vector<40x31xf32>
    %385 = arith.mulf %383, %384 : vector<40x31xf32>
    %c43 = arith.constant 43 : index
    %386 = memref.load %arg4[%c43] : memref<75xf32, #tpu.memory_space<smem>>
    %c1_204 = arith.constant 1 : index
    %c2_205 = arith.constant 2 : index
    %387 = vector.load %arg8[%c1_204, %c2_205] : memref<41x34xf32, #tpu.memory_space<vmem>>, vector<40x31xf32>
    %388 = vector.broadcast %386 : f32 to vector<40x31xf32>
    %389 = arith.mulf %387, %388 : vector<40x31xf32>
    %390 = arith.addf %385, %389 : vector<40x31xf32>
    %391 = arith.addf %381, %390 : vector<40x31xf32>
    %c25_206 = arith.constant 25 : index
    %392 = memref.load %arg4[%c25_206] : memref<75xf32, #tpu.memory_space<smem>>
    %c0_207 = arith.constant 0 : index
    %c0_208 = arith.constant 0 : index
    %393 = vector.load %arg8[%c0_207, %c0_208] : memref<41x34xf32, #tpu.memory_space<vmem>>, vector<39x32xf32>
    %394 = vector.broadcast %392 : f32 to vector<39x32xf32>
    %395 = arith.mulf %393, %394 : vector<39x32xf32>
    %c27_209 = arith.constant 27 : index
    %396 = memref.load %arg4[%c27_209] : memref<75xf32, #tpu.memory_space<smem>>
    %c0_210 = arith.constant 0 : index
    %c1_211 = arith.constant 1 : index
    %397 = vector.load %arg8[%c0_210, %c1_211] : memref<41x34xf32, #tpu.memory_space<vmem>>, vector<39x32xf32>
    %398 = vector.broadcast %396 : f32 to vector<39x32xf32>
    %399 = arith.mulf %397, %398 : vector<39x32xf32>
    %400 = arith.addf %395, %399 : vector<39x32xf32>
    %c29_212 = arith.constant 29 : index
    %401 = memref.load %arg4[%c29_212] : memref<75xf32, #tpu.memory_space<smem>>
    %c0_213 = arith.constant 0 : index
    %c2_214 = arith.constant 2 : index
    %402 = vector.load %arg8[%c0_213, %c2_214] : memref<41x34xf32, #tpu.memory_space<vmem>>, vector<39x32xf32>
    %403 = vector.broadcast %401 : f32 to vector<39x32xf32>
    %404 = arith.mulf %402, %403 : vector<39x32xf32>
    %405 = arith.addf %400, %404 : vector<39x32xf32>
    %c35 = arith.constant 35 : index
    %406 = memref.load %arg4[%c35] : memref<75xf32, #tpu.memory_space<smem>>
    %c1_215 = arith.constant 1 : index
    %c0_216 = arith.constant 0 : index
    %407 = vector.load %arg8[%c1_215, %c0_216] : memref<41x34xf32, #tpu.memory_space<vmem>>, vector<39x32xf32>
    %408 = vector.broadcast %406 : f32 to vector<39x32xf32>
    %409 = arith.mulf %407, %408 : vector<39x32xf32>
    %c37 = arith.constant 37 : index
    %410 = memref.load %arg4[%c37] : memref<75xf32, #tpu.memory_space<smem>>
    %c1_217 = arith.constant 1 : index
    %c1_218 = arith.constant 1 : index
    %411 = vector.load %arg8[%c1_217, %c1_218] : memref<41x34xf32, #tpu.memory_space<vmem>>, vector<39x32xf32>
    %412 = vector.broadcast %410 : f32 to vector<39x32xf32>
    %413 = arith.mulf %411, %412 : vector<39x32xf32>
    %414 = arith.addf %409, %413 : vector<39x32xf32>
    %c39 = arith.constant 39 : index
    %415 = memref.load %arg4[%c39] : memref<75xf32, #tpu.memory_space<smem>>
    %c1_219 = arith.constant 1 : index
    %c2_220 = arith.constant 2 : index
    %416 = vector.load %arg8[%c1_219, %c2_220] : memref<41x34xf32, #tpu.memory_space<vmem>>, vector<39x32xf32>
    %417 = vector.broadcast %415 : f32 to vector<39x32xf32>
    %418 = arith.mulf %416, %417 : vector<39x32xf32>
    %419 = arith.addf %414, %418 : vector<39x32xf32>
    %c45 = arith.constant 45 : index
    %420 = memref.load %arg4[%c45] : memref<75xf32, #tpu.memory_space<smem>>
    %c2_221 = arith.constant 2 : index
    %c0_222 = arith.constant 0 : index
    %421 = vector.load %arg8[%c2_221, %c0_222] : memref<41x34xf32, #tpu.memory_space<vmem>>, vector<39x32xf32>
    %422 = vector.broadcast %420 : f32 to vector<39x32xf32>
    %423 = arith.mulf %421, %422 : vector<39x32xf32>
    %c47 = arith.constant 47 : index
    %424 = memref.load %arg4[%c47] : memref<75xf32, #tpu.memory_space<smem>>
    %c2_223 = arith.constant 2 : index
    %c1_224 = arith.constant 1 : index
    %425 = vector.load %arg8[%c2_223, %c1_224] : memref<41x34xf32, #tpu.memory_space<vmem>>, vector<39x32xf32>
    %426 = vector.broadcast %424 : f32 to vector<39x32xf32>
    %427 = arith.mulf %425, %426 : vector<39x32xf32>
    %428 = arith.addf %423, %427 : vector<39x32xf32>
    %c49 = arith.constant 49 : index
    %429 = memref.load %arg4[%c49] : memref<75xf32, #tpu.memory_space<smem>>
    %c2_225 = arith.constant 2 : index
    %c2_226 = arith.constant 2 : index
    %430 = vector.load %arg8[%c2_225, %c2_226] : memref<41x34xf32, #tpu.memory_space<vmem>>, vector<39x32xf32>
    %431 = vector.broadcast %429 : f32 to vector<39x32xf32>
    %432 = arith.mulf %430, %431 : vector<39x32xf32>
    %433 = arith.addf %428, %432 : vector<39x32xf32>
    %434 = arith.addf %405, %419 : vector<39x32xf32>
    %435 = arith.addf %434, %433 : vector<39x32xf32>
    %c26_227 = arith.constant 26 : index
    %436 = memref.load %arg4[%c26_227] : memref<75xf32, #tpu.memory_space<smem>>
    %c0_228 = arith.constant 0 : index
    %c1_229 = arith.constant 1 : index
    %437 = vector.load %arg8[%c0_228, %c1_229] : memref<41x34xf32, #tpu.memory_space<vmem>>, vector<39x31xf32>
    %438 = vector.broadcast %436 : f32 to vector<39x31xf32>
    %439 = arith.mulf %437, %438 : vector<39x31xf32>
    %c28_230 = arith.constant 28 : index
    %440 = memref.load %arg4[%c28_230] : memref<75xf32, #tpu.memory_space<smem>>
    %c0_231 = arith.constant 0 : index
    %c2_232 = arith.constant 2 : index
    %441 = vector.load %arg8[%c0_231, %c2_232] : memref<41x34xf32, #tpu.memory_space<vmem>>, vector<39x31xf32>
    %442 = vector.broadcast %440 : f32 to vector<39x31xf32>
    %443 = arith.mulf %441, %442 : vector<39x31xf32>
    %444 = arith.addf %439, %443 : vector<39x31xf32>
    %c36 = arith.constant 36 : index
    %445 = memref.load %arg4[%c36] : memref<75xf32, #tpu.memory_space<smem>>
    %c1_233 = arith.constant 1 : index
    %c1_234 = arith.constant 1 : index
    %446 = vector.load %arg8[%c1_233, %c1_234] : memref<41x34xf32, #tpu.memory_space<vmem>>, vector<39x31xf32>
    %447 = vector.broadcast %445 : f32 to vector<39x31xf32>
    %448 = arith.mulf %446, %447 : vector<39x31xf32>
    %c38 = arith.constant 38 : index
    %449 = memref.load %arg4[%c38] : memref<75xf32, #tpu.memory_space<smem>>
    %c1_235 = arith.constant 1 : index
    %c2_236 = arith.constant 2 : index
    %450 = vector.load %arg8[%c1_235, %c2_236] : memref<41x34xf32, #tpu.memory_space<vmem>>, vector<39x31xf32>
    %451 = vector.broadcast %449 : f32 to vector<39x31xf32>
    %452 = arith.mulf %450, %451 : vector<39x31xf32>
    %453 = arith.addf %448, %452 : vector<39x31xf32>
    %c46 = arith.constant 46 : index
    %454 = memref.load %arg4[%c46] : memref<75xf32, #tpu.memory_space<smem>>
    %c2_237 = arith.constant 2 : index
    %c1_238 = arith.constant 1 : index
    %455 = vector.load %arg8[%c2_237, %c1_238] : memref<41x34xf32, #tpu.memory_space<vmem>>, vector<39x31xf32>
    %456 = vector.broadcast %454 : f32 to vector<39x31xf32>
    %457 = arith.mulf %455, %456 : vector<39x31xf32>
    %c48 = arith.constant 48 : index
    %458 = memref.load %arg4[%c48] : memref<75xf32, #tpu.memory_space<smem>>
    %c2_239 = arith.constant 2 : index
    %c2_240 = arith.constant 2 : index
    %459 = vector.load %arg8[%c2_239, %c2_240] : memref<41x34xf32, #tpu.memory_space<vmem>>, vector<39x31xf32>
    %460 = vector.broadcast %458 : f32 to vector<39x31xf32>
    %461 = arith.mulf %459, %460 : vector<39x31xf32>
    %462 = arith.addf %457, %461 : vector<39x31xf32>
    %463 = arith.addf %444, %453 : vector<39x31xf32>
    %464 = arith.addf %463, %462 : vector<39x31xf32>
    %465 = vector.extract_strided_slice %372 {offsets = [0, 0], sizes = [40, 30], strides = [1, 1]} : vector<40x32xf32> to vector<40x30xf32>
    %466 = vector.extract_strided_slice %372 {offsets = [0, 1], sizes = [40, 30], strides = [1, 1]} : vector<40x32xf32> to vector<40x30xf32>
    %467 = arith.maximumf %465, %466 : vector<40x30xf32>
    %468 = vector.extract_strided_slice %467 {offsets = [0, 0], sizes = [38, 30], strides = [1, 1]} : vector<40x30xf32> to vector<38x30xf32>
    %469 = vector.extract_strided_slice %467 {offsets = [1, 0], sizes = [38, 30], strides = [1, 1]} : vector<40x30xf32> to vector<38x30xf32>
    %470 = arith.maximumf %468, %469 : vector<38x30xf32>
    %471 = vector.extract_strided_slice %391 {offsets = [0, 0], sizes = [40, 30], strides = [1, 1]} : vector<40x31xf32> to vector<40x30xf32>
    %472 = vector.extract_strided_slice %391 {offsets = [0, 1], sizes = [40, 30], strides = [1, 1]} : vector<40x31xf32> to vector<40x30xf32>
    %473 = arith.maximumf %471, %472 : vector<40x30xf32>
    %474 = vector.extract_strided_slice %473 {offsets = [0, 0], sizes = [38, 30], strides = [1, 1]} : vector<40x30xf32> to vector<38x30xf32>
    %475 = vector.extract_strided_slice %473 {offsets = [1, 0], sizes = [38, 30], strides = [1, 1]} : vector<40x30xf32> to vector<38x30xf32>
    %476 = arith.maximumf %474, %475 : vector<38x30xf32>
    %477 = arith.maximumf %470, %476 : vector<38x30xf32>
    %478 = vector.extract_strided_slice %435 {offsets = [0, 0], sizes = [39, 30], strides = [1, 1]} : vector<39x32xf32> to vector<39x30xf32>
    %479 = vector.extract_strided_slice %435 {offsets = [0, 1], sizes = [39, 30], strides = [1, 1]} : vector<39x32xf32> to vector<39x30xf32>
    %480 = arith.maximumf %478, %479 : vector<39x30xf32>
    %481 = vector.extract_strided_slice %480 {offsets = [0, 0], sizes = [38, 30], strides = [1, 1]} : vector<39x30xf32> to vector<38x30xf32>
    %482 = vector.extract_strided_slice %480 {offsets = [1, 0], sizes = [38, 30], strides = [1, 1]} : vector<39x30xf32> to vector<38x30xf32>
    %483 = arith.maximumf %481, %482 : vector<38x30xf32>
    %484 = vector.extract_strided_slice %464 {offsets = [0, 0], sizes = [39, 30], strides = [1, 1]} : vector<39x31xf32> to vector<39x30xf32>
    %485 = vector.extract_strided_slice %464 {offsets = [0, 1], sizes = [39, 30], strides = [1, 1]} : vector<39x31xf32> to vector<39x30xf32>
    %486 = arith.maximumf %484, %485 : vector<39x30xf32>
    %487 = vector.extract_strided_slice %486 {offsets = [0, 0], sizes = [38, 30], strides = [1, 1]} : vector<39x30xf32> to vector<38x30xf32>
    %488 = vector.extract_strided_slice %486 {offsets = [1, 0], sizes = [38, 30], strides = [1, 1]} : vector<39x30xf32> to vector<38x30xf32>
    %489 = arith.maximumf %487, %488 : vector<38x30xf32>
    %490 = arith.maximumf %483, %489 : vector<38x30xf32>
    %491 = arith.maximumf %477, %490 : vector<38x30xf32>
    %c1_241 = arith.constant 1 : index
    %492 = memref.load %arg5[%c1_241] : memref<3xf32, #tpu.memory_space<smem>>
    %493 = vector.broadcast %492 : f32 to vector<38x30xf32>
    %494 = arith.addf %491, %493 : vector<38x30xf32>
    %c0_242 = arith.constant 0 : index
    %c1_243 = arith.constant 1 : index
    %c0_244 = arith.constant 0 : index
    %c0_245 = arith.constant 0 : index
    %495 = vector.load %arg6[%c0_242, %c1_243, %c0_244, %c0_245] : memref<1x3x38x30xf32, #tpu.memory_space<vmem>>, vector<1x1x38x30xf32>
    %496 = vector.shape_cast %495 : vector<1x1x38x30xf32> to vector<38x30xf32>
    %497 = vector.shape_cast %494 : vector<38x30xf32> to vector<1x1x38x30xf32>
    tpu.vector_store %arg6[%c0_242, %c1_243, %c0_244, %c0_245], %497 {strides = array<i32>} : memref<1x3x38x30xf32, #tpu.memory_space<vmem>>, vector<1x1x38x30xf32>,
    %c55 = arith.constant 55 : index
    %498 = memref.load %arg4[%c55] : memref<75xf32, #tpu.memory_space<smem>>
    %c0_246 = arith.constant 0 : index
    %c0_247 = arith.constant 0 : index
    %499 = vector.load %arg8[%c0_246, %c0_247] : memref<41x34xf32, #tpu.memory_space<vmem>>, vector<40x32xf32>
    %500 = vector.broadcast %498 : f32 to vector<40x32xf32>
    %501 = arith.mulf %499, %500 : vector<40x32xf32>
    %c57 = arith.constant 57 : index
    %502 = memref.load %arg4[%c57] : memref<75xf32, #tpu.memory_space<smem>>
    %c0_248 = arith.constant 0 : index
    %c1_249 = arith.constant 1 : index
    %503 = vector.load %arg8[%c0_248, %c1_249] : memref<41x34xf32, #tpu.memory_space<vmem>>, vector<40x32xf32>
    %504 = vector.broadcast %502 : f32 to vector<40x32xf32>
    %505 = arith.mulf %503, %504 : vector<40x32xf32>
    %506 = arith.addf %501, %505 : vector<40x32xf32>
    %c59 = arith.constant 59 : index
    %507 = memref.load %arg4[%c59] : memref<75xf32, #tpu.memory_space<smem>>
    %c0_250 = arith.constant 0 : index
    %c2_251 = arith.constant 2 : index
    %508 = vector.load %arg8[%c0_250, %c2_251] : memref<41x34xf32, #tpu.memory_space<vmem>>, vector<40x32xf32>
    %509 = vector.broadcast %507 : f32 to vector<40x32xf32>
    %510 = arith.mulf %508, %509 : vector<40x32xf32>
    %511 = arith.addf %506, %510 : vector<40x32xf32>
    %c65 = arith.constant 65 : index
    %512 = memref.load %arg4[%c65] : memref<75xf32, #tpu.memory_space<smem>>
    %c1_252 = arith.constant 1 : index
    %c0_253 = arith.constant 0 : index
    %513 = vector.load %arg8[%c1_252, %c0_253] : memref<41x34xf32, #tpu.memory_space<vmem>>, vector<40x32xf32>
    %514 = vector.broadcast %512 : f32 to vector<40x32xf32>
    %515 = arith.mulf %513, %514 : vector<40x32xf32>
    %c67 = arith.constant 67 : index
    %516 = memref.load %arg4[%c67] : memref<75xf32, #tpu.memory_space<smem>>
    %c1_254 = arith.constant 1 : index
    %c1_255 = arith.constant 1 : index
    %517 = vector.load %arg8[%c1_254, %c1_255] : memref<41x34xf32, #tpu.memory_space<vmem>>, vector<40x32xf32>
    %518 = vector.broadcast %516 : f32 to vector<40x32xf32>
    %519 = arith.mulf %517, %518 : vector<40x32xf32>
    %520 = arith.addf %515, %519 : vector<40x32xf32>
    %c69 = arith.constant 69 : index
    %521 = memref.load %arg4[%c69] : memref<75xf32, #tpu.memory_space<smem>>
    %c1_256 = arith.constant 1 : index
    %c2_257 = arith.constant 2 : index
    %522 = vector.load %arg8[%c1_256, %c2_257] : memref<41x34xf32, #tpu.memory_space<vmem>>, vector<40x32xf32>
    %523 = vector.broadcast %521 : f32 to vector<40x32xf32>
    %524 = arith.mulf %522, %523 : vector<40x32xf32>
    %525 = arith.addf %520, %524 : vector<40x32xf32>
    %526 = arith.addf %511, %525 : vector<40x32xf32>
    %c56 = arith.constant 56 : index
    %527 = memref.load %arg4[%c56] : memref<75xf32, #tpu.memory_space<smem>>
    %c0_258 = arith.constant 0 : index
    %c1_259 = arith.constant 1 : index
    %528 = vector.load %arg8[%c0_258, %c1_259] : memref<41x34xf32, #tpu.memory_space<vmem>>, vector<40x31xf32>
    %529 = vector.broadcast %527 : f32 to vector<40x31xf32>
    %530 = arith.mulf %528, %529 : vector<40x31xf32>
    %c58 = arith.constant 58 : index
    %531 = memref.load %arg4[%c58] : memref<75xf32, #tpu.memory_space<smem>>
    %c0_260 = arith.constant 0 : index
    %c2_261 = arith.constant 2 : index
    %532 = vector.load %arg8[%c0_260, %c2_261] : memref<41x34xf32, #tpu.memory_space<vmem>>, vector<40x31xf32>
    %533 = vector.broadcast %531 : f32 to vector<40x31xf32>
    %534 = arith.mulf %532, %533 : vector<40x31xf32>
    %535 = arith.addf %530, %534 : vector<40x31xf32>
    %c66 = arith.constant 66 : index
    %536 = memref.load %arg4[%c66] : memref<75xf32, #tpu.memory_space<smem>>
    %c1_262 = arith.constant 1 : index
    %c1_263 = arith.constant 1 : index
    %537 = vector.load %arg8[%c1_262, %c1_263] : memref<41x34xf32, #tpu.memory_space<vmem>>, vector<40x31xf32>
    %538 = vector.broadcast %536 : f32 to vector<40x31xf32>
    %539 = arith.mulf %537, %538 : vector<40x31xf32>
    %c68 = arith.constant 68 : index
    %540 = memref.load %arg4[%c68] : memref<75xf32, #tpu.memory_space<smem>>
    %c1_264 = arith.constant 1 : index
    %c2_265 = arith.constant 2 : index
    %541 = vector.load %arg8[%c1_264, %c2_265] : memref<41x34xf32, #tpu.memory_space<vmem>>, vector<40x31xf32>
    %542 = vector.broadcast %540 : f32 to vector<40x31xf32>
    %543 = arith.mulf %541, %542 : vector<40x31xf32>
    %544 = arith.addf %539, %543 : vector<40x31xf32>
    %545 = arith.addf %535, %544 : vector<40x31xf32>
    %c50 = arith.constant 50 : index
    %546 = memref.load %arg4[%c50] : memref<75xf32, #tpu.memory_space<smem>>
    %c0_266 = arith.constant 0 : index
    %c0_267 = arith.constant 0 : index
    %547 = vector.load %arg8[%c0_266, %c0_267] : memref<41x34xf32, #tpu.memory_space<vmem>>, vector<39x32xf32>
    %548 = vector.broadcast %546 : f32 to vector<39x32xf32>
    %549 = arith.mulf %547, %548 : vector<39x32xf32>
    %c52 = arith.constant 52 : index
    %550 = memref.load %arg4[%c52] : memref<75xf32, #tpu.memory_space<smem>>
    %c0_268 = arith.constant 0 : index
    %c1_269 = arith.constant 1 : index
    %551 = vector.load %arg8[%c0_268, %c1_269] : memref<41x34xf32, #tpu.memory_space<vmem>>, vector<39x32xf32>
    %552 = vector.broadcast %550 : f32 to vector<39x32xf32>
    %553 = arith.mulf %551, %552 : vector<39x32xf32>
    %554 = arith.addf %549, %553 : vector<39x32xf32>
    %c54 = arith.constant 54 : index
    %555 = memref.load %arg4[%c54] : memref<75xf32, #tpu.memory_space<smem>>
    %c0_270 = arith.constant 0 : index
    %c2_271 = arith.constant 2 : index
    %556 = vector.load %arg8[%c0_270, %c2_271] : memref<41x34xf32, #tpu.memory_space<vmem>>, vector<39x32xf32>
    %557 = vector.broadcast %555 : f32 to vector<39x32xf32>
    %558 = arith.mulf %556, %557 : vector<39x32xf32>
    %559 = arith.addf %554, %558 : vector<39x32xf32>
    %c60 = arith.constant 60 : index
    %560 = memref.load %arg4[%c60] : memref<75xf32, #tpu.memory_space<smem>>
    %c1_272 = arith.constant 1 : index
    %c0_273 = arith.constant 0 : index
    %561 = vector.load %arg8[%c1_272, %c0_273] : memref<41x34xf32, #tpu.memory_space<vmem>>, vector<39x32xf32>
    %562 = vector.broadcast %560 : f32 to vector<39x32xf32>
    %563 = arith.mulf %561, %562 : vector<39x32xf32>
    %c62 = arith.constant 62 : index
    %564 = memref.load %arg4[%c62] : memref<75xf32, #tpu.memory_space<smem>>
    %c1_274 = arith.constant 1 : index
    %c1_275 = arith.constant 1 : index
    %565 = vector.load %arg8[%c1_274, %c1_275] : memref<41x34xf32, #tpu.memory_space<vmem>>, vector<39x32xf32>
    %566 = vector.broadcast %564 : f32 to vector<39x32xf32>
    %567 = arith.mulf %565, %566 : vector<39x32xf32>
    %568 = arith.addf %563, %567 : vector<39x32xf32>
    %c64 = arith.constant 64 : index
    %569 = memref.load %arg4[%c64] : memref<75xf32, #tpu.memory_space<smem>>
    %c1_276 = arith.constant 1 : index
    %c2_277 = arith.constant 2 : index
    %570 = vector.load %arg8[%c1_276, %c2_277] : memref<41x34xf32, #tpu.memory_space<vmem>>, vector<39x32xf32>
    %571 = vector.broadcast %569 : f32 to vector<39x32xf32>
    %572 = arith.mulf %570, %571 : vector<39x32xf32>
    %573 = arith.addf %568, %572 : vector<39x32xf32>
    %c70 = arith.constant 70 : index
    %574 = memref.load %arg4[%c70] : memref<75xf32, #tpu.memory_space<smem>>
    %c2_278 = arith.constant 2 : index
    %c0_279 = arith.constant 0 : index
    %575 = vector.load %arg8[%c2_278, %c0_279] : memref<41x34xf32, #tpu.memory_space<vmem>>, vector<39x32xf32>
    %576 = vector.broadcast %574 : f32 to vector<39x32xf32>
    %577 = arith.mulf %575, %576 : vector<39x32xf32>
    %c72 = arith.constant 72 : index
    %578 = memref.load %arg4[%c72] : memref<75xf32, #tpu.memory_space<smem>>
    %c2_280 = arith.constant 2 : index
    %c1_281 = arith.constant 1 : index
    %579 = vector.load %arg8[%c2_280, %c1_281] : memref<41x34xf32, #tpu.memory_space<vmem>>, vector<39x32xf32>
    %580 = vector.broadcast %578 : f32 to vector<39x32xf32>
    %581 = arith.mulf %579, %580 : vector<39x32xf32>
    %582 = arith.addf %577, %581 : vector<39x32xf32>
    %c74 = arith.constant 74 : index
    %583 = memref.load %arg4[%c74] : memref<75xf32, #tpu.memory_space<smem>>
    %c2_282 = arith.constant 2 : index
    %c2_283 = arith.constant 2 : index
    %584 = vector.load %arg8[%c2_282, %c2_283] : memref<41x34xf32, #tpu.memory_space<vmem>>, vector<39x32xf32>
    %585 = vector.broadcast %583 : f32 to vector<39x32xf32>
    %586 = arith.mulf %584, %585 : vector<39x32xf32>
    %587 = arith.addf %582, %586 : vector<39x32xf32>
    %588 = arith.addf %559, %573 : vector<39x32xf32>
    %589 = arith.addf %588, %587 : vector<39x32xf32>
    %c51 = arith.constant 51 : index
    %590 = memref.load %arg4[%c51] : memref<75xf32, #tpu.memory_space<smem>>
    %c0_284 = arith.constant 0 : index
    %c1_285 = arith.constant 1 : index
    %591 = vector.load %arg8[%c0_284, %c1_285] : memref<41x34xf32, #tpu.memory_space<vmem>>, vector<39x31xf32>
    %592 = vector.broadcast %590 : f32 to vector<39x31xf32>
    %593 = arith.mulf %591, %592 : vector<39x31xf32>
    %c53 = arith.constant 53 : index
    %594 = memref.load %arg4[%c53] : memref<75xf32, #tpu.memory_space<smem>>
    %c0_286 = arith.constant 0 : index
    %c2_287 = arith.constant 2 : index
    %595 = vector.load %arg8[%c0_286, %c2_287] : memref<41x34xf32, #tpu.memory_space<vmem>>, vector<39x31xf32>
    %596 = vector.broadcast %594 : f32 to vector<39x31xf32>
    %597 = arith.mulf %595, %596 : vector<39x31xf32>
    %598 = arith.addf %593, %597 : vector<39x31xf32>
    %c61 = arith.constant 61 : index
    %599 = memref.load %arg4[%c61] : memref<75xf32, #tpu.memory_space<smem>>
    %c1_288 = arith.constant 1 : index
    %c1_289 = arith.constant 1 : index
    %600 = vector.load %arg8[%c1_288, %c1_289] : memref<41x34xf32, #tpu.memory_space<vmem>>, vector<39x31xf32>
    %601 = vector.broadcast %599 : f32 to vector<39x31xf32>
    %602 = arith.mulf %600, %601 : vector<39x31xf32>
    %c63 = arith.constant 63 : index
    %603 = memref.load %arg4[%c63] : memref<75xf32, #tpu.memory_space<smem>>
    %c1_290 = arith.constant 1 : index
    %c2_291 = arith.constant 2 : index
    %604 = vector.load %arg8[%c1_290, %c2_291] : memref<41x34xf32, #tpu.memory_space<vmem>>, vector<39x31xf32>
    %605 = vector.broadcast %603 : f32 to vector<39x31xf32>
    %606 = arith.mulf %604, %605 : vector<39x31xf32>
    %607 = arith.addf %602, %606 : vector<39x31xf32>
    %c71 = arith.constant 71 : index
    %608 = memref.load %arg4[%c71] : memref<75xf32, #tpu.memory_space<smem>>
    %c2_292 = arith.constant 2 : index
    %c1_293 = arith.constant 1 : index
    %609 = vector.load %arg8[%c2_292, %c1_293] : memref<41x34xf32, #tpu.memory_space<vmem>>, vector<39x31xf32>
    %610 = vector.broadcast %608 : f32 to vector<39x31xf32>
    %611 = arith.mulf %609, %610 : vector<39x31xf32>
    %c73 = arith.constant 73 : index
    %612 = memref.load %arg4[%c73] : memref<75xf32, #tpu.memory_space<smem>>
    %c2_294 = arith.constant 2 : index
    %c2_295 = arith.constant 2 : index
    %613 = vector.load %arg8[%c2_294, %c2_295] : memref<41x34xf32, #tpu.memory_space<vmem>>, vector<39x31xf32>
    %614 = vector.broadcast %612 : f32 to vector<39x31xf32>
    %615 = arith.mulf %613, %614 : vector<39x31xf32>
    %616 = arith.addf %611, %615 : vector<39x31xf32>
    %617 = arith.addf %598, %607 : vector<39x31xf32>
    %618 = arith.addf %617, %616 : vector<39x31xf32>
    %619 = vector.extract_strided_slice %526 {offsets = [0, 0], sizes = [40, 30], strides = [1, 1]} : vector<40x32xf32> to vector<40x30xf32>
    %620 = vector.extract_strided_slice %526 {offsets = [0, 1], sizes = [40, 30], strides = [1, 1]} : vector<40x32xf32> to vector<40x30xf32>
    %621 = arith.maximumf %619, %620 : vector<40x30xf32>
    %622 = vector.extract_strided_slice %621 {offsets = [0, 0], sizes = [38, 30], strides = [1, 1]} : vector<40x30xf32> to vector<38x30xf32>
    %623 = vector.extract_strided_slice %621 {offsets = [1, 0], sizes = [38, 30], strides = [1, 1]} : vector<40x30xf32> to vector<38x30xf32>
    %624 = arith.maximumf %622, %623 : vector<38x30xf32>
    %625 = vector.extract_strided_slice %545 {offsets = [0, 0], sizes = [40, 30], strides = [1, 1]} : vector<40x31xf32> to vector<40x30xf32>
    %626 = vector.extract_strided_slice %545 {offsets = [0, 1], sizes = [40, 30], strides = [1, 1]} : vector<40x31xf32> to vector<40x30xf32>
    %627 = arith.maximumf %625, %626 : vector<40x30xf32>
    %628 = vector.extract_strided_slice %627 {offsets = [0, 0], sizes = [38, 30], strides = [1, 1]} : vector<40x30xf32> to vector<38x30xf32>
    %629 = vector.extract_strided_slice %627 {offsets = [1, 0], sizes = [38, 30], strides = [1, 1]} : vector<40x30xf32> to vector<38x30xf32>
    %630 = arith.maximumf %628, %629 : vector<38x30xf32>
    %631 = arith.maximumf %624, %630 : vector<38x30xf32>
    %632 = vector.extract_strided_slice %589 {offsets = [0, 0], sizes = [39, 30], strides = [1, 1]} : vector<39x32xf32> to vector<39x30xf32>
    %633 = vector.extract_strided_slice %589 {offsets = [0, 1], sizes = [39, 30], strides = [1, 1]} : vector<39x32xf32> to vector<39x30xf32>
    %634 = arith.maximumf %632, %633 : vector<39x30xf32>
    %635 = vector.extract_strided_slice %634 {offsets = [0, 0], sizes = [38, 30], strides = [1, 1]} : vector<39x30xf32> to vector<38x30xf32>
    %636 = vector.extract_strided_slice %634 {offsets = [1, 0], sizes = [38, 30], strides = [1, 1]} : vector<39x30xf32> to vector<38x30xf32>
    %637 = arith.maximumf %635, %636 : vector<38x30xf32>
    %638 = vector.extract_strided_slice %618 {offsets = [0, 0], sizes = [39, 30], strides = [1, 1]} : vector<39x31xf32> to vector<39x30xf32>
    %639 = vector.extract_strided_slice %618 {offsets = [0, 1], sizes = [39, 30], strides = [1, 1]} : vector<39x31xf32> to vector<39x30xf32>
    %640 = arith.maximumf %638, %639 : vector<39x30xf32>
    %641 = vector.extract_strided_slice %640 {offsets = [0, 0], sizes = [38, 30], strides = [1, 1]} : vector<39x30xf32> to vector<38x30xf32>
    %642 = vector.extract_strided_slice %640 {offsets = [1, 0], sizes = [38, 30], strides = [1, 1]} : vector<39x30xf32> to vector<38x30xf32>
    %643 = arith.maximumf %641, %642 : vector<38x30xf32>
    %644 = arith.maximumf %637, %643 : vector<38x30xf32>
    %645 = arith.maximumf %631, %644 : vector<38x30xf32>
    %c2_296 = arith.constant 2 : index
    %646 = memref.load %arg5[%c2_296] : memref<3xf32, #tpu.memory_space<smem>>
    %647 = vector.broadcast %646 : f32 to vector<38x30xf32>
    %648 = arith.addf %645, %647 : vector<38x30xf32>
    %c0_297 = arith.constant 0 : index
    %c2_298 = arith.constant 2 : index
    %c0_299 = arith.constant 0 : index
    %c0_300 = arith.constant 0 : index
    %649 = vector.load %arg6[%c0_297, %c2_298, %c0_299, %c0_300] : memref<1x3x38x30xf32, #tpu.memory_space<vmem>>, vector<1x1x38x30xf32>
    %650 = vector.shape_cast %649 : vector<1x1x38x30xf32> to vector<38x30xf32>
    %651 = vector.shape_cast %648 : vector<38x30xf32> to vector<1x1x38x30xf32>
    tpu.vector_store %arg6[%c0_297, %c2_298, %c0_299, %c0_300], %651 {strides = array<i32>} : memref<1x3x38x30xf32, #tpu.memory_space<vmem>>, vector<1x1x38x30xf32>,
    return
  }
  func.func @transform_0(%arg0: i32) -> (i32, i32, i32, i32) {
    %c0_i32 = arith.constant 0 : i32
    %c0_i32_0 = arith.constant 0 : i32
    %c0_i32_1 = arith.constant 0 : i32
    %c0_i32_2 = arith.constant 0 : i32
    return %arg0, %c0_i32, %c0_i32_0, %c0_i32_1 : i32, i32, i32, i32
  }
  func.func @transform_1(%arg0: i32) -> i32 {
    %c0_i32 = arith.constant 0 : i32
    %c0_i32_0 = arith.constant 0 : i32
    return %c0_i32 : i32
  }
  func.func @transform_2(%arg0: i32) -> i32 {
    %c0_i32 = arith.constant 0 : i32
    %c0_i32_0 = arith.constant 0 : i32
    return %c0_i32 : i32
  }
  func.func @transform_3(%arg0: i32) -> i32 {
    %c0_i32 = arith.constant 0 : i32
    %c0_i32_0 = arith.constant 0 : i32
    return %c0_i32 : i32
  }
  func.func @transform_4(%arg0: i32) -> i32 {
    %c0_i32 = arith.constant 0 : i32
    %c0_i32_0 = arith.constant 0 : i32
    return %c0_i32 : i32
  }
  func.func @transform_5(%arg0: i32) -> (i32, i32, i32, i32) {
    %c0_i32 = arith.constant 0 : i32
    %c0_i32_0 = arith.constant 0 : i32
    %c0_i32_1 = arith.constant 0 : i32
    %c0_i32_2 = arith.constant 0 : i32
    return %arg0, %c0_i32, %c0_i32_0, %c0_i32_1 : i32, i32, i32, i32
  }
}

</mosaic_0001>

<llo_original>
// kernel: model_forward.1
$region0: #{model_forward.1}
  #allocation0 [shape = 'u32[]', space=smem, size = 0x4, offset = 0x4, fixed_abs, tag = 'smem constant byte address 0x4 - core index']
  #allocation1 [shape = 'u32[144,128]{1,0:T(1,128)}', space=vmem, size = 0x12000, scoped, tag = 'internal scratch']
  #allocation2 [shape = 'f32[3,50,32]{2,1,0:T(8,128)}', space=vmem, size = 0x15000, scoped, tag = 'scratch operand']
  #allocation3 [shape = 'f32[41,34]{1,0:T(8,128)}', space=vmem, size = 0x6000, scoped, tag = 'scratch operand']
  #allocation4 [shape = 'f32[1]{0:T(128)S(6)}', space=smem, size = 0x200, scoped, tag = 'scoped memory for model_forward.1']
  %s0 = inlined_call_operand.hbm [shape: f32[2,3,32,32], index: 0, kind: input, shape index: {}]
  %s1 = inlined_call_operand.vmem [shape: f32[30], index: 1, kind: input, shape index: {}]
  %s2 = inlined_call_operand.<no memory space> [shape: f32[1], index: 2, kind: input, shape index: {}]
  %s3 = inlined_call_operand.vmem [shape: f32[75], index: 3, kind: input, shape index: {}]
  %s4 = inlined_call_operand.vmem [shape: f32[3], index: 4, kind: input, shape index: {}]
  %s5 = inlined_call_operand.vmem [shape: f32[2,3,38,30], index: 5, kind: output, shape index: {}]
  %s6 = sld [smem:[#allocation0]]
  $region69: #{model_forward.1} parent=0
    _
  %s8 = ssub.s32 1, %s6
  %s9 = scalar_select 0, %s8, %s6
  %10 = sst [smem:[#allocation4]] %s2
  $region1: #{model_forward.1} parent=0
    #allocation5 [shape = 'u8[98304]{0}', space=vmem, size = 0x18000, scoped, tag = 'input window, operand 0']
    #allocation6 [shape = 's32[2]{0}', space=sflag, size = 0x8, scoped, tag = 'scoped memory for model_forward.1']
    #allocation7 [shape = 's32[2]{0}', space=sflag, size = 0x8, scoped, tag = 'scoped memory for model_forward.1']
    #allocation8 [shape = 'u8[512]{0}', space=smem, size = 0x200, scoped, tag = 'input window, operand 1, single buffered']
    #allocation9 [shape = 'u8[512]{0}', space=smem, size = 0x200, scoped, tag = 'input window, operand 3, single buffered']
    #allocation10 [shape = 's32[1]{0}', space=sflag, size = 0x4, scoped, tag = 'scoped memory for model_forward.1']
    #allocation11 [shape = 'u8[512]{0}', space=smem, size = 0x200, scoped, tag = 'input window, operand 4, single buffered']
    %11 = vsyncpa [#allocation6], 0
    %s12 = scalar_lea.sflag [#allocation6], 1
    %13 = vsyncpa %s12, 0
    %14 = vsyncpa [#allocation7], 0
    %15 = vsyncpa [#allocation10], 0
    loop: start=0, step=1, limit=4
    $region2: #{model_forward.1} parent=1 // loop_pre_header
      _
    $region3: #{model_forward.1} parent=1 // loop_header
      %s17 = sphi 0, %s21
      %p18 = scmp.ge.s32.totalorder %s17, 4
      %s27 = sphi 0, %s29
      %s30 = sphi 0, %s27
      %s31 = sphi 0, %s30
      %s47 = sphi 0, %s31
      %s51 = sphi 0, %s51
      %s53 = sphi 0, %s51
      %s54 = sphi 0, %s53
      %s68 = sphi 0, %s54
      %s72 = sphi 0, %s72
      %s74 = sphi 0, %s72
      %s75 = sphi 0, %s74
      %s89 = sphi 0, %s75
      %s93 = sphi 0, %s93
      %s95 = sphi 0, %s93
      %s96 = sphi 0, %s95
      %s110 = sphi 0, %s96
      %s114 = sphi 0, %s114
      %s116 = sphi 0, %s114
      %s117 = sphi 0, %s116
      %s131 = sphi 0, %s117
      %s137 = sphi 0, %s139
      %s140 = sphi 0, %s137
      %s141 = sphi 0, %s140
      %s157 = sphi 0, %s141
    $region4: #{model_forward.1} parent=1 // loop_header_branch
      %20 = sbr.rel (%p18) target = $region8
    $region5: #{model_forward.1} parent=1 // loop_body
      %s22 = ssub.s32 %s17, 1
      %s23 = ssub.s32 %s17, 2
      %s24 = sadd.s32 %s17, 1
      %s25 = ssub.s32 %s17, %s24
      %p26 = scmp.eq.s32.totalorder %s25, 0
      %s28 = sadd.s32 %s27, 1
      %s29 = scalar_select %p26, %s27, %s28
      %p32 = pneg %p26
      %p33 = scmp.eq.s32.totalorder %s17, 1
      %p34 = por %p32, %p33
      %p35 = scmp.ne.s32.totalorder %s27, %s30
      %p36 = scmp.eq.s32.totalorder %s17, 0
      %p37 = por %p35, %p36
      %p38 = scmp.ne.s32.totalorder %s27, %s30
      %p39 = scmp.eq.s32.totalorder %s22, 1
      %p40 = por %p38, %p39
      %p41 = scmp.ne.s32.totalorder %s30, %s31
      %p42 = scmp.eq.s32.totalorder %s22, 0
      %p43 = por %p41, %p42
      %p44 = scmp.ne.s32.totalorder %s30, %s31
      %p45 = scmp.eq.s32.totalorder %s23, 1
      %p46 = por %p44, %p45
      %p48 = scmp.ne.s32.totalorder %s31, %s47
      %p49 = scmp.eq.s32.totalorder %s23, 0
      %p50 = por %p48, %p49
      %s52 = sadd.s32 %s51, 1
      %p55 = scmp.eq.s32.totalorder %s17, 1
      %p56 = scmp.ne.s32.totalorder %s51, %s53
      %p57 = scmp.eq.s32.totalorder %s17, 0
      %p58 = por %p56, %p57
      %p59 = scmp.ne.s32.totalorder %s51, %s53
      %p60 = scmp.eq.s32.totalorder %s22, 1
      %p61 = por %p59, %p60
      %p62 = scmp.ne.s32.totalorder %s53, %s54
      %p63 = scmp.eq.s32.totalorder %s22, 0
      %p64 = por %p62, %p63
      %p65 = scmp.ne.s32.totalorder %s53, %s54
      %p66 = scmp.eq.s32.totalorder %s23, 1
      %p67 = por %p65, %p66
      %p69 = scmp.ne.s32.totalorder %s54, %s68
      %p70 = scmp.eq.s32.totalorder %s23, 0
      %p71 = por %p69, %p70
      %s73 = sadd.s32 %s72, 1
      %p76 = scmp.eq.s32.totalorder %s17, 1
      %p77 = scmp.ne.s32.totalorder %s72, %s74
      %p78 = scmp.eq.s32.totalorder %s17, 0
      %p79 = por %p77, %p78
      %p80 = scmp.ne.s32.totalorder %s72, %s74
      %p81 = scmp.eq.s32.totalorder %s22, 1
      %p82 = por %p80, %p81
      %p83 = scmp.ne.s32.totalorder %s74, %s75
      %p84 = scmp.eq.s32.totalorder %s22, 0
      %p85 = por %p83, %p84
      %p86 = scmp.ne.s32.totalorder %s74, %s75
      %p87 = scmp.eq.s32.totalorder %s23, 1
      %p88 = por %p86, %p87
      %p90 = scmp.ne.s32.totalorder %s75, %s89
      %p91 = scmp.eq.s32.totalorder %s23, 0
      %p92 = por %p90, %p91
      %s94 = sadd.s32 %s93, 1
      %p97 = scmp.eq.s32.totalorder %s17, 1
      %p98 = scmp.ne.s32.totalorder %s93, %s95
      %p99 = scmp.eq.s32.totalorder %s17, 0
      %p100 = por %p98, %p99
      %p101 = scmp.ne.s32.totalorder %s93, %s95
      %p102 = scmp.eq.s32.totalorder %s22, 1
      %p103 = por %p101, %p102
      %p104 = scmp.ne.s32.totalorder %s95, %s96
      %p105 = scmp.eq.s32.totalorder %s22, 0
      %p106 = por %p104, %p105
      %p107 = scmp.ne.s32.totalorder %s95, %s96
      %p108 = scmp.eq.s32.totalorder %s23, 1
      %p109 = por %p107, %p108
      %p111 = scmp.ne.s32.totalorder %s96, %s110
      %p112 = scmp.eq.s32.totalorder %s23, 0
      %p113 = por %p111, %p112
      %s115 = sadd.s32 %s114, 1
      %p118 = scmp.eq.s32.totalorder %s17, 1
      %p119 = scmp.ne.s32.totalorder %s114, %s116
      %p120 = scmp.eq.s32.totalorder %s17, 0
      %p121 = por %p119, %p120
      %p122 = scmp.ne.s32.totalorder %s114, %s116
      %p123 = scmp.eq.s32.totalorder %s22, 1
      %p124 = por %p122, %p123
      %p125 = scmp.ne.s32.totalorder %s116, %s117
      %p126 = scmp.eq.s32.totalorder %s22, 0
      %p127 = por %p125, %p126
      %p128 = scmp.ne.s32.totalorder %s116, %s117
      %p129 = scmp.eq.s32.totalorder %s23, 1
      %p130 = por %p128, %p129
      %p132 = scmp.ne.s32.totalorder %s117, %s131
      %p133 = scmp.eq.s32.totalorder %s23, 0
      %p134 = por %p132, %p133
      %s135 = ssub.s32 %s17, %s24
      %p136 = scmp.eq.s32.totalorder %s135, 0
      %s138 = sadd.s32 %s137, 1
      %s139 = scalar_select %p136, %s137, %s138
      %p142 = pneg %p136
      %p143 = scmp.eq.s32.totalorder %s17, 1
      %p144 = por %p142, %p143
      %p145 = scmp.ne.s32.totalorder %s137, %s140
      %p146 = scmp.eq.s32.totalorder %s17, 0
      %p147 = por %p145, %p146
      %p148 = scmp.ne.s32.totalorder %s137, %s140
      %p149 = scmp.eq.s32.totalorder %s22, 1
      %p150 = por %p148, %p149
      %p151 = scmp.ne.s32.totalorder %s140, %s141
      %p152 = scmp.eq.s32.totalorder %s22, 0
      %p153 = por %p151, %p152
      %p154 = scmp.ne.s32.totalorder %s140, %s141
      %p155 = scmp.eq.s32.totalorder %s23, 1
      %p156 = por %p154, %p155
      %p158 = scmp.ne.s32.totalorder %s141, %s157
      %p159 = scmp.eq.s32.totalorder %s23, 0
      %p160 = por %p158, %p159
      %p161 = scmp.le.s32.totalorder 1, %s17
      %p162 = scmp.lt.s32.totalorder %s17, 3
      %p163 = pnand %p161, %p162
      %p164 = pneg %p163
      // Predicated region
      $region9: #{model_forward.1} parent=5 // pred_check
        _
      $region10: #{model_forward.1} parent=5 // pred_check_branch
        %166 = sbr.rel (%p163) target = $region12
      $region11: #{model_forward.1} parent=5 // pred_region
        %s167 = ssub.s32 %s17, 1
        // Predicated region
        $region13: #{model_forward.1} parent=11 // pred_check
          %p168 = pneg %p64
        $region14: #{model_forward.1} parent=11 // pred_check_branch
          %170 = sbr.rel (%p168) target = $region16
        $region15: #{model_forward.1} parent=11 // pred_region
          %s172 = ssub.s32 16, 16
          %173 = vsyncadd [#allocation7], %s172
          %s175 = sshll.u32 %s1, 4
          %s176 = int_to_ptr.vmem [resolvable:$true] %s175
          %178 = dma.vmem_to_smem %s176, 16, [#allocation8], [#allocation7]
        $region16: #{model_forward.1} parent=11 // pred_fallthru
          _
        // Predicated region
        $region17: #{model_forward.1} parent=11 // pred_check
          %p179 = pneg %p85
        $region18: #{model_forward.1} parent=11 // pred_check_branch
          %181 = sbr.rel (%p179) target = $region20
        $region19: #{model_forward.1} parent=11 // pred_region
          _
        $region20: #{model_forward.1} parent=11 // pred_fallthru
          _
        // Predicated region
        $region21: #{model_forward.1} parent=11 // pred_check
          %p182 = pneg %p106
        $region22: #{model_forward.1} parent=11 // pred_check_branch
          %184 = sbr.rel (%p182) target = $region24
        $region23: #{model_forward.1} parent=11 // pred_region
          %s186 = ssub.s32 16, 16
          %187 = vsyncadd [#allocation10], %s186
          %s189 = sshll.u32 %s3, 4
          %s190 = int_to_ptr.vmem [resolvable:$true] %s189
          %192 = dma.vmem_to_smem %s190, 16, [#allocation9], [#allocation10]
        $region24: #{model_forward.1} parent=11 // pred_fallthru
          _
        // Predicated region
        $region25: #{model_forward.1} parent=11 // pred_check
          %p193 = pneg %p127
        $region26: #{model_forward.1} parent=11 // pred_check_branch
          %195 = sbr.rel (%p193) target = $region28
        $region27: #{model_forward.1} parent=11 // pred_region
          %s197 = ssub.s32 16, 16
          %198 = vsyncadd [#allocation10], %s197
          %s200 = sshll.u32 %s4, 4
          %s201 = int_to_ptr.vmem [resolvable:$true] %s200
          %203 = dma.vmem_to_smem %s201, 16, [#allocation11], [#allocation10]
        $region28: #{model_forward.1} parent=11 // pred_fallthru
          _
      $region12: #{model_forward.1} parent=5 // pred_fallthru
        _
      %p204 = scmp.lt.s32.totalorder %s17, 2
      // Predicated region
      $region29: #{model_forward.1} parent=5 // pred_check
        %p205 = pneg %p204
      $region30: #{model_forward.1} parent=5 // pred_check_branch
        %207 = sbr.rel (%p205) target = $region32
      $region31: #{model_forward.1} parent=5 // pred_region
        // Predicated region
        $region33: #{model_forward.1} parent=31 // pred_check
          %p208 = pneg %p37
        $region34: #{model_forward.1} parent=31 // pred_check_branch
          %210 = sbr.rel (%p208) target = $region36
        $region35: #{model_forward.1} parent=31 // pred_region
          %s211 = sand.u32 %s27, 1
          %s212 = scalar_lea.sflag [#allocation6], %s211
          %s213 = sand.u32 %s27, 1
          %s214 = smul.addr %s213, 96
          %s215 = scalar_lea.vmem [#allocation5], %s214
          %s217 = ssub.s32 1536, 1536
          %218 = vsyncadd %s212, %s217
          %s219 = smul.addr %s17, 12
          %s220 = smul.addr %s219, 128
          %s221 = scalar_lea.hbm %s0, %s220
          %s222 = sshll.u32 %s215, 4
          %s223 = int_to_ptr.vmem [resolvable:$true] %s222
          %228 = dma.hbm_to_vmem [thread:$0]  %s221, 1536, %s223, %s212, 128, 128, 8
        $region36: #{model_forward.1} parent=31 // pred_fallthru
          _
      $region32: #{model_forward.1} parent=5 // pred_fallthru
        _
      %p229 = scmp.le.s32.totalorder 1, %s17
      %p230 = scmp.lt.s32.totalorder %s17, 3
      %p231 = pnand %p229, %p230
      %p232 = pneg %p231
      // Predicated region
      $region37: #{model_forward.1} parent=5 // pred_check
        _
      $region38: #{model_forward.1} parent=5 // pred_check_branch
        %234 = sbr.rel (%p231) target = $region40
      $region39: #{model_forward.1} parent=5 // pred_region
        %s235 = ssub.s32 %s17, 1
        %s236 = sand.u32 %s30, 1
        %s237 = scalar_lea.sflag [#allocation6], %s236
        %s238 = sand.u32 %s30, 1
        %s239 = smul.addr %s238, 96
        %s240 = scalar_lea.vmem [#allocation5], %s239
        // Predicated region
        $region41: #{model_forward.1} parent=39 // pred_check
          %p241 = pneg %p43
        $region42: #{model_forward.1} parent=39 // pred_check_branch
          %243 = sbr.rel (%p241) target = $region44
        $region43: #{model_forward.1} parent=39 // pred_region
          %244 = dma.done %s237, 1536
        $region44: #{model_forward.1} parent=39 // pred_fallthru
          _
        // Predicated region
        $region45: #{model_forward.1} parent=39 // pred_check
          %p245 = pneg %p64
        $region46: #{model_forward.1} parent=39 // pred_check_branch
          %247 = sbr.rel (%p245) target = $region48
        $region47: #{model_forward.1} parent=39 // pred_region
          %248 = dma.done [#allocation7], 16
        $region48: #{model_forward.1} parent=39 // pred_fallthru
          _
        // Predicated region
        $region49: #{model_forward.1} parent=39 // pred_check
          %p249 = pneg %p106
        $region50: #{model_forward.1} parent=39 // pred_check_branch
          %251 = sbr.rel (%p249) target = $region52
        $region51: #{model_forward.1} parent=39 // pred_region
          %252 = dma.done [#allocation10], 16
        $region52: #{model_forward.1} parent=39 // pred_fallthru
          _
        // Predicated region
        $region53: #{model_forward.1} parent=39 // pred_check
          %p253 = pneg %p127
        $region54: #{model_forward.1} parent=39 // pred_check_branch
          %255 = sbr.rel (%p253) target = $region56
        $region55: #{model_forward.1} parent=39 // pred_region
          %256 = dma.done [#allocation10], 16
        $region56: #{model_forward.1} parent=39 // pred_fallthru
          _
        %257 = sfence
        %s258 = sand.u32 %s30, 1
        %s259 = scalar_lea.sflag [#allocation6], %s258
        %s260 = sand.u32 %s30, 1
        %s261 = smul.addr %s260, 96
        %s262 = scalar_lea.vmem [#allocation5], %s261
        %p263 = pneg %p43
        %p264 = pneg %p40
        %p265 = pneg %p64
        %p266 = pneg %p61
        %p267 = pneg %p85
        %p268 = pneg %p82
        %p269 = pneg %p106
        %p270 = pneg %p103
        %p271 = pneg %p127
        %p272 = pneg %p124
        %p273 = pneg %p153
        %p274 = pneg %p150
        %p275 = scmp.lt.s32.totalorder %s22, 1
        %s276 = scalar_select %p275, %s22, 1
        %s277 = smul.addr %s276, 15
        %s278 = smul.addr %s277, 8
        %s279 = scalar_lea.vmem %s5, %s278
        %p280 = scmp.lt.s32.totalorder %s22, 1
        %s281 = scalar_select %p280, %s22, 1
        %s282 = smul.addr %s281, 15
        %s283 = smul.addr %s282, 8
        %s284 = scalar_lea.vmem %s5, %s283
        %vm285 = vcmask 261120
        %286 = vst.msk [vmem:[#allocation2] sm:$0xff] %vm285, 0.0
        %287 = vst.msk [vmem:[#allocation2 + $0x8] sm:$0xff] %vm285, 0.0
        %288 = vst.msk [vmem:[#allocation2 + $0x10] sm:$0xff] %vm285, 0.0
        %289 = vst.msk [vmem:[#allocation2 + $0x18] sm:$0xff] %vm285, 0.0
        %290 = vst.msk [vmem:[#allocation2 + $0x20] sm:$0xff] %vm285, 0.0
        %291 = vst.msk [vmem:[#allocation2 + $0x28] sm:$0xff] %vm285, 0.0
        %vm292 = vcmask 254976
        %293 = vst.msk [vmem:[#allocation2 + $0x30] sm:$0x3] %vm292, 0.0
        %294 = vst.msk [vmem:[#allocation2 + $0x38] sm:$0xff] %vm285, 0.0
        %295 = vst.msk [vmem:[#allocation2 + $0x40] sm:$0xff] %vm285, 0.0
        %296 = vst.msk [vmem:[#allocation2 + $0x48] sm:$0xff] %vm285, 0.0
        %297 = vst.msk [vmem:[#allocation2 + $0x50] sm:$0xff] %vm285, 0.0
        %298 = vst.msk [vmem:[#allocation2 + $0x58] sm:$0xff] %vm285, 0.0
        %299 = vst.msk [vmem:[#allocation2 + $0x60] sm:$0xff] %vm285, 0.0
        %300 = vst.msk [vmem:[#allocation2 + $0x68] sm:$0x3] %vm292, 0.0
        %301 = vst.msk [vmem:[#allocation2 + $0x70] sm:$0xff] %vm285, 0.0
        %302 = vst.msk [vmem:[#allocation2 + $0x78] sm:$0xff] %vm285, 0.0
        %303 = vst.msk [vmem:[#allocation2 + $0x80] sm:$0xff] %vm285, 0.0
        %304 = vst.msk [vmem:[#allocation2 + $0x88] sm:$0xff] %vm285, 0.0
        %305 = vst.msk [vmem:[#allocation2 + $0x90] sm:$0xff] %vm285, 0.0
        %306 = vst.msk [vmem:[#allocation2 + $0x98] sm:$0xff] %vm285, 0.0
        %307 = vst.msk [vmem:[#allocation2 + $0xa0] sm:$0x3] %vm292, 0.0
        %v308 = vld [vmem:[%s240] sm:$0xff]
        %v309 = vld [vmem:[%s240 + $0x8] sm:$0xff]
        %v310 = vld [vmem:[%s240 + $0x10] sm:$0xff]
        %v311 = vld [vmem:[%s240 + $0x18] sm:$0xff]
        %v312 = vld [vmem:[%s240 + $0x20] sm:$0xff]
        %v313 = vld [vmem:[%s240 + $0x28] sm:$0xff]
        %v314 = vld [vmem:[%s240 + $0x30] sm:$0xff]
        %v315 = vld [vmem:[%s240 + $0x38] sm:$0xff]
        %v316 = vld [vmem:[%s240 + $0x40] sm:$0xff]
        %v317 = vld [vmem:[%s240 + $0x48] sm:$0xff]
        %v318 = vld [vmem:[%s240 + $0x50] sm:$0xff]
        %v319 = vld [vmem:[%s240 + $0x58] sm:$0xff]
        %320 = vst.msk [vmem:[#allocation2 + $0x9] sm:$0xff] %vm285, %v308
        %321 = vst.msk [vmem:[#allocation2 + $0x11] sm:$0xff] %vm285, %v309
        %322 = vst.msk [vmem:[#allocation2 + $0x19] sm:$0xff] %vm285, %v310
        %323 = vst.msk [vmem:[#allocation2 + $0x21] sm:$0xff] %vm285, %v311
        %324 = vst.msk [vmem:[#allocation2 + $0x41] sm:$0xff] %vm285, %v312
        %325 = vst.msk [vmem:[#allocation2 + $0x49] sm:$0xff] %vm285, %v313
        %326 = vst.msk [vmem:[#allocation2 + $0x51] sm:$0xff] %vm285, %v314
        %327 = vst.msk [vmem:[#allocation2 + $0x59] sm:$0xff] %vm285, %v315
        %328 = vst.msk [vmem:[#allocation2 + $0x79] sm:$0xff] %vm285, %v316
        %329 = vst.msk [vmem:[#allocation2 + $0x81] sm:$0xff] %vm285, %v317
        %330 = vst.msk [vmem:[#allocation2 + $0x89] sm:$0xff] %vm285, %v318
        %331 = vst.msk [vmem:[#allocation2 + $0x91] sm:$0xff] %vm285, %v319
        %v332 = vld [vmem:[#allocation2] sm:$0xff]
        %v333 = vld [vmem:[#allocation2 + $0x8] sm:$0xff]
        %v334 = vld [vmem:[#allocation2 + $0x10] sm:$0xff]
        %v335 = vld [vmem:[#allocation2 + $0x18] sm:$0xff]
        %v336 = vld [vmem:[#allocation2 + $0x20] sm:$0xff]
        %v337 = vld [vmem:[#allocation2 + $0x28] sm:$0x1]
        %s338 = sld [smem:[#allocation8]]
        %v339 = vstv %s338
        %v340 = vmul.f32 %v332, %v339
        %v341 = vmul.f32 %v333, %v339
        %v342 = vmul.f32 %v334, %v339
        %v343 = vmul.f32 %v335, %v339
        %v344 = vmul.f32 %v336, %v339
        %v345 = vmul.f32 %v337, %v339
        %v346 = vld [vmem:[#allocation2 + $0x1] sm:$0xff]
        %v347 = vld [vmem:[#allocation2 + $0x9] sm:$0xff]
        %v348 = vld [vmem:[#allocation2 + $0x11] sm:$0xff]
        %v349 = vld [vmem:[#allocation2 + $0x19] sm:$0xff]
        %v350 = vld [vmem:[#allocation2 + $0x21] sm:$0xff]
        %v351 = vld [vmem:[#allocation2 + $0x29] sm:$0x1]
        %s352 = sld [smem:[#allocation8 + $0x1]]
        %v353 = vstv %s352
        %v354 = vmul.f32 %v346, %v353
        %v355 = vmul.f32 %v347, %v353
        %v356 = vmul.f32 %v348, %v353
        %v357 = vmul.f32 %v349, %v353
        %v358 = vmul.f32 %v350, %v353
        %v359 = vmul.f32 %v351, %v353
        %v360 = vadd.f32 %v340, %v354
        %v361 = vadd.f32 %v341, %v355
        %v362 = vadd.f32 %v342, %v356
        %v363 = vadd.f32 %v343, %v357
        %v364 = vadd.f32 %v344, %v358
        %v365 = vadd.f32 %v345, %v359
        %v366 = vld [vmem:[#allocation2 + $0x2] sm:$0xff]
        %v367 = vld [vmem:[#allocation2 + $0xa] sm:$0xff]
        %v368 = vld [vmem:[#allocation2 + $0x12] sm:$0xff]
        %v369 = vld [vmem:[#allocation2 + $0x1a] sm:$0xff]
        %v370 = vld [vmem:[#allocation2 + $0x22] sm:$0xff]
        %v371 = vld [vmem:[#allocation2 + $0x2a] sm:$0x1]
        %s372 = sld [smem:[#allocation8 + $0x2]]
        %v373 = vstv %s372
        %v374 = vmul.f32 %v366, %v373
        %v375 = vmul.f32 %v367, %v373
        %v376 = vmul.f32 %v368, %v373
        %v377 = vmul.f32 %v369, %v373
        %v378 = vmul.f32 %v370, %v373
        %v379 = vmul.f32 %v371, %v373
        %v380 = vadd.f32 %v360, %v374
        %v381 = vadd.f32 %v361, %v375
        %v382 = vadd.f32 %v362, %v376
        %v383 = vadd.f32 %v363, %v377
        %v384 = vadd.f32 %v364, %v378
        %v385 = vadd.f32 %v365, %v379
        %v386 = vld [vmem:[#allocation2 + $0x3] sm:$0xff]
        %v387 = vld [vmem:[#allocation2 + $0xb] sm:$0xff]
        %v388 = vld [vmem:[#allocation2 + $0x13] sm:$0xff]
        %v389 = vld [vmem:[#allocation2 + $0x1b] sm:$0xff]
        %v390 = vld [vmem:[#allocation2 + $0x23] sm:$0xff]
        %v391 = vld [vmem:[#allocation2 + $0x2b] sm:$0x1]
        %s392 = sld [smem:[#allocation8 + $0x3]]
        %v393 = vstv %s392
        %v394 = vmul.f32 %v386, %v393
        %v395 = vmul.f32 %v387, %v393
        %v396 = vmul.f32 %v388, %v393
        %v397 = vmul.f32 %v389, %v393
        %v398 = vmul.f32 %v390, %v393
        %v399 = vmul.f32 %v391, %v393
        %v400 = vadd.f32 %v380, %v394
        %v401 = vadd.f32 %v381, %v395
        %v402 = vadd.f32 %v382, %v396
        %v403 = vadd.f32 %v383, %v397
        %v404 = vadd.f32 %v384, %v398
        %v405 = vadd.f32 %v385, %v399
        %v406 = vld [vmem:[#allocation2 + $0x4] sm:$0xff]
        %v407 = vld [vmem:[#allocation2 + $0xc] sm:$0xff]
        %v408 = vld [vmem:[#allocation2 + $0x14] sm:$0xff]
        %v409 = vld [vmem:[#allocation2 + $0x1c] sm:$0xff]
        %v410 = vld [vmem:[#allocation2 + $0x24] sm:$0xff]
        %v411 = vld [vmem:[#allocation2 + $0x2c] sm:$0x1]
        %s412 = sld [smem:[#allocation8 + $0x4]]
        %v413 = vstv %s412
        %v414 = vmul.f32 %v406, %v413
        %v415 = vmul.f32 %v407, %v413
        %v416 = vmul.f32 %v408, %v413
        %v417 = vmul.f32 %v409, %v413
        %v418 = vmul.f32 %v410, %v413
        %v419 = vmul.f32 %v411, %v413
        %v420 = vadd.f32 %v400, %v414
        %v421 = vadd.f32 %v401, %v415
        %v422 = vadd.f32 %v402, %v416
        %v423 = vadd.f32 %v403, %v417
        %v424 = vadd.f32 %v404, %v418
        %v425 = vadd.f32 %v405, %v419
        %v426 = vld [vmem:[#allocation2 + $0x5] sm:$0xff]
        %v427 = vld [vmem:[#allocation2 + $0xd] sm:$0xff]
        %v428 = vld [vmem:[#allocation2 + $0x15] sm:$0xff]
        %v429 = vld [vmem:[#allocation2 + $0x1d] sm:$0xff]
        %v430 = vld [vmem:[#allocation2 + $0x25] sm:$0xff]
        %v431 = vld [vmem:[#allocation2 + $0x2d] sm:$0x1]
        %s432 = sld [smem:[#allocation8 + $0x5]]
        %v433 = vstv %s432
        %v434 = vmul.f32 %v426, %v433
        %v435 = vmul.f32 %v427, %v433
        %v436 = vmul.f32 %v428, %v433
        %v437 = vmul.f32 %v429, %v433
        %v438 = vmul.f32 %v430, %v433
        %v439 = vmul.f32 %v431, %v433
        %v440 = vadd.f32 %v420, %v434
        %v441 = vadd.f32 %v421, %v435
        %v442 = vadd.f32 %v422, %v436
        %v443 = vadd.f32 %v423, %v437
        %v444 = vadd.f32 %v424, %v438
        %v445 = vadd.f32 %v425, %v439
        %v446 = vld [vmem:[#allocation2 + $0x6] sm:$0xff]
        %v447 = vld [vmem:[#allocation2 + $0xe] sm:$0xff]
        %v448 = vld [vmem:[#allocation2 + $0x16] sm:$0xff]
        %v449 = vld [vmem:[#allocation2 + $0x1e] sm:$0xff]
        %v450 = vld [vmem:[#allocation2 + $0x26] sm:$0xff]
        %v451 = vld [vmem:[#allocation2 + $0x2e] sm:$0x1]
        %s452 = sld [smem:[#allocation8 + $0x6]]
        %v453 = vstv %s452
        %v454 = vmul.f32 %v446, %v453
        %v455 = vmul.f32 %v447, %v453
        %v456 = vmul.f32 %v448, %v453
        %v457 = vmul.f32 %v449, %v453
        %v458 = vmul.f32 %v450, %v453
        %v459 = vmul.f32 %v451, %v453
        %v460 = vadd.f32 %v440, %v454
        %v461 = vadd.f32 %v441, %v455
        %v462 = vadd.f32 %v442, %v456
        %v463 = vadd.f32 %v443, %v457
        %v464 = vadd.f32 %v444, %v458
        %v465 = vadd.f32 %v445, %v459
        %v466 = vld [vmem:[#allocation2 + $0x7] sm:$0xff]
        %v467 = vld [vmem:[#allocation2 + $0xf] sm:$0xff]
        %v468 = vld [vmem:[#allocation2 + $0x17] sm:$0xff]
        %v469 = vld [vmem:[#allocation2 + $0x1f] sm:$0xff]
        %v470 = vld [vmem:[#allocation2 + $0x27] sm:$0xff]
        %v471 = vld [vmem:[#allocation2 + $0x2f] sm:$0x1]
        %s472 = sld [smem:[#allocation8 + $0x7]]
        %v473 = vstv %s472
        %v474 = vmul.f32 %v466, %v473
        %v475 = vmul.f32 %v467, %v473
        %v476 = vmul.f32 %v468, %v473
        %v477 = vmul.f32 %v469, %v473
        %v478 = vmul.f32 %v470, %v473
        %v479 = vmul.f32 %v471, %v473
        %v480 = vadd.f32 %v460, %v474
        %v481 = vadd.f32 %v461, %v475
        %v482 = vadd.f32 %v462, %v476
        %v483 = vadd.f32 %v463, %v477
        %v484 = vadd.f32 %v464, %v478
        %v485 = vadd.f32 %v465, %v479
        %v486 = vld [vmem:[#allocation2 + $0x8] sm:$0xff]
        %v487 = vld [vmem:[#allocation2 + $0x10] sm:$0xff]
        %v488 = vld [vmem:[#allocation2 + $0x18] sm:$0xff]
        %v489 = vld [vmem:[#allocation2 + $0x20] sm:$0xff]
        %v490 = vld [vmem:[#allocation2 + $0x28] sm:$0xff]
        %v491 = vld [vmem:[#allocation2 + $0x30] sm:$0x1]
        %s492 = sld [smem:[#allocation8 + $0x8]]
        %v493 = vstv %s492
        %v494 = vmul.f32 %v486, %v493
        %v495 = vmul.f32 %v487, %v493
        %v496 = vmul.f32 %v488, %v493
        %v497 = vmul.f32 %v489, %v493
        %v498 = vmul.f32 %v490, %v493
        %v499 = vmul.f32 %v491, %v493
        %v500 = vadd.f32 %v480, %v494
        %v501 = vadd.f32 %v481, %v495
        %v502 = vadd.f32 %v482, %v496
        %v503 = vadd.f32 %v483, %v497
        %v504 = vadd.f32 %v484, %v498
        %v505 = vadd.f32 %v485, %v499
        %v506 = vld [vmem:[#allocation2 + $0x9] sm:$0xff]
        %v507 = vld [vmem:[#allocation2 + $0x11] sm:$0xff]
        %v508 = vld [vmem:[#allocation2 + $0x19] sm:$0xff]
        %v509 = vld [vmem:[#allocation2 + $0x21] sm:$0xff]
        %v510 = vld [vmem:[#allocation2 + $0x29] sm:$0xff]
        %v511 = vld [vmem:[#allocation2 + $0x31] sm:$0x1]
        %s512 = sld [smem:[#allocation8 + $0x9]]
        %v513 = vstv %s512
        %v514 = vmul.f32 %v506, %v513
        %v515 = vmul.f32 %v507, %v513
        %v516 = vmul.f32 %v508, %v513
        %v517 = vmul.f32 %v509, %v513
        %v518 = vmul.f32 %v510, %v513
        %v519 = vmul.f32 %v511, %v513
        %v520 = vadd.f32 %v500, %v514
        %v521 = vadd.f32 %v501, %v515
        %v522 = vadd.f32 %v502, %v516
        %v523 = vadd.f32 %v503, %v517
        %v524 = vadd.f32 %v504, %v518
        %v525 = vadd.f32 %v505, %v519
        %s526 = scalar_lea.vmem [#allocation2], 56
        %v527 = vld [vmem:[%s526] sm:$0xff]
        %v528 = vld [vmem:[%s526 + $0x8] sm:$0xff]
        %v529 = vld [vmem:[%s526 + $0x10] sm:$0xff]
        %v530 = vld [vmem:[%s526 + $0x18] sm:$0xff]
        %v531 = vld [vmem:[%s526 + $0x20] sm:$0xff]
        %v532 = vld [vmem:[%s526 + $0x28] sm:$0x1]
        %s533 = sld [smem:[#allocation8 + $0xa]]
        %v534 = vstv %s533
        %v535 = vmul.f32 %v527, %v534
        %v536 = vmul.f32 %v528, %v534
        %v537 = vmul.f32 %v529, %v534
        %v538 = vmul.f32 %v530, %v534
        %v539 = vmul.f32 %v531, %v534
        %v540 = vmul.f32 %v532, %v534
        %v541 = vld [vmem:[%s526 + $0x1] sm:$0xff]
        %v542 = vld [vmem:[%s526 + $0x9] sm:$0xff]
        %v543 = vld [vmem:[%s526 + $0x11] sm:$0xff]
        %v544 = vld [vmem:[%s526 + $0x19] sm:$0xff]
        %v545 = vld [vmem:[%s526 + $0x21] sm:$0xff]
        %v546 = vld [vmem:[%s526 + $0x29] sm:$0x1]
        %s547 = sld [smem:[#allocation8 + $0xb]]
        %v548 = vstv %s547
        %v549 = vmul.f32 %v541, %v548
        %v550 = vmul.f32 %v542, %v548
        %v551 = vmul.f32 %v543, %v548
        %v552 = vmul.f32 %v544, %v548
        %v553 = vmul.f32 %v545, %v548
        %v554 = vmul.f32 %v546, %v548
        %v555 = vadd.f32 %v535, %v549
        %v556 = vadd.f32 %v536, %v550
        %v557 = vadd.f32 %v537, %v551
        %v558 = vadd.f32 %v538, %v552
        %v559 = vadd.f32 %v539, %v553
        %v560 = vadd.f32 %v540, %v554
        %v561 = vld [vmem:[%s526 + $0x2] sm:$0xff]
        %v562 = vld [vmem:[%s526 + $0xa] sm:$0xff]
        %v563 = vld [vmem:[%s526 + $0x12] sm:$0xff]
        %v564 = vld [vmem:[%s526 + $0x1a] sm:$0xff]
        %v565 = vld [vmem:[%s526 + $0x22] sm:$0xff]
        %v566 = vld [vmem:[%s526 + $0x2a] sm:$0x1]
        %s567 = sld [smem:[#allocation8 + $0xc]]
        %v568 = vstv %s567
        %v569 = vmul.f32 %v561, %v568
        %v570 = vmul.f32 %v562, %v568
        %v571 = vmul.f32 %v563, %v568
        %v572 = vmul.f32 %v564, %v568
        %v573 = vmul.f32 %v565, %v568
        %v574 = vmul.f32 %v566, %v568
        %v575 = vadd.f32 %v555, %v569
        %v576 = vadd.f32 %v556, %v570
        %v577 = vadd.f32 %v557, %v571
        %v578 = vadd.f32 %v558, %v572
        %v579 = vadd.f32 %v559, %v573
        %v580 = vadd.f32 %v560, %v574
        %v581 = vld [vmem:[%s526 + $0x3] sm:$0xff]
        %v582 = vld [vmem:[%s526 + $0xb] sm:$0xff]
        %v583 = vld [vmem:[%s526 + $0x13] sm:$0xff]
        %v584 = vld [vmem:[%s526 + $0x1b] sm:$0xff]
        %v585 = vld [vmem:[%s526 + $0x23] sm:$0xff]
        %v586 = vld [vmem:[%s526 + $0x2b] sm:$0x1]
        %s587 = sld [smem:[#allocation8 + $0xd]]
        %v588 = vstv %s587
        %v589 = vmul.f32 %v581, %v588
        %v590 = vmul.f32 %v582, %v588
        %v591 = vmul.f32 %v583, %v588
        %v592 = vmul.f32 %v584, %v588
        %v593 = vmul.f32 %v585, %v588
        %v594 = vmul.f32 %v586, %v588
        %v595 = vadd.f32 %v575, %v589
        %v596 = vadd.f32 %v576, %v590
        %v597 = vadd.f32 %v577, %v591
        %v598 = vadd.f32 %v578, %v592
        %v599 = vadd.f32 %v579, %v593
        %v600 = vadd.f32 %v580, %v594
        %v601 = vld [vmem:[%s526 + $0x4] sm:$0xff]
        %v602 = vld [vmem:[%s526 + $0xc] sm:$0xff]
        %v603 = vld [vmem:[%s526 + $0x14] sm:$0xff]
        %v604 = vld [vmem:[%s526 + $0x1c] sm:$0xff]
        %v605 = vld [vmem:[%s526 + $0x24] sm:$0xff]
        %v606 = vld [vmem:[%s526 + $0x2c] sm:$0x1]
        %s607 = sld [smem:[#allocation8 + $0xe]]
        %v608 = vstv %s607
        %v609 = vmul.f32 %v601, %v608
        %v610 = vmul.f32 %v602, %v608
        %v611 = vmul.f32 %v603, %v608
        %v612 = vmul.f32 %v604, %v608
        %v613 = vmul.f32 %v605, %v608
        %v614 = vmul.f32 %v606, %v608
        %v615 = vadd.f32 %v595, %v609
        %v616 = vadd.f32 %v596, %v610
        %v617 = vadd.f32 %v597, %v611
        %v618 = vadd.f32 %v598, %v612
        %v619 = vadd.f32 %v599, %v613
        %v620 = vadd.f32 %v600, %v614
        %v621 = vld [vmem:[%s526 + $0x5] sm:$0xff]
        %v622 = vld [vmem:[%s526 + $0xd] sm:$0xff]
        %v623 = vld [vmem:[%s526 + $0x15] sm:$0xff]
        %v624 = vld [vmem:[%s526 + $0x1d] sm:$0xff]
        %v625 = vld [vmem:[%s526 + $0x25] sm:$0xff]
        %v626 = vld [vmem:[%s526 + $0x2d] sm:$0x1]
        %s627 = sld [smem:[#allocation8 + $0xf]]
        %v628 = vstv %s627
        %v629 = vmul.f32 %v621, %v628
        %v630 = vmul.f32 %v622, %v628
        %v631 = vmul.f32 %v623, %v628
        %v632 = vmul.f32 %v624, %v628
        %v633 = vmul.f32 %v625, %v628
        %v634 = vmul.f32 %v626, %v628
        %v635 = vadd.f32 %v615, %v629
        %v636 = vadd.f32 %v616, %v630
        %v637 = vadd.f32 %v617, %v631
        %v638 = vadd.f32 %v618, %v632
        %v639 = vadd.f32 %v619, %v633
        %v640 = vadd.f32 %v620, %v634
        %v641 = vld [vmem:[%s526 + $0x6] sm:$0xff]
        %v642 = vld [vmem:[%s526 + $0xe] sm:$0xff]
        %v643 = vld [vmem:[%s526 + $0x16] sm:$0xff]
        %v644 = vld [vmem:[%s526 + $0x1e] sm:$0xff]
        %v645 = vld [vmem:[%s526 + $0x26] sm:$0xff]
        %v646 = vld [vmem:[%s526 + $0x2e] sm:$0x1]
        %s647 = sld [smem:[#allocation8 + $0x10]]
        %v648 = vstv %s647
        %v649 = vmul.f32 %v641, %v648
        %v650 = vmul.f32 %v642, %v648
        %v651 = vmul.f32 %v643, %v648
        %v652 = vmul.f32 %v644, %v648
        %v653 = vmul.f32 %v645, %v648
        %v654 = vmul.f32 %v646, %v648
        %v655 = vadd.f32 %v635, %v649
        %v656 = vadd.f32 %v636, %v650
        %v657 = vadd.f32 %v637, %v651
        %v658 = vadd.f32 %v638, %v652
        %v659 = vadd.f32 %v639, %v653
        %v660 = vadd.f32 %v640, %v654
        %v661 = vld [vmem:[%s526 + $0x7] sm:$0xff]
        %v662 = vld [vmem:[%s526 + $0xf] sm:$0xff]
        %v663 = vld [vmem:[%s526 + $0x17] sm:$0xff]
        %v664 = vld [vmem:[%s526 + $0x1f] sm:$0xff]
        %v665 = vld [vmem:[%s526 + $0x27] sm:$0xff]
        %v666 = vld [vmem:[%s526 + $0x2f] sm:$0x1]
        %s667 = sld [smem:[#allocation8 + $0x11]]
        %v668 = vstv %s667
        %v669 = vmul.f32 %v661, %v668
        %v670 = vmul.f32 %v662, %v668
        %v671 = vmul.f32 %v663, %v668
        %v672 = vmul.f32 %v664, %v668
        %v673 = vmul.f32 %v665, %v668
        %v674 = vmul.f32 %v666, %v668
        %v675 = vadd.f32 %v655, %v669
        %v676 = vadd.f32 %v656, %v670
        %v677 = vadd.f32 %v657, %v671
        %v678 = vadd.f32 %v658, %v672
        %v679 = vadd.f32 %v659, %v673
        %v680 = vadd.f32 %v660, %v674
        %v681 = vld [vmem:[%s526 + $0x8] sm:$0xff]
        %v682 = vld [vmem:[%s526 + $0x10] sm:$0xff]
        %v683 = vld [vmem:[%s526 + $0x18] sm:$0xff]
        %v684 = vld [vmem:[%s526 + $0x20] sm:$0xff]
        %v685 = vld [vmem:[%s526 + $0x28] sm:$0xff]
        %v686 = vld [vmem:[%s526 + $0x30] sm:$0x1]
        %s687 = sld [smem:[#allocation8 + $0x12]]
        %v688 = vstv %s687
        %v689 = vmul.f32 %v681, %v688
        %v690 = vmul.f32 %v682, %v688
        %v691 = vmul.f32 %v683, %v688
        %v692 = vmul.f32 %v684, %v688
        %v693 = vmul.f32 %v685, %v688
        %v694 = vmul.f32 %v686, %v688
        %v695 = vadd.f32 %v675, %v689
        %v696 = vadd.f32 %v676, %v690
        %v697 = vadd.f32 %v677, %v691
        %v698 = vadd.f32 %v678, %v692
        %v699 = vadd.f32 %v679, %v693
        %v700 = vadd.f32 %v680, %v694
        %v701 = vld [vmem:[%s526 + $0x9] sm:$0xff]
        %v702 = vld [vmem:[%s526 + $0x11] sm:$0xff]
        %v703 = vld [vmem:[%s526 + $0x19] sm:$0xff]
        %v704 = vld [vmem:[%s526 + $0x21] sm:$0xff]
        %v705 = vld [vmem:[%s526 + $0x29] sm:$0xff]
        %v706 = vld [vmem:[%s526 + $0x31] sm:$0x1]
        %s707 = sld [smem:[#allocation8 + $0x13]]
        %v708 = vstv %s707
        %v709 = vmul.f32 %v701, %v708
        %v710 = vmul.f32 %v702, %v708
        %v711 = vmul.f32 %v703, %v708
        %v712 = vmul.f32 %v704, %v708
        %v713 = vmul.f32 %v705, %v708
        %v714 = vmul.f32 %v706, %v708
        %v715 = vadd.f32 %v695, %v709
        %v716 = vadd.f32 %v696, %v710
        %v717 = vadd.f32 %v697, %v711
        %v718 = vadd.f32 %v698, %v712
        %v719 = vadd.f32 %v699, %v713
        %v720 = vadd.f32 %v700, %v714
        %s721 = scalar_lea.vmem [#allocation2], 112
        %v722 = vld [vmem:[%s721] sm:$0xff]
        %v723 = vld [vmem:[%s721 + $0x8] sm:$0xff]
        %v724 = vld [vmem:[%s721 + $0x10] sm:$0xff]
        %v725 = vld [vmem:[%s721 + $0x18] sm:$0xff]
        %v726 = vld [vmem:[%s721 + $0x20] sm:$0xff]
        %v727 = vld [vmem:[%s721 + $0x28] sm:$0x1]
        %s728 = sld [smem:[#allocation8 + $0x14]]
        %v729 = vstv %s728
        %v730 = vmul.f32 %v722, %v729
        %v731 = vmul.f32 %v723, %v729
        %v732 = vmul.f32 %v724, %v729
        %v733 = vmul.f32 %v725, %v729
        %v734 = vmul.f32 %v726, %v729
        %v735 = vmul.f32 %v727, %v729
        %v736 = vld [vmem:[%s721 + $0x1] sm:$0xff]
        %v737 = vld [vmem:[%s721 + $0x9] sm:$0xff]
        %v738 = vld [vmem:[%s721 + $0x11] sm:$0xff]
        %v739 = vld [vmem:[%s721 + $0x19] sm:$0xff]
        %v740 = vld [vmem:[%s721 + $0x21] sm:$0xff]
        %v741 = vld [vmem:[%s721 + $0x29] sm:$0x1]
        %s742 = sld [smem:[#allocation8 + $0x15]]
        %v743 = vstv %s742
        %v744 = vmul.f32 %v736, %v743
        %v745 = vmul.f32 %v737, %v743
        %v746 = vmul.f32 %v738, %v743
        %v747 = vmul.f32 %v739, %v743
        %v748 = vmul.f32 %v740, %v743
        %v749 = vmul.f32 %v741, %v743
        %v750 = vadd.f32 %v730, %v744
        %v751 = vadd.f32 %v731, %v745
        %v752 = vadd.f32 %v732, %v746
        %v753 = vadd.f32 %v733, %v747
        %v754 = vadd.f32 %v734, %v748
        %v755 = vadd.f32 %v735, %v749
        %v756 = vld [vmem:[%s721 + $0x2] sm:$0xff]
        %v757 = vld [vmem:[%s721 + $0xa] sm:$0xff]
        %v758 = vld [vmem:[%s721 + $0x12] sm:$0xff]
        %v759 = vld [vmem:[%s721 + $0x1a] sm:$0xff]
        %v760 = vld [vmem:[%s721 + $0x22] sm:$0xff]
        %v761 = vld [vmem:[%s721 + $0x2a] sm:$0x1]
        %s762 = sld [smem:[#allocation8 + $0x16]]
        %v763 = vstv %s762
        %v764 = vmul.f32 %v756, %v763
        %v765 = vmul.f32 %v757, %v763
        %v766 = vmul.f32 %v758, %v763
        %v767 = vmul.f32 %v759, %v763
        %v768 = vmul.f32 %v760, %v763
        %v769 = vmul.f32 %v761, %v763
        %v770 = vadd.f32 %v750, %v764
        %v771 = vadd.f32 %v751, %v765
        %v772 = vadd.f32 %v752, %v766
        %v773 = vadd.f32 %v753, %v767
        %v774 = vadd.f32 %v754, %v768
        %v775 = vadd.f32 %v755, %v769
        %v776 = vld [vmem:[%s721 + $0x3] sm:$0xff]
        %v777 = vld [vmem:[%s721 + $0xb] sm:$0xff]
        %v778 = vld [vmem:[%s721 + $0x13] sm:$0xff]
        %v779 = vld [vmem:[%s721 + $0x1b] sm:$0xff]
        %v780 = vld [vmem:[%s721 + $0x23] sm:$0xff]
        %v781 = vld [vmem:[%s721 + $0x2b] sm:$0x1]
        %s782 = sld [smem:[#allocation8 + $0x17]]
        %v783 = vstv %s782
        %v784 = vmul.f32 %v776, %v783
        %v785 = vmul.f32 %v777, %v783
        %v786 = vmul.f32 %v778, %v783
        %v787 = vmul.f32 %v779, %v783
        %v788 = vmul.f32 %v780, %v783
        %v789 = vmul.f32 %v781, %v783
        %v790 = vadd.f32 %v770, %v784
        %v791 = vadd.f32 %v771, %v785
        %v792 = vadd.f32 %v772, %v786
        %v793 = vadd.f32 %v773, %v787
        %v794 = vadd.f32 %v774, %v788
        %v795 = vadd.f32 %v775, %v789
        %v796 = vld [vmem:[%s721 + $0x4] sm:$0xff]
        %v797 = vld [vmem:[%s721 + $0xc] sm:$0xff]
        %v798 = vld [vmem:[%s721 + $0x14] sm:$0xff]
        %v799 = vld [vmem:[%s721 + $0x1c] sm:$0xff]
        %v800 = vld [vmem:[%s721 + $0x24] sm:$0xff]
        %v801 = vld [vmem:[%s721 + $0x2c] sm:$0x1]
        %s802 = sld [smem:[#allocation8 + $0x18]]
        %v803 = vstv %s802
        %v804 = vmul.f32 %v796, %v803
        %v805 = vmul.f32 %v797, %v803
        %v806 = vmul.f32 %v798, %v803
        %v807 = vmul.f32 %v799, %v803
        %v808 = vmul.f32 %v800, %v803
        %v809 = vmul.f32 %v801, %v803
        %v810 = vadd.f32 %v790, %v804
        %v811 = vadd.f32 %v791, %v805
        %v812 = vadd.f32 %v792, %v806
        %v813 = vadd.f32 %v793, %v807
        %v814 = vadd.f32 %v794, %v808
        %v815 = vadd.f32 %v795, %v809
        %v816 = vld [vmem:[%s721 + $0x5] sm:$0xff]
        %v817 = vld [vmem:[%s721 + $0xd] sm:$0xff]
        %v818 = vld [vmem:[%s721 + $0x15] sm:$0xff]
        %v819 = vld [vmem:[%s721 + $0x1d] sm:$0xff]
        %v820 = vld [vmem:[%s721 + $0x25] sm:$0xff]
        %v821 = vld [vmem:[%s721 + $0x2d] sm:$0x1]
        %s822 = sld [smem:[#allocation8 + $0x19]]
        %v823 = vstv %s822
        %v824 = vmul.f32 %v816, %v823
        %v825 = vmul.f32 %v817, %v823
        %v826 = vmul.f32 %v818, %v823
        %v827 = vmul.f32 %v819, %v823
        %v828 = vmul.f32 %v820, %v823
        %v829 = vmul.f32 %v821, %v823
        %v830 = vadd.f32 %v810, %v824
        %v831 = vadd.f32 %v811, %v825
        %v832 = vadd.f32 %v812, %v826
        %v833 = vadd.f32 %v813, %v827
        %v834 = vadd.f32 %v814, %v828
        %v835 = vadd.f32 %v815, %v829
        %v836 = vld [vmem:[%s721 + $0x6] sm:$0xff]
        %v837 = vld [vmem:[%s721 + $0xe] sm:$0xff]
        %v838 = vld [vmem:[%s721 + $0x16] sm:$0xff]
        %v839 = vld [vmem:[%s721 + $0x1e] sm:$0xff]
        %v840 = vld [vmem:[%s721 + $0x26] sm:$0xff]
        %v841 = vld [vmem:[%s721 + $0x2e] sm:$0x1]
        %s842 = sld [smem:[#allocation8 + $0x1a]]
        %v843 = vstv %s842
        %v844 = vmul.f32 %v836, %v843
        %v845 = vmul.f32 %v837, %v843
        %v846 = vmul.f32 %v838, %v843
        %v847 = vmul.f32 %v839, %v843
        %v848 = vmul.f32 %v840, %v843
        %v849 = vmul.f32 %v841, %v843
        %v850 = vadd.f32 %v830, %v844
        %v851 = vadd.f32 %v831, %v845
        %v852 = vadd.f32 %v832, %v846
        %v853 = vadd.f32 %v833, %v847
        %v854 = vadd.f32 %v834, %v848
        %v855 = vadd.f32 %v835, %v849
        %v856 = vld [vmem:[%s721 + $0x7] sm:$0xff]
        %v857 = vld [vmem:[%s721 + $0xf] sm:$0xff]
        %v858 = vld [vmem:[%s721 + $0x17] sm:$0xff]
        %v859 = vld [vmem:[%s721 + $0x1f] sm:$0xff]
        %v860 = vld [vmem:[%s721 + $0x27] sm:$0xff]
        %v861 = vld [vmem:[%s721 + $0x2f] sm:$0x1]
        %s862 = sld [smem:[#allocation8 + $0x1b]]
        %v863 = vstv %s862
        %v864 = vmul.f32 %v856, %v863
        %v865 = vmul.f32 %v857, %v863
        %v866 = vmul.f32 %v858, %v863
        %v867 = vmul.f32 %v859, %v863
        %v868 = vmul.f32 %v860, %v863
        %v869 = vmul.f32 %v861, %v863
        %v870 = vadd.f32 %v850, %v864
        %v871 = vadd.f32 %v851, %v865
        %v872 = vadd.f32 %v852, %v866
        %v873 = vadd.f32 %v853, %v867
        %v874 = vadd.f32 %v854, %v868
        %v875 = vadd.f32 %v855, %v869
        %v876 = vld [vmem:[%s721 + $0x8] sm:$0xff]
        %v877 = vld [vmem:[%s721 + $0x10] sm:$0xff]
        %v878 = vld [vmem:[%s721 + $0x18] sm:$0xff]
        %v879 = vld [vmem:[%s721 + $0x20] sm:$0xff]
        %v880 = vld [vmem:[%s721 + $0x28] sm:$0xff]
        %v881 = vld [vmem:[%s721 + $0x30] sm:$0x1]
        %s882 = sld [smem:[#allocation8 + $0x1c]]
        %v883 = vstv %s882
        %v884 = vmul.f32 %v876, %v883
        %v885 = vmul.f32 %v877, %v883
        %v886 = vmul.f32 %v878, %v883
        %v887 = vmul.f32 %v879, %v883
        %v888 = vmul.f32 %v880, %v883
        %v889 = vmul.f32 %v881, %v883
        %v890 = vadd.f32 %v870, %v884
        %v891 = vadd.f32 %v871, %v885
        %v892 = vadd.f32 %v872, %v886
        %v893 = vadd.f32 %v873, %v887
        %v894 = vadd.f32 %v874, %v888
        %v895 = vadd.f32 %v875, %v889
        %v896 = vld [vmem:[%s721 + $0x9] sm:$0xff]
        %v897 = vld [vmem:[%s721 + $0x11] sm:$0xff]
        %v898 = vld [vmem:[%s721 + $0x19] sm:$0xff]
        %v899 = vld [vmem:[%s721 + $0x21] sm:$0xff]
        %v900 = vld [vmem:[%s721 + $0x29] sm:$0xff]
        %v901 = vld [vmem:[%s721 + $0x31] sm:$0x1]
        %s902 = sld [smem:[#allocation8 + $0x1d]]
        %v903 = vstv %s902
        %v904 = vmul.f32 %v896, %v903
        %v905 = vmul.f32 %v897, %v903
        %v906 = vmul.f32 %v898, %v903
        %v907 = vmul.f32 %v899, %v903
        %v908 = vmul.f32 %v900, %v903
        %v909 = vmul.f32 %v901, %v903
        %v910 = vadd.f32 %v890, %v904
        %v911 = vadd.f32 %v891, %v905
        %v912 = vadd.f32 %v892, %v906
        %v913 = vadd.f32 %v893, %v907
        %v914 = vadd.f32 %v894, %v908
        %v915 = vadd.f32 %v895, %v909
        %v916 = vadd.f32 %v520, %v715
        %v917 = vadd.f32 %v521, %v716
        %v918 = vadd.f32 %v522, %v717
        %v919 = vadd.f32 %v523, %v718
        %v920 = vadd.f32 %v524, %v719
        %v921 = vadd.f32 %v525, %v720
        %v922 = vadd.f32 %v916, %v910
        %v923 = vadd.f32 %v917, %v911
        %v924 = vadd.f32 %v918, %v912
        %v925 = vadd.f32 %v919, %v913
        %v926 = vadd.f32 %v920, %v914
        %v927 = vadd.f32 %v921, %v915
        %s928 = sld [smem:[#allocation4]]
        %v929 = vstv %s928
        %v930 = vadd.f32 %v922, %v929
        %v931 = vadd.f32 %v923, %v929
        %v932 = vadd.f32 %v924, %v929
        %v933 = vadd.f32 %v925, %v929
        %v934 = vadd.f32 %v926, %v929
        %v935 = vadd.f32 %v927, %v929
        %vm936 = vcmask 277504
        %937 = vst.msk [vmem:[#allocation3] sm:$0xff] %vm936, 0.0
        %938 = vst.msk [vmem:[#allocation3 + $0x8] sm:$0xff] %vm936, 0.0
        %939 = vst.msk [vmem:[#allocation3 + $0x10] sm:$0xff] %vm936, 0.0
        %940 = vst.msk [vmem:[#allocation3 + $0x18] sm:$0xff] %vm936, 0.0
        %941 = vst.msk [vmem:[#allocation3 + $0x20] sm:$0xff] %vm936, 0.0
        %vm942 = vcmask 270336
        %943 = vst.msk [vmem:[#allocation3 + $0x28] sm:$0x1] %vm942, 0.0
        %950 = vrot.lane.b32.xlu0 %v930, 1
        %v951 = vpop.permute.xlu0 %950
        %952 = vrot.lane.b32.xlu0 %v931, 1
        %v953 = vpop.permute.xlu0 %952
        %954 = vrot.lane.b32.xlu0 %v932, 1
        %v955 = vpop.permute.xlu0 %954
        %956 = vrot.lane.b32.xlu0 %v933, 1
        %v957 = vpop.permute.xlu0 %956
        %958 = vrot.lane.b32.xlu0 %v934, 1
        %v959 = vpop.permute.xlu0 %958
        %960 = vrot.lane.b32.xlu0 %v935, 1
        %v961 = vpop.permute.xlu0 %960
        %vm968 = vcmask 269320
        %969 = vst.msk [vmem:[#allocation3] sm:$0xff] %vm968, %v951
        %970 = vst.msk [vmem:[#allocation3 + $0x8] sm:$0xff] %vm968, %v953
        %971 = vst.msk [vmem:[#allocation3 + $0x10] sm:$0xff] %vm968, %v955
        %972 = vst.msk [vmem:[#allocation3 + $0x18] sm:$0xff] %vm968, %v957
        %973 = vst.msk [vmem:[#allocation3 + $0x20] sm:$0xff] %vm968, %v959
        %vm974 = vcmask 262152
        %975 = vst.msk [vmem:[#allocation3 + $0x28] sm:$0x1] %vm974, %v961
        %s976 = sld [smem:[#allocation9 + $0x5]]
        %v977 = vld [vmem:[#allocation3] sm:$0xff]
        %v978 = vld [vmem:[#allocation3 + $0x8] sm:$0xff]
        %v979 = vld [vmem:[#allocation3 + $0x10] sm:$0xff]
        %v980 = vld [vmem:[#allocation3 + $0x18] sm:$0xff]
        %v981 = vld [vmem:[#allocation3 + $0x20] sm:$0xff]
        %v982 = vstv %s976
        %v983 = vmul.f32 %v977, %v982
        %v984 = vmul.f32 %v978, %v982
        %v985 = vmul.f32 %v979, %v982
        %v986 = vmul.f32 %v980, %v982
        %v987 = vmul.f32 %v981, %v982
        %s988 = sld [smem:[#allocation9 + $0x7]]
        %v989 = vstv %s988
        %v990 = vmul.f32 %v977, %v989
        %v991 = vmul.f32 %v978, %v989
        %v992 = vmul.f32 %v979, %v989
        %v993 = vmul.f32 %v980, %v989
        %v994 = vmul.f32 %v981, %v989
        %1000 = vrot.lane.b32.xlu0 %v990, 127
        %v1001 = vpop.permute.xlu0 %1000
        %1002 = vrot.lane.b32.xlu0 %v991, 127
        %v1003 = vpop.permute.xlu0 %1002
        %1004 = vrot.lane.b32.xlu0 %v992, 127
        %v1005 = vpop.permute.xlu0 %1004
        %1006 = vrot.lane.b32.xlu0 %v993, 127
        %v1007 = vpop.permute.xlu0 %1006
        %1008 = vrot.lane.b32.xlu0 %v994, 127
        %v1009 = vpop.permute.xlu0 %1008
        %v1015 = vadd.f32 %v983, %v1001
        %v1016 = vadd.f32 %v984, %v1003
        %v1017 = vadd.f32 %v985, %v1005
        %v1018 = vadd.f32 %v986, %v1007
        %v1019 = vadd.f32 %v987, %v1009
        %s1020 = sld [smem:[#allocation9 + $0x9]]
        %v1021 = vstv %s1020
        %v1022 = vmul.f32 %v977, %v1021
        %v1023 = vmul.f32 %v978, %v1021
        %v1024 = vmul.f32 %v979, %v1021
        %v1025 = vmul.f32 %v980, %v1021
        %v1026 = vmul.f32 %v981, %v1021
        %1032 = vrot.lane.b32.xlu0 %v1022, 126
        %v1033 = vpop.permute.xlu0 %1032
        %1034 = vrot.lane.b32.xlu0 %v1023, 126
        %v1035 = vpop.permute.xlu0 %1034
        %1036 = vrot.lane.b32.xlu0 %v1024, 126
        %v1037 = vpop.permute.xlu0 %1036
        %1038 = vrot.lane.b32.xlu0 %v1025, 126
        %v1039 = vpop.permute.xlu0 %1038
        %1040 = vrot.lane.b32.xlu0 %v1026, 126
        %v1041 = vpop.permute.xlu0 %1040
        %v1047 = vadd.f32 %v1015, %v1033
        %v1048 = vadd.f32 %v1016, %v1035
        %v1049 = vadd.f32 %v1017, %v1037
        %v1050 = vadd.f32 %v1018, %v1039
        %v1051 = vadd.f32 %v1019, %v1041
        %s1052 = sld [smem:[#allocation9 + $0xf]]
        %v1053 = vld [vmem:[#allocation3 + $0x1] sm:$0xff]
        %v1054 = vld [vmem:[#allocation3 + $0x9] sm:$0xff]
        %v1055 = vld [vmem:[#allocation3 + $0x11] sm:$0xff]
        %v1056 = vld [vmem:[#allocation3 + $0x19] sm:$0xff]
        %v1057 = vld [vmem:[#allocation3 + $0x21] sm:$0xff]
        %v1058 = vstv %s1052
        %v1059 = vmul.f32 %v1053, %v1058
        %v1060 = vmul.f32 %v1054, %v1058
        %v1061 = vmul.f32 %v1055, %v1058
        %v1062 = vmul.f32 %v1056, %v1058
        %v1063 = vmul.f32 %v1057, %v1058
        %s1064 = sld [smem:[#allocation9 + $0x11]]
        %v1065 = vstv %s1064
        %v1066 = vmul.f32 %v1053, %v1065
        %v1067 = vmul.f32 %v1054, %v1065
        %v1068 = vmul.f32 %v1055, %v1065
        %v1069 = vmul.f32 %v1056, %v1065
        %v1070 = vmul.f32 %v1057, %v1065
        %1076 = vrot.lane.b32.xlu0 %v1066, 127
        %v1077 = vpop.permute.xlu0 %1076
        %1078 = vrot.lane.b32.xlu0 %v1067, 127
        %v1079 = vpop.permute.xlu0 %1078
        %1080 = vrot.lane.b32.xlu0 %v1068, 127
        %v1081 = vpop.permute.xlu0 %1080
        %1082 = vrot.lane.b32.xlu0 %v1069, 127
        %v1083 = vpop.permute.xlu0 %1082
        %1084 = vrot.lane.b32.xlu0 %v1070, 127
        %v1085 = vpop.permute.xlu0 %1084
        %v1091 = vadd.f32 %v1059, %v1077
        %v1092 = vadd.f32 %v1060, %v1079
        %v1093 = vadd.f32 %v1061, %v1081
        %v1094 = vadd.f32 %v1062, %v1083
        %v1095 = vadd.f32 %v1063, %v1085
        %s1096 = sld [smem:[#allocation9 + $0x13]]
        %v1097 = vstv %s1096
        %v1098 = vmul.f32 %v1053, %v1097
        %v1099 = vmul.f32 %v1054, %v1097
        %v1100 = vmul.f32 %v1055, %v1097
        %v1101 = vmul.f32 %v1056, %v1097
        %v1102 = vmul.f32 %v1057, %v1097
        %1108 = vrot.lane.b32.xlu0 %v1098, 126
        %v1109 = vpop.permute.xlu0 %1108
        %1110 = vrot.lane.b32.xlu0 %v1099, 126
        %v1111 = vpop.permute.xlu0 %1110
        %1112 = vrot.lane.b32.xlu0 %v1100, 126
        %v1113 = vpop.permute.xlu0 %1112
        %1114 = vrot.lane.b32.xlu0 %v1101, 126
        %v1115 = vpop.permute.xlu0 %1114
        %1116 = vrot.lane.b32.xlu0 %v1102, 126
        %v1117 = vpop.permute.xlu0 %1116
        %v1123 = vadd.f32 %v1091, %v1109
        %v1124 = vadd.f32 %v1092, %v1111
        %v1125 = vadd.f32 %v1093, %v1113
        %v1126 = vadd.f32 %v1094, %v1115
        %v1127 = vadd.f32 %v1095, %v1117
        %v1128 = vadd.f32 %v1047, %v1123
        %v1129 = vadd.f32 %v1048, %v1124
        %v1130 = vadd.f32 %v1049, %v1125
        %v1131 = vadd.f32 %v1050, %v1126
        %v1132 = vadd.f32 %v1051, %v1127
        %s1133 = sld [smem:[#allocation9 + $0x6]]
        %v1134 = vstv %s1133
        %v1135 = vmul.f32 %v977, %v1134
        %v1136 = vmul.f32 %v978, %v1134
        %v1137 = vmul.f32 %v979, %v1134
        %v1138 = vmul.f32 %v980, %v1134
        %v1139 = vmul.f32 %v981, %v1134
        %s1140 = sld [smem:[#allocation9 + $0x8]]
        %v1141 = vstv %s1140
        %v1142 = vmul.f32 %v977, %v1141
        %v1143 = vmul.f32 %v978, %v1141
        %v1144 = vmul.f32 %v979, %v1141
        %v1145 = vmul.f32 %v980, %v1141
        %v1146 = vmul.f32 %v981, %v1141
        %1152 = vrot.lane.b32.xlu0 %v1142, 127
        %v1153 = vpop.permute.xlu0 %1152
        %1154 = vrot.lane.b32.xlu0 %v1143, 127
        %v1155 = vpop.permute.xlu0 %1154
        %1156 = vrot.lane.b32.xlu0 %v1144, 127
        %v1157 = vpop.permute.xlu0 %1156
        %1158 = vrot.lane.b32.xlu0 %v1145, 127
        %v1159 = vpop.permute.xlu0 %1158
        %1160 = vrot.lane.b32.xlu0 %v1146, 127
        %v1161 = vpop.permute.xlu0 %1160
        %v1167 = vadd.f32 %v1135, %v1153
        %v1168 = vadd.f32 %v1136, %v1155
        %v1169 = vadd.f32 %v1137, %v1157
        %v1170 = vadd.f32 %v1138, %v1159
        %v1171 = vadd.f32 %v1139, %v1161
        %s1172 = sld [smem:[#allocation9 + $0x10]]
        %v1173 = vstv %s1172
        %v1174 = vmul.f32 %v1053, %v1173
        %v1175 = vmul.f32 %v1054, %v1173
        %v1176 = vmul.f32 %v1055, %v1173
        %v1177 = vmul.f32 %v1056, %v1173
        %v1178 = vmul.f32 %v1057, %v1173
        %s1179 = sld [smem:[#allocation9 + $0x12]]
        %v1180 = vstv %s1179
        %v1181 = vmul.f32 %v1053, %v1180
        %v1182 = vmul.f32 %v1054, %v1180
        %v1183 = vmul.f32 %v1055, %v1180
        %v1184 = vmul.f32 %v1056, %v1180
        %v1185 = vmul.f32 %v1057, %v1180
        %1191 = vrot.lane.b32.xlu0 %v1181, 127
        %v1192 = vpop.permute.xlu0 %1191
        %1193 = vrot.lane.b32.xlu0 %v1182, 127
        %v1194 = vpop.permute.xlu0 %1193
        %1195 = vrot.lane.b32.xlu0 %v1183, 127
        %v1196 = vpop.permute.xlu0 %1195
        %1197 = vrot.lane.b32.xlu0 %v1184, 127
        %v1198 = vpop.permute.xlu0 %1197
        %1199 = vrot.lane.b32.xlu0 %v1185, 127
        %v1200 = vpop.permute.xlu0 %1199
        %v1206 = vadd.f32 %v1174, %v1192
        %v1207 = vadd.f32 %v1175, %v1194
        %v1208 = vadd.f32 %v1176, %v1196
        %v1209 = vadd.f32 %v1177, %v1198
        %v1210 = vadd.f32 %v1178, %v1200
        %v1211 = vadd.f32 %v1167, %v1206
        %v1212 = vadd.f32 %v1168, %v1207
        %v1213 = vadd.f32 %v1169, %v1208
        %v1214 = vadd.f32 %v1170, %v1209
        %v1215 = vadd.f32 %v1171, %v1210
        %s1216 = sld [smem:[#allocation9]]
        %v1217 = vld [vmem:[#allocation3] sm:$0xff]
        %v1218 = vld [vmem:[#allocation3 + $0x8] sm:$0xff]
        %v1219 = vld [vmem:[#allocation3 + $0x10] sm:$0xff]
        %v1220 = vld [vmem:[#allocation3 + $0x18] sm:$0xff]
        %v1221 = vld [vmem:[#allocation3 + $0x20] sm:$0x7f]
        %v1222 = vstv %s1216
        %v1223 = vmul.f32 %v1217, %v1222
        %v1224 = vmul.f32 %v1218, %v1222
        %v1225 = vmul.f32 %v1219, %v1222
        %v1226 = vmul.f32 %v1220, %v1222
        %v1227 = vmul.f32 %v1221, %v1222
        %s1228 = sld [smem:[#allocation9 + $0x2]]
        %v1229 = vstv %s1228
        %v1230 = vmul.f32 %v1217, %v1229
        %v1231 = vmul.f32 %v1218, %v1229
        %v1232 = vmul.f32 %v1219, %v1229
        %v1233 = vmul.f32 %v1220, %v1229
        %v1234 = vmul.f32 %v1221, %v1229
        %1240 = vrot.lane.b32.xlu0 %v1230, 127
        %v1241 = vpop.permute.xlu0 %1240
        %1242 = vrot.lane.b32.xlu0 %v1231, 127
        %v1243 = vpop.permute.xlu0 %1242
        %1244 = vrot.lane.b32.xlu0 %v1232, 127
        %v1245 = vpop.permute.xlu0 %1244
        %1246 = vrot.lane.b32.xlu0 %v1233, 127
        %v1247 = vpop.permute.xlu0 %1246
        %1248 = vrot.lane.b32.xlu0 %v1234, 127
        %v1249 = vpop.permute.xlu0 %1248
        %v1255 = vadd.f32 %v1223, %v1241
        %v1256 = vadd.f32 %v1224, %v1243
        %v1257 = vadd.f32 %v1225, %v1245
        %v1258 = vadd.f32 %v1226, %v1247
        %v1259 = vadd.f32 %v1227, %v1249
        %s1260 = sld [smem:[#allocation9 + $0x4]]
        %v1261 = vstv %s1260
        %v1262 = vmul.f32 %v1217, %v1261
        %v1263 = vmul.f32 %v1218, %v1261
        %v1264 = vmul.f32 %v1219, %v1261
        %v1265 = vmul.f32 %v1220, %v1261
        %v1266 = vmul.f32 %v1221, %v1261
        %1272 = vrot.lane.b32.xlu0 %v1262, 126
        %v1273 = vpop.permute.xlu0 %1272
        %1274 = vrot.lane.b32.xlu0 %v1263, 126
        %v1275 = vpop.permute.xlu0 %1274
        %1276 = vrot.lane.b32.xlu0 %v1264, 126
        %v1277 = vpop.permute.xlu0 %1276
        %1278 = vrot.lane.b32.xlu0 %v1265, 126
        %v1279 = vpop.permute.xlu0 %1278
        %1280 = vrot.lane.b32.xlu0 %v1266, 126
        %v1281 = vpop.permute.xlu0 %1280
        %v1287 = vadd.f32 %v1255, %v1273
        %v1288 = vadd.f32 %v1256, %v1275
        %v1289 = vadd.f32 %v1257, %v1277
        %v1290 = vadd.f32 %v1258, %v1279
        %v1291 = vadd.f32 %v1259, %v1281
        %s1292 = sld [smem:[#allocation9 + $0xa]]
        %v1293 = vld [vmem:[#allocation3 + $0x1] sm:$0xff]
        %v1294 = vld [vmem:[#allocation3 + $0x9] sm:$0xff]
        %v1295 = vld [vmem:[#allocation3 + $0x11] sm:$0xff]
        %v1296 = vld [vmem:[#allocation3 + $0x19] sm:$0xff]
        %v1297 = vld [vmem:[#allocation3 + $0x21] sm:$0x7f]
        %v1298 = vstv %s1292
        %v1299 = vmul.f32 %v1293, %v1298
        %v1300 = vmul.f32 %v1294, %v1298
        %v1301 = vmul.f32 %v1295, %v1298
        %v1302 = vmul.f32 %v1296, %v1298
        %v1303 = vmul.f32 %v1297, %v1298
        %s1304 = sld [smem:[#allocation9 + $0xc]]
        %v1305 = vstv %s1304
        %v1306 = vmul.f32 %v1293, %v1305
        %v1307 = vmul.f32 %v1294, %v1305
        %v1308 = vmul.f32 %v1295, %v1305
        %v1309 = vmul.f32 %v1296, %v1305
        %v1310 = vmul.f32 %v1297, %v1305
        %1316 = vrot.lane.b32.xlu0 %v1306, 127
        %v1317 = vpop.permute.xlu0 %1316
        %1318 = vrot.lane.b32.xlu0 %v1307, 127
        %v1319 = vpop.permute.xlu0 %1318
        %1320 = vrot.lane.b32.xlu0 %v1308, 127
        %v1321 = vpop.permute.xlu0 %1320
        %1322 = vrot.lane.b32.xlu0 %v1309, 127
        %v1323 = vpop.permute.xlu0 %1322
        %1324 = vrot.lane.b32.xlu0 %v1310, 127
        %v1325 = vpop.permute.xlu0 %1324
        %v1331 = vadd.f32 %v1299, %v1317
        %v1332 = vadd.f32 %v1300, %v1319
        %v1333 = vadd.f32 %v1301, %v1321
        %v1334 = vadd.f32 %v1302, %v1323
        %v1335 = vadd.f32 %v1303, %v1325
        %s1336 = sld [smem:[#allocation9 + $0xe]]
        %v1337 = vstv %s1336
        %v1338 = vmul.f32 %v1293, %v1337
        %v1339 = vmul.f32 %v1294, %v1337
        %v1340 = vmul.f32 %v1295, %v1337
        %v1341 = vmul.f32 %v1296, %v1337
        %v1342 = vmul.f32 %v1297, %v1337
        %1348 = vrot.lane.b32.xlu0 %v1338, 126
        %v1349 = vpop.permute.xlu0 %1348
        %1350 = vrot.lane.b32.xlu0 %v1339, 126
        %v1351 = vpop.permute.xlu0 %1350
        %1352 = vrot.lane.b32.xlu0 %v1340, 126
        %v1353 = vpop.permute.xlu0 %1352
        %1354 = vrot.lane.b32.xlu0 %v1341, 126
        %v1355 = vpop.permute.xlu0 %1354
        %1356 = vrot.lane.b32.xlu0 %v1342, 126
        %v1357 = vpop.permute.xlu0 %1356
        %v1363 = vadd.f32 %v1331, %v1349
        %v1364 = vadd.f32 %v1332, %v1351
        %v1365 = vadd.f32 %v1333, %v1353
        %v1366 = vadd.f32 %v1334, %v1355
        %v1367 = vadd.f32 %v1335, %v1357
        %s1368 = sld [smem:[#allocation9 + $0x14]]
        %v1369 = vld [vmem:[#allocation3 + $0x2] sm:$0xff]
        %v1370 = vld [vmem:[#allocation3 + $0xa] sm:$0xff]
        %v1371 = vld [vmem:[#allocation3 + $0x12] sm:$0xff]
        %v1372 = vld [vmem:[#allocation3 + $0x1a] sm:$0xff]
        %v1373 = vld [vmem:[#allocation3 + $0x22] sm:$0x7f]
        %v1374 = vstv %s1368
        %v1375 = vmul.f32 %v1369, %v1374
        %v1376 = vmul.f32 %v1370, %v1374
        %v1377 = vmul.f32 %v1371, %v1374
        %v1378 = vmul.f32 %v1372, %v1374
        %v1379 = vmul.f32 %v1373, %v1374
        %s1380 = sld [smem:[#allocation9 + $0x16]]
        %v1381 = vstv %s1380
        %v1382 = vmul.f32 %v1369, %v1381
        %v1383 = vmul.f32 %v1370, %v1381
        %v1384 = vmul.f32 %v1371, %v1381
        %v1385 = vmul.f32 %v1372, %v1381
        %v1386 = vmul.f32 %v1373, %v1381
        %1392 = vrot.lane.b32.xlu0 %v1382, 127
        %v1393 = vpop.permute.xlu0 %1392
        %1394 = vrot.lane.b32.xlu0 %v1383, 127
        %v1395 = vpop.permute.xlu0 %1394
        %1396 = vrot.lane.b32.xlu0 %v1384, 127
        %v1397 = vpop.permute.xlu0 %1396
        %1398 = vrot.lane.b32.xlu0 %v1385, 127
        %v1399 = vpop.permute.xlu0 %1398
        %1400 = vrot.lane.b32.xlu0 %v1386, 127
        %v1401 = vpop.permute.xlu0 %1400
        %v1407 = vadd.f32 %v1375, %v1393
        %v1408 = vadd.f32 %v1376, %v1395
        %v1409 = vadd.f32 %v1377, %v1397
        %v1410 = vadd.f32 %v1378, %v1399
        %v1411 = vadd.f32 %v1379, %v1401
        %s1412 = sld [smem:[#allocation9 + $0x18]]
        %v1413 = vstv %s1412
        %v1414 = vmul.f32 %v1369, %v1413
        %v1415 = vmul.f32 %v1370, %v1413
        %v1416 = vmul.f32 %v1371, %v1413
        %v1417 = vmul.f32 %v1372, %v1413
        %v1418 = vmul.f32 %v1373, %v1413
        %1424 = vrot.lane.b32.xlu0 %v1414, 126
        %v1425 = vpop.permute.xlu0 %1424
        %1426 = vrot.lane.b32.xlu0 %v1415, 126
        %v1427 = vpop.permute.xlu0 %1426
        %1428 = vrot.lane.b32.xlu0 %v1416, 126
        %v1429 = vpop.permute.xlu0 %1428
        %1430 = vrot.lane.b32.xlu0 %v1417, 126
        %v1431 = vpop.permute.xlu0 %1430
        %1432 = vrot.lane.b32.xlu0 %v1418, 126
        %v1433 = vpop.permute.xlu0 %1432
        %v1439 = vadd.f32 %v1407, %v1425
        %v1440 = vadd.f32 %v1408, %v1427
        %v1441 = vadd.f32 %v1409, %v1429
        %v1442 = vadd.f32 %v1410, %v1431
        %v1443 = vadd.f32 %v1411, %v1433
        %v1444 = vadd.f32 %v1287, %v1363
        %v1445 = vadd.f32 %v1288, %v1364
        %v1446 = vadd.f32 %v1289, %v1365
        %v1447 = vadd.f32 %v1290, %v1366
        %v1448 = vadd.f32 %v1291, %v1367
        %v1449 = vadd.f32 %v1444, %v1439
        %v1450 = vadd.f32 %v1445, %v1440
        %v1451 = vadd.f32 %v1446, %v1441
        %v1452 = vadd.f32 %v1447, %v1442
        %v1453 = vadd.f32 %v1448, %v1443
        %s1454 = sld [smem:[#allocation9 + $0x1]]
        %v1455 = vstv %s1454
        %v1456 = vmul.f32 %v1217, %v1455
        %v1457 = vmul.f32 %v1218, %v1455
        %v1458 = vmul.f32 %v1219, %v1455
        %v1459 = vmul.f32 %v1220, %v1455
        %v1460 = vmul.f32 %v1221, %v1455
        %s1461 = sld [smem:[#allocation9 + $0x3]]
        %v1462 = vstv %s1461
        %v1463 = vmul.f32 %v1217, %v1462
        %v1464 = vmul.f32 %v1218, %v1462
        %v1465 = vmul.f32 %v1219, %v1462
        %v1466 = vmul.f32 %v1220, %v1462
        %v1467 = vmul.f32 %v1221, %v1462
        %1473 = vrot.lane.b32.xlu0 %v1463, 127
        %v1474 = vpop.permute.xlu0 %1473
        %1475 = vrot.lane.b32.xlu0 %v1464, 127
        %v1476 = vpop.permute.xlu0 %1475
        %1477 = vrot.lane.b32.xlu0 %v1465, 127
        %v1478 = vpop.permute.xlu0 %1477
        %1479 = vrot.lane.b32.xlu0 %v1466, 127
        %v1480 = vpop.permute.xlu0 %1479
        %1481 = vrot.lane.b32.xlu0 %v1467, 127
        %v1482 = vpop.permute.xlu0 %1481
        %v1488 = vadd.f32 %v1456, %v1474
        %v1489 = vadd.f32 %v1457, %v1476
        %v1490 = vadd.f32 %v1458, %v1478
        %v1491 = vadd.f32 %v1459, %v1480
        %v1492 = vadd.f32 %v1460, %v1482
        %s1493 = sld [smem:[#allocation9 + $0xb]]
        %v1494 = vstv %s1493
        %v1495 = vmul.f32 %v1293, %v1494
        %v1496 = vmul.f32 %v1294, %v1494
        %v1497 = vmul.f32 %v1295, %v1494
        %v1498 = vmul.f32 %v1296, %v1494
        %v1499 = vmul.f32 %v1297, %v1494
        %s1500 = sld [smem:[#allocation9 + $0xd]]
        %v1501 = vstv %s1500
        %v1502 = vmul.f32 %v1293, %v1501
        %v1503 = vmul.f32 %v1294, %v1501
        %v1504 = vmul.f32 %v1295, %v1501
        %v1505 = vmul.f32 %v1296, %v1501
        %v1506 = vmul.f32 %v1297, %v1501
        %1512 = vrot.lane.b32.xlu0 %v1502, 127
        %v1513 = vpop.permute.xlu0 %1512
        %1514 = vrot.lane.b32.xlu0 %v1503, 127
        %v1515 = vpop.permute.xlu0 %1514
        %1516 = vrot.lane.b32.xlu0 %v1504, 127
        %v1517 = vpop.permute.xlu0 %1516
        %1518 = vrot.lane.b32.xlu0 %v1505, 127
        %v1519 = vpop.permute.xlu0 %1518
        %1520 = vrot.lane.b32.xlu0 %v1506, 127
        %v1521 = vpop.permute.xlu0 %1520
        %v1527 = vadd.f32 %v1495, %v1513
        %v1528 = vadd.f32 %v1496, %v1515
        %v1529 = vadd.f32 %v1497, %v1517
        %v1530 = vadd.f32 %v1498, %v1519
        %v1531 = vadd.f32 %v1499, %v1521
        %s1532 = sld [smem:[#allocation9 + $0x15]]
        %v1533 = vstv %s1532
        %v1534 = vmul.f32 %v1369, %v1533
        %v1535 = vmul.f32 %v1370, %v1533
        %v1536 = vmul.f32 %v1371, %v1533
        %v1537 = vmul.f32 %v1372, %v1533
        %v1538 = vmul.f32 %v1373, %v1533
        %s1539 = sld [smem:[#allocation9 + $0x17]]
        %v1540 = vstv %s1539
        %v1541 = vmul.f32 %v1369, %v1540
        %v1542 = vmul.f32 %v1370, %v1540
        %v1543 = vmul.f32 %v1371, %v1540
        %v1544 = vmul.f32 %v1372, %v1540
        %v1545 = vmul.f32 %v1373, %v1540
        %1551 = vrot.lane.b32.xlu0 %v1541, 127
        %v1552 = vpop.permute.xlu0 %1551
        %1553 = vrot.lane.b32.xlu0 %v1542, 127
        %v1554 = vpop.permute.xlu0 %1553
        %1555 = vrot.lane.b32.xlu0 %v1543, 127
        %v1556 = vpop.permute.xlu0 %1555
        %1557 = vrot.lane.b32.xlu0 %v1544, 127
        %v1558 = vpop.permute.xlu0 %1557
        %1559 = vrot.lane.b32.xlu0 %v1545, 127
        %v1560 = vpop.permute.xlu0 %1559
        %v1566 = vadd.f32 %v1534, %v1552
        %v1567 = vadd.f32 %v1535, %v1554
        %v1568 = vadd.f32 %v1536, %v1556
        %v1569 = vadd.f32 %v1537, %v1558
        %v1570 = vadd.f32 %v1538, %v1560
        %v1571 = vadd.f32 %v1488, %v1527
        %v1572 = vadd.f32 %v1489, %v1528
        %v1573 = vadd.f32 %v1490, %v1529
        %v1574 = vadd.f32 %v1491, %v1530
        %v1575 = vadd.f32 %v1492, %v1531
        %v1576 = vadd.f32 %v1571, %v1566
        %v1577 = vadd.f32 %v1572, %v1567
        %v1578 = vadd.f32 %v1573, %v1568
        %v1579 = vadd.f32 %v1574, %v1569
        %v1580 = vadd.f32 %v1575, %v1570
        %1586 = vrot.lane.b32.xlu0 %v1128, 127
        %v1587 = vpop.permute.xlu0 %1586
        %1588 = vrot.lane.b32.xlu0 %v1129, 127
        %v1589 = vpop.permute.xlu0 %1588
        %1590 = vrot.lane.b32.xlu0 %v1130, 127
        %v1591 = vpop.permute.xlu0 %1590
        %1592 = vrot.lane.b32.xlu0 %v1131, 127
        %v1593 = vpop.permute.xlu0 %1592
        %1594 = vrot.lane.b32.xlu0 %v1132, 127
        %v1595 = vpop.permute.xlu0 %1594
        %v1601 = vmax.f32 %v1128, %v1587
        %v1602 = vmax.f32 %v1129, %v1589
        %v1603 = vmax.f32 %v1130, %v1591
        %v1604 = vmax.f32 %v1131, %v1593
        %v1605 = vmax.f32 %v1132, %v1595
        %vm1611 = vcmask 1046528
        %v1612 = vrot.slane %v1601, 1
        %v1613 = vrot.slane %v1602, 1
        %v1614 = vsel %vm1611, %v1612, %v1613
        %v1615 = vrot.slane %v1603, 1
        %v1616 = vsel %vm1611, %v1613, %v1615
        %v1617 = vrot.slane %v1604, 1
        %v1618 = vsel %vm1611, %v1615, %v1617
        %v1619 = vrot.slane %v1605, 1
        %v1620 = vsel %vm1611, %v1617, %v1619
        %v1626 = vmax.f32 %v1601, %v1614
        %v1627 = vmax.f32 %v1602, %v1616
        %v1628 = vmax.f32 %v1603, %v1618
        %v1629 = vmax.f32 %v1604, %v1620
        %v1630 = vmax.f32 %v1605, %v1619
        %1636 = vrot.lane.b32.xlu0 %v1211, 127
        %v1637 = vpop.permute.xlu0 %1636
        %1638 = vrot.lane.b32.xlu0 %v1212, 127
        %v1639 = vpop.permute.xlu0 %1638
        %1640 = vrot.lane.b32.xlu0 %v1213, 127
        %v1641 = vpop.permute.xlu0 %1640
        %1642 = vrot.lane.b32.xlu0 %v1214, 127
        %v1643 = vpop.permute.xlu0 %1642
        %1644 = vrot.lane.b32.xlu0 %v1215, 127
        %v1645 = vpop.permute.xlu0 %1644
        %v1651 = vmax.f32 %v1211, %v1637
        %v1652 = vmax.f32 %v1212, %v1639
        %v1653 = vmax.f32 %v1213, %v1641
        %v1654 = vmax.f32 %v1214, %v1643
        %v1655 = vmax.f32 %v1215, %v1645
        %v1661 = vrot.slane %v1651, 1
        %v1662 = vrot.slane %v1652, 1
        %v1663 = vsel %vm1611, %v1661, %v1662
        %v1664 = vrot.slane %v1653, 1
        %v1665 = vsel %vm1611, %v1662, %v1664
        %v1666 = vrot.slane %v1654, 1
        %v1667 = vsel %vm1611, %v1664, %v1666
        %v1668 = vrot.slane %v1655, 1
        %v1669 = vsel %vm1611, %v1666, %v1668
        %v1675 = vmax.f32 %v1651, %v1663
        %v1676 = vmax.f32 %v1652, %v1665
        %v1677 = vmax.f32 %v1653, %v1667
        %v1678 = vmax.f32 %v1654, %v1669
        %v1679 = vmax.f32 %v1655, %v1668
        %1685 = vrot.lane.b32.xlu0 %v1675, 127
        %v1686 = vpop.permute.xlu0 %1685
        %1687 = vrot.lane.b32.xlu0 %v1676, 127
        %v1688 = vpop.permute.xlu0 %1687
        %1689 = vrot.lane.b32.xlu0 %v1677, 127
        %v1690 = vpop.permute.xlu0 %1689
        %1691 = vrot.lane.b32.xlu0 %v1678, 127
        %v1692 = vpop.permute.xlu0 %1691
        %1693 = vrot.lane.b32.xlu0 %v1679, 127
        %v1694 = vpop.permute.xlu0 %1693
        %v1700 = vmax.f32 %v1626, %v1686
        %v1701 = vmax.f32 %v1627, %v1688
        %v1702 = vmax.f32 %v1628, %v1690
        %v1703 = vmax.f32 %v1629, %v1692
        %v1704 = vmax.f32 %v1630, %v1694
        %1710 = vrot.lane.b32.xlu0 %v1449, 127
        %v1711 = vpop.permute.xlu0 %1710
        %1712 = vrot.lane.b32.xlu0 %v1450, 127
        %v1713 = vpop.permute.xlu0 %1712
        %1714 = vrot.lane.b32.xlu0 %v1451, 127
        %v1715 = vpop.permute.xlu0 %1714
        %1716 = vrot.lane.b32.xlu0 %v1452, 127
        %v1717 = vpop.permute.xlu0 %1716
        %1718 = vrot.lane.b32.xlu0 %v1453, 127
        %v1719 = vpop.permute.xlu0 %1718
        %v1725 = vmax.f32 %v1449, %v1711
        %v1726 = vmax.f32 %v1450, %v1713
        %v1727 = vmax.f32 %v1451, %v1715
        %v1728 = vmax.f32 %v1452, %v1717
        %v1729 = vmax.f32 %v1453, %v1719
        %v1735 = vrot.slane %v1725, 1
        %v1736 = vrot.slane %v1726, 1
        %v1737 = vsel %vm1611, %v1735, %v1736
        %v1738 = vrot.slane %v1727, 1
        %v1739 = vsel %vm1611, %v1736, %v1738
        %v1740 = vrot.slane %v1728, 1
        %v1741 = vsel %vm1611, %v1738, %v1740
        %v1742 = vrot.slane %v1729, 1
        %v1743 = vsel %vm1611, %v1740, %v1742
        %v1749 = vmax.f32 %v1725, %v1737
        %v1750 = vmax.f32 %v1726, %v1739
        %v1751 = vmax.f32 %v1727, %v1741
        %v1752 = vmax.f32 %v1728, %v1743
        %v1753 = vmax.f32 %v1729, %v1742
        %1759 = vrot.lane.b32.xlu0 %v1576, 127
        %v1760 = vpop.permute.xlu0 %1759
        %1761 = vrot.lane.b32.xlu0 %v1577, 127
        %v1762 = vpop.permute.xlu0 %1761
        %1763 = vrot.lane.b32.xlu0 %v1578, 127
        %v1764 = vpop.permute.xlu0 %1763
        %1765 = vrot.lane.b32.xlu0 %v1579, 127
        %v1766 = vpop.permute.xlu0 %1765
        %1767 = vrot.lane.b32.xlu0 %v1580, 127
        %v1768 = vpop.permute.xlu0 %1767
        %v1774 = vmax.f32 %v1576, %v1760
        %v1775 = vmax.f32 %v1577, %v1762
        %v1776 = vmax.f32 %v1578, %v1764
        %v1777 = vmax.f32 %v1579, %v1766
        %v1778 = vmax.f32 %v1580, %v1768
        %v1784 = vrot.slane %v1774, 1
        %v1785 = vrot.slane %v1775, 1
        %v1786 = vsel %vm1611, %v1784, %v1785
        %v1787 = vrot.slane %v1776, 1
        %v1788 = vsel %vm1611, %v1785, %v1787
        %v1789 = vrot.slane %v1777, 1
        %v1790 = vsel %vm1611, %v1787, %v1789
        %v1791 = vrot.slane %v1778, 1
        %v1792 = vsel %vm1611, %v1789, %v1791
        %v1798 = vmax.f32 %v1774, %v1786
        %v1799 = vmax.f32 %v1775, %v1788
        %v1800 = vmax.f32 %v1776, %v1790
        %v1801 = vmax.f32 %v1777, %v1792
        %v1802 = vmax.f32 %v1778, %v1791
        %1808 = vrot.lane.b32.xlu0 %v1798, 127
        %v1809 = vpop.permute.xlu0 %1808
        %1810 = vrot.lane.b32.xlu0 %v1799, 127
        %v1811 = vpop.permute.xlu0 %1810
        %1812 = vrot.lane.b32.xlu0 %v1800, 127
        %v1813 = vpop.permute.xlu0 %1812
        %1814 = vrot.lane.b32.xlu0 %v1801, 127
        %v1815 = vpop.permute.xlu0 %1814
        %1816 = vrot.lane.b32.xlu0 %v1802, 127
        %v1817 = vpop.permute.xlu0 %1816
        %v1823 = vmax.f32 %v1749, %v1809
        %v1824 = vmax.f32 %v1750, %v1811
        %v1825 = vmax.f32 %v1751, %v1813
        %v1826 = vmax.f32 %v1752, %v1815
        %v1827 = vmax.f32 %v1753, %v1817
        %v1828 = vmax.f32 %v1700, %v1823
        %v1829 = vmax.f32 %v1701, %v1824
        %v1830 = vmax.f32 %v1702, %v1825
        %v1831 = vmax.f32 %v1703, %v1826
        %v1832 = vmax.f32 %v1704, %v1827
        %s1833 = sld [smem:[#allocation11]]
        %v1834 = vstv %s1833
        %v1835 = vadd.f32 %v1828, %v1834
        %v1836 = vadd.f32 %v1829, %v1834
        %v1837 = vadd.f32 %v1830, %v1834
        %v1838 = vadd.f32 %v1831, %v1834
        %v1839 = vadd.f32 %v1832, %v1834
        %vm1840 = vcmask 244736
        %1841 = vst.msk [vmem:[%s284] sm:$0xff] %vm1840, %v1835
        %1842 = vst.msk [vmem:[%s284 + $0x8] sm:$0xff] %vm1840, %v1836
        %1843 = vst.msk [vmem:[%s284 + $0x10] sm:$0xff] %vm1840, %v1837
        %1844 = vst.msk [vmem:[%s284 + $0x18] sm:$0xff] %vm1840, %v1838
        %vm1845 = vcmask 242688
        %1846 = vst.msk [vmem:[%s284 + $0x20] sm:$0x3f] %vm1845, %v1839
        %s1847 = sld [smem:[#allocation9 + $0x1e]]
        %v1848 = vld [vmem:[#allocation3] sm:$0xff]
        %v1849 = vld [vmem:[#allocation3 + $0x8] sm:$0xff]
        %v1850 = vld [vmem:[#allocation3 + $0x10] sm:$0xff]
        %v1851 = vld [vmem:[#allocation3 + $0x18] sm:$0xff]
        %v1852 = vld [vmem:[#allocation3 + $0x20] sm:$0xff]
        %v1853 = vstv %s1847
        %v1854 = vmul.f32 %v1848, %v1853
        %v1855 = vmul.f32 %v1849, %v1853
        %v1856 = vmul.f32 %v1850, %v1853
        %v1857 = vmul.f32 %v1851, %v1853
        %v1858 = vmul.f32 %v1852, %v1853
        %s1859 = sld [smem:[#allocation9 + $0x20]]
        %v1860 = vstv %s1859
        %v1861 = vmul.f32 %v1848, %v1860
        %v1862 = vmul.f32 %v1849, %v1860
        %v1863 = vmul.f32 %v1850, %v1860
        %v1864 = vmul.f32 %v1851, %v1860
        %v1865 = vmul.f32 %v1852, %v1860
        %1871 = vrot.lane.b32.xlu0 %v1861, 127
        %v1872 = vpop.permute.xlu0 %1871
        %1873 = vrot.lane.b32.xlu0 %v1862, 127
        %v1874 = vpop.permute.xlu0 %1873
        %1875 = vrot.lane.b32.xlu0 %v1863, 127
        %v1876 = vpop.permute.xlu0 %1875
        %1877 = vrot.lane.b32.xlu0 %v1864, 127
        %v1878 = vpop.permute.xlu0 %1877
        %1879 = vrot.lane.b32.xlu0 %v1865, 127
        %v1880 = vpop.permute.xlu0 %1879
        %v1886 = vadd.f32 %v1854, %v1872
        %v1887 = vadd.f32 %v1855, %v1874
        %v1888 = vadd.f32 %v1856, %v1876
        %v1889 = vadd.f32 %v1857, %v1878
        %v1890 = vadd.f32 %v1858, %v1880
        %s1891 = sld [smem:[#allocation9 + $0x22]]
        %v1892 = vstv %s1891
        %v1893 = vmul.f32 %v1848, %v1892
        %v1894 = vmul.f32 %v1849, %v1892
        %v1895 = vmul.f32 %v1850, %v1892
        %v1896 = vmul.f32 %v1851, %v1892
        %v1897 = vmul.f32 %v1852, %v1892
        %1903 = vrot.lane.b32.xlu0 %v1893, 126
        %v1904 = vpop.permute.xlu0 %1903
        %1905 = vrot.lane.b32.xlu0 %v1894, 126
        %v1906 = vpop.permute.xlu0 %1905
        %1907 = vrot.lane.b32.xlu0 %v1895, 126
        %v1908 = vpop.permute.xlu0 %1907
        %1909 = vrot.lane.b32.xlu0 %v1896, 126
        %v1910 = vpop.permute.xlu0 %1909
        %1911 = vrot.lane.b32.xlu0 %v1897, 126
        %v1912 = vpop.permute.xlu0 %1911
        %v1918 = vadd.f32 %v1886, %v1904
        %v1919 = vadd.f32 %v1887, %v1906
        %v1920 = vadd.f32 %v1888, %v1908
        %v1921 = vadd.f32 %v1889, %v1910
        %v1922 = vadd.f32 %v1890, %v1912
        %s1923 = sld [smem:[#allocation9 + $0x28]]
        %v1924 = vld [vmem:[#allocation3 + $0x1] sm:$0xff]
        %v1925 = vld [vmem:[#allocation3 + $0x9] sm:$0xff]
        %v1926 = vld [vmem:[#allocation3 + $0x11] sm:$0xff]
        %v1927 = vld [vmem:[#allocation3 + $0x19] sm:$0xff]
        %v1928 = vld [vmem:[#allocation3 + $0x21] sm:$0xff]
        %v1929 = vstv %s1923
        %v1930 = vmul.f32 %v1924, %v1929
        %v1931 = vmul.f32 %v1925, %v1929
        %v1932 = vmul.f32 %v1926, %v1929
        %v1933 = vmul.f32 %v1927, %v1929
        %v1934 = vmul.f32 %v1928, %v1929
        %s1935 = sld [smem:[#allocation9 + $0x2a]]
        %v1936 = vstv %s1935
        %v1937 = vmul.f32 %v1924, %v1936
        %v1938 = vmul.f32 %v1925, %v1936
        %v1939 = vmul.f32 %v1926, %v1936
        %v1940 = vmul.f32 %v1927, %v1936
        %v1941 = vmul.f32 %v1928, %v1936
        %1947 = vrot.lane.b32.xlu0 %v1937, 127
        %v1948 = vpop.permute.xlu0 %1947
        %1949 = vrot.lane.b32.xlu0 %v1938, 127
        %v1950 = vpop.permute.xlu0 %1949
        %1951 = vrot.lane.b32.xlu0 %v1939, 127
        %v1952 = vpop.permute.xlu0 %1951
        %1953 = vrot.lane.b32.xlu0 %v1940, 127
        %v1954 = vpop.permute.xlu0 %1953
        %1955 = vrot.lane.b32.xlu0 %v1941, 127
        %v1956 = vpop.permute.xlu0 %1955
        %v1962 = vadd.f32 %v1930, %v1948
        %v1963 = vadd.f32 %v1931, %v1950
        %v1964 = vadd.f32 %v1932, %v1952
        %v1965 = vadd.f32 %v1933, %v1954
        %v1966 = vadd.f32 %v1934, %v1956
        %s1967 = sld [smem:[#allocation9 + $0x2c]]
        %v1968 = vstv %s1967
        %v1969 = vmul.f32 %v1924, %v1968
        %v1970 = vmul.f32 %v1925, %v1968
        %v1971 = vmul.f32 %v1926, %v1968
        %v1972 = vmul.f32 %v1927, %v1968
        %v1973 = vmul.f32 %v1928, %v1968
        %1979 = vrot.lane.b32.xlu0 %v1969, 126
        %v1980 = vpop.permute.xlu0 %1979
        %1981 = vrot.lane.b32.xlu0 %v1970, 126
        %v1982 = vpop.permute.xlu0 %1981
        %1983 = vrot.lane.b32.xlu0 %v1971, 126
        %v1984 = vpop.permute.xlu0 %1983
        %1985 = vrot.lane.b32.xlu0 %v1972, 126
        %v1986 = vpop.permute.xlu0 %1985
        %1987 = vrot.lane.b32.xlu0 %v1973, 126
        %v1988 = vpop.permute.xlu0 %1987
        %v1994 = vadd.f32 %v1962, %v1980
        %v1995 = vadd.f32 %v1963, %v1982
        %v1996 = vadd.f32 %v1964, %v1984
        %v1997 = vadd.f32 %v1965, %v1986
        %v1998 = vadd.f32 %v1966, %v1988
        %v1999 = vadd.f32 %v1918, %v1994
        %v2000 = vadd.f32 %v1919, %v1995
        %v2001 = vadd.f32 %v1920, %v1996
        %v2002 = vadd.f32 %v1921, %v1997
        %v2003 = vadd.f32 %v1922, %v1998
        %s2004 = sld [smem:[#allocation9 + $0x1f]]
        %v2005 = vstv %s2004
        %v2006 = vmul.f32 %v1848, %v2005
        %v2007 = vmul.f32 %v1849, %v2005
        %v2008 = vmul.f32 %v1850, %v2005
        %v2009 = vmul.f32 %v1851, %v2005
        %v2010 = vmul.f32 %v1852, %v2005
        %s2011 = sld [smem:[#allocation9 + $0x21]]
        %v2012 = vstv %s2011
        %v2013 = vmul.f32 %v1848, %v2012
        %v2014 = vmul.f32 %v1849, %v2012
        %v2015 = vmul.f32 %v1850, %v2012
        %v2016 = vmul.f32 %v1851, %v2012
        %v2017 = vmul.f32 %v1852, %v2012
        %2023 = vrot.lane.b32.xlu0 %v2013, 127
        %v2024 = vpop.permute.xlu0 %2023
        %2025 = vrot.lane.b32.xlu0 %v2014, 127
        %v2026 = vpop.permute.xlu0 %2025
        %2027 = vrot.lane.b32.xlu0 %v2015, 127
        %v2028 = vpop.permute.xlu0 %2027
        %2029 = vrot.lane.b32.xlu0 %v2016, 127
        %v2030 = vpop.permute.xlu0 %2029
        %2031 = vrot.lane.b32.xlu0 %v2017, 127
        %v2032 = vpop.permute.xlu0 %2031
        %v2038 = vadd.f32 %v2006, %v2024
        %v2039 = vadd.f32 %v2007, %v2026
        %v2040 = vadd.f32 %v2008, %v2028
        %v2041 = vadd.f32 %v2009, %v2030
        %v2042 = vadd.f32 %v2010, %v2032
        %s2043 = sld [smem:[#allocation9 + $0x29]]
        %v2044 = vstv %s2043
        %v2045 = vmul.f32 %v1924, %v2044
        %v2046 = vmul.f32 %v1925, %v2044
        %v2047 = vmul.f32 %v1926, %v2044
        %v2048 = vmul.f32 %v1927, %v2044
        %v2049 = vmul.f32 %v1928, %v2044
        %s2050 = sld [smem:[#allocation9 + $0x2b]]
        %v2051 = vstv %s2050
        %v2052 = vmul.f32 %v1924, %v2051
        %v2053 = vmul.f32 %v1925, %v2051
        %v2054 = vmul.f32 %v1926, %v2051
        %v2055 = vmul.f32 %v1927, %v2051
        %v2056 = vmul.f32 %v1928, %v2051
        %2062 = vrot.lane.b32.xlu0 %v2052, 127
        %v2063 = vpop.permute.xlu0 %2062
        %2064 = vrot.lane.b32.xlu0 %v2053, 127
        %v2065 = vpop.permute.xlu0 %2064
        %2066 = vrot.lane.b32.xlu0 %v2054, 127
        %v2067 = vpop.permute.xlu0 %2066
        %2068 = vrot.lane.b32.xlu0 %v2055, 127
        %v2069 = vpop.permute.xlu0 %2068
        %2070 = vrot.lane.b32.xlu0 %v2056, 127
        %v2071 = vpop.permute.xlu0 %2070
        %v2077 = vadd.f32 %v2045, %v2063
        %v2078 = vadd.f32 %v2046, %v2065
        %v2079 = vadd.f32 %v2047, %v2067
        %v2080 = vadd.f32 %v2048, %v2069
        %v2081 = vadd.f32 %v2049, %v2071
        %v2082 = vadd.f32 %v2038, %v2077
        %v2083 = vadd.f32 %v2039, %v2078
        %v2084 = vadd.f32 %v2040, %v2079
        %v2085 = vadd.f32 %v2041, %v2080
        %v2086 = vadd.f32 %v2042, %v2081
        %s2087 = sld [smem:[#allocation9 + $0x19]]
        %v2088 = vld [vmem:[#allocation3] sm:$0xff]
        %v2089 = vld [vmem:[#allocation3 + $0x8] sm:$0xff]
        %v2090 = vld [vmem:[#allocation3 + $0x10] sm:$0xff]
        %v2091 = vld [vmem:[#allocation3 + $0x18] sm:$0xff]
        %v2092 = vld [vmem:[#allocation3 + $0x20] sm:$0x7f]
        %v2093 = vstv %s2087
        %v2094 = vmul.f32 %v2088, %v2093
        %v2095 = vmul.f32 %v2089, %v2093
        %v2096 = vmul.f32 %v2090, %v2093
        %v2097 = vmul.f32 %v2091, %v2093
        %v2098 = vmul.f32 %v2092, %v2093
        %s2099 = sld [smem:[#allocation9 + $0x1b]]
        %v2100 = vstv %s2099
        %v2101 = vmul.f32 %v2088, %v2100
        %v2102 = vmul.f32 %v2089, %v2100
        %v2103 = vmul.f32 %v2090, %v2100
        %v2104 = vmul.f32 %v2091, %v2100
        %v2105 = vmul.f32 %v2092, %v2100
        %2111 = vrot.lane.b32.xlu0 %v2101, 127
        %v2112 = vpop.permute.xlu0 %2111
        %2113 = vrot.lane.b32.xlu0 %v2102, 127
        %v2114 = vpop.permute.xlu0 %2113
        %2115 = vrot.lane.b32.xlu0 %v2103, 127
        %v2116 = vpop.permute.xlu0 %2115
        %2117 = vrot.lane.b32.xlu0 %v2104, 127
        %v2118 = vpop.permute.xlu0 %2117
        %2119 = vrot.lane.b32.xlu0 %v2105, 127
        %v2120 = vpop.permute.xlu0 %2119
        %v2126 = vadd.f32 %v2094, %v2112
        %v2127 = vadd.f32 %v2095, %v2114
        %v2128 = vadd.f32 %v2096, %v2116
        %v2129 = vadd.f32 %v2097, %v2118
        %v2130 = vadd.f32 %v2098, %v2120
        %s2131 = sld [smem:[#allocation9 + $0x1d]]
        %v2132 = vstv %s2131
        %v2133 = vmul.f32 %v2088, %v2132
        %v2134 = vmul.f32 %v2089, %v2132
        %v2135 = vmul.f32 %v2090, %v2132
        %v2136 = vmul.f32 %v2091, %v2132
        %v2137 = vmul.f32 %v2092, %v2132
        %2143 = vrot.lane.b32.xlu0 %v2133, 126
        %v2144 = vpop.permute.xlu0 %2143
        %2145 = vrot.lane.b32.xlu0 %v2134, 126
        %v2146 = vpop.permute.xlu0 %2145
        %2147 = vrot.lane.b32.xlu0 %v2135, 126
        %v2148 = vpop.permute.xlu0 %2147
        %2149 = vrot.lane.b32.xlu0 %v2136, 126
        %v2150 = vpop.permute.xlu0 %2149
        %2151 = vrot.lane.b32.xlu0 %v2137, 126
        %v2152 = vpop.permute.xlu0 %2151
        %v2158 = vadd.f32 %v2126, %v2144
        %v2159 = vadd.f32 %v2127, %v2146
        %v2160 = vadd.f32 %v2128, %v2148
        %v2161 = vadd.f32 %v2129, %v2150
        %v2162 = vadd.f32 %v2130, %v2152
        %s2163 = sld [smem:[#allocation9 + $0x23]]
        %v2164 = vld [vmem:[#allocation3 + $0x1] sm:$0xff]
        %v2165 = vld [vmem:[#allocation3 + $0x9] sm:$0xff]
        %v2166 = vld [vmem:[#allocation3 + $0x11] sm:$0xff]
        %v2167 = vld [vmem:[#allocation3 + $0x19] sm:$0xff]
        %v2168 = vld [vmem:[#allocation3 + $0x21] sm:$0x7f]
        %v2169 = vstv %s2163
        %v2170 = vmul.f32 %v2164, %v2169
        %v2171 = vmul.f32 %v2165, %v2169
        %v2172 = vmul.f32 %v2166, %v2169
        %v2173 = vmul.f32 %v2167, %v2169
        %v2174 = vmul.f32 %v2168, %v2169
        %s2175 = sld [smem:[#allocation9 + $0x25]]
        %v2176 = vstv %s2175
        %v2177 = vmul.f32 %v2164, %v2176
        %v2178 = vmul.f32 %v2165, %v2176
        %v2179 = vmul.f32 %v2166, %v2176
        %v2180 = vmul.f32 %v2167, %v2176
        %v2181 = vmul.f32 %v2168, %v2176
        %2187 = vrot.lane.b32.xlu0 %v2177, 127
        %v2188 = vpop.permute.xlu0 %2187
        %2189 = vrot.lane.b32.xlu0 %v2178, 127
        %v2190 = vpop.permute.xlu0 %2189
        %2191 = vrot.lane.b32.xlu0 %v2179, 127
        %v2192 = vpop.permute.xlu0 %2191
        %2193 = vrot.lane.b32.xlu0 %v2180, 127
        %v2194 = vpop.permute.xlu0 %2193
        %2195 = vrot.lane.b32.xlu0 %v2181, 127
        %v2196 = vpop.permute.xlu0 %2195
        %v2202 = vadd.f32 %v2170, %v2188
        %v2203 = vadd.f32 %v2171, %v2190
        %v2204 = vadd.f32 %v2172, %v2192
        %v2205 = vadd.f32 %v2173, %v2194
        %v2206 = vadd.f32 %v2174, %v2196
        %s2207 = sld [smem:[#allocation9 + $0x27]]
        %v2208 = vstv %s2207
        %v2209 = vmul.f32 %v2164, %v2208
        %v2210 = vmul.f32 %v2165, %v2208
        %v2211 = vmul.f32 %v2166, %v2208
        %v2212 = vmul.f32 %v2167, %v2208
        %v2213 = vmul.f32 %v2168, %v2208
        %2219 = vrot.lane.b32.xlu0 %v2209, 126
        %v2220 = vpop.permute.xlu0 %2219
        %2221 = vrot.lane.b32.xlu0 %v2210, 126
        %v2222 = vpop.permute.xlu0 %2221
        %2223 = vrot.lane.b32.xlu0 %v2211, 126
        %v2224 = vpop.permute.xlu0 %2223
        %2225 = vrot.lane.b32.xlu0 %v2212, 126
        %v2226 = vpop.permute.xlu0 %2225
        %2227 = vrot.lane.b32.xlu0 %v2213, 126
        %v2228 = vpop.permute.xlu0 %2227
        %v2234 = vadd.f32 %v2202, %v2220
        %v2235 = vadd.f32 %v2203, %v2222
        %v2236 = vadd.f32 %v2204, %v2224
        %v2237 = vadd.f32 %v2205, %v2226
        %v2238 = vadd.f32 %v2206, %v2228
        %s2239 = sld [smem:[#allocation9 + $0x2d]]
        %v2240 = vld [vmem:[#allocation3 + $0x2] sm:$0xff]
        %v2241 = vld [vmem:[#allocation3 + $0xa] sm:$0xff]
        %v2242 = vld [vmem:[#allocation3 + $0x12] sm:$0xff]
        %v2243 = vld [vmem:[#allocation3 + $0x1a] sm:$0xff]
        %v2244 = vld [vmem:[#allocation3 + $0x22] sm:$0x7f]
        %v2245 = vstv %s2239
        %v2246 = vmul.f32 %v2240, %v2245
        %v2247 = vmul.f32 %v2241, %v2245
        %v2248 = vmul.f32 %v2242, %v2245
        %v2249 = vmul.f32 %v2243, %v2245
        %v2250 = vmul.f32 %v2244, %v2245
        %s2251 = sld [smem:[#allocation9 + $0x2f]]
        %v2252 = vstv %s2251
        %v2253 = vmul.f32 %v2240, %v2252
        %v2254 = vmul.f32 %v2241, %v2252
        %v2255 = vmul.f32 %v2242, %v2252
        %v2256 = vmul.f32 %v2243, %v2252
        %v2257 = vmul.f32 %v2244, %v2252
        %2263 = vrot.lane.b32.xlu0 %v2253, 127
        %v2264 = vpop.permute.xlu0 %2263
        %2265 = vrot.lane.b32.xlu0 %v2254, 127
        %v2266 = vpop.permute.xlu0 %2265
        %2267 = vrot.lane.b32.xlu0 %v2255, 127
        %v2268 = vpop.permute.xlu0 %2267
        %2269 = vrot.lane.b32.xlu0 %v2256, 127
        %v2270 = vpop.permute.xlu0 %2269
        %2271 = vrot.lane.b32.xlu0 %v2257, 127
        %v2272 = vpop.permute.xlu0 %2271
        %v2278 = vadd.f32 %v2246, %v2264
        %v2279 = vadd.f32 %v2247, %v2266
        %v2280 = vadd.f32 %v2248, %v2268
        %v2281 = vadd.f32 %v2249, %v2270
        %v2282 = vadd.f32 %v2250, %v2272
        %s2283 = sld [smem:[#allocation9 + $0x31]]
        %v2284 = vstv %s2283
        %v2285 = vmul.f32 %v2240, %v2284
        %v2286 = vmul.f32 %v2241, %v2284
        %v2287 = vmul.f32 %v2242, %v2284
        %v2288 = vmul.f32 %v2243, %v2284
        %v2289 = vmul.f32 %v2244, %v2284
        %2295 = vrot.lane.b32.xlu0 %v2285, 126
        %v2296 = vpop.permute.xlu0 %2295
        %2297 = vrot.lane.b32.xlu0 %v2286, 126
        %v2298 = vpop.permute.xlu0 %2297
        %2299 = vrot.lane.b32.xlu0 %v2287, 126
        %v2300 = vpop.permute.xlu0 %2299
        %2301 = vrot.lane.b32.xlu0 %v2288, 126
        %v2302 = vpop.permute.xlu0 %2301
        %2303 = vrot.lane.b32.xlu0 %v2289, 126
        %v2304 = vpop.permute.xlu0 %2303
        %v2310 = vadd.f32 %v2278, %v2296
        %v2311 = vadd.f32 %v2279, %v2298
        %v2312 = vadd.f32 %v2280, %v2300
        %v2313 = vadd.f32 %v2281, %v2302
        %v2314 = vadd.f32 %v2282, %v2304
        %v2315 = vadd.f32 %v2158, %v2234
        %v2316 = vadd.f32 %v2159, %v2235
        %v2317 = vadd.f32 %v2160, %v2236
        %v2318 = vadd.f32 %v2161, %v2237
        %v2319 = vadd.f32 %v2162, %v2238
        %v2320 = vadd.f32 %v2315, %v2310
        %v2321 = vadd.f32 %v2316, %v2311
        %v2322 = vadd.f32 %v2317, %v2312
        %v2323 = vadd.f32 %v2318, %v2313
        %v2324 = vadd.f32 %v2319, %v2314
        %s2325 = sld [smem:[#allocation9 + $0x1a]]
        %v2326 = vstv %s2325
        %v2327 = vmul.f32 %v2088, %v2326
        %v2328 = vmul.f32 %v2089, %v2326
        %v2329 = vmul.f32 %v2090, %v2326
        %v2330 = vmul.f32 %v2091, %v2326
        %v2331 = vmul.f32 %v2092, %v2326
        %s2332 = sld [smem:[#allocation9 + $0x1c]]
        %v2333 = vstv %s2332
        %v2334 = vmul.f32 %v2088, %v2333
        %v2335 = vmul.f32 %v2089, %v2333
        %v2336 = vmul.f32 %v2090, %v2333
        %v2337 = vmul.f32 %v2091, %v2333
        %v2338 = vmul.f32 %v2092, %v2333
        %2344 = vrot.lane.b32.xlu0 %v2334, 127
        %v2345 = vpop.permute.xlu0 %2344
        %2346 = vrot.lane.b32.xlu0 %v2335, 127
        %v2347 = vpop.permute.xlu0 %2346
        %2348 = vrot.lane.b32.xlu0 %v2336, 127
        %v2349 = vpop.permute.xlu0 %2348
        %2350 = vrot.lane.b32.xlu0 %v2337, 127
        %v2351 = vpop.permute.xlu0 %2350
        %2352 = vrot.lane.b32.xlu0 %v2338, 127
        %v2353 = vpop.permute.xlu0 %2352
        %v2359 = vadd.f32 %v2327, %v2345
        %v2360 = vadd.f32 %v2328, %v2347
        %v2361 = vadd.f32 %v2329, %v2349
        %v2362 = vadd.f32 %v2330, %v2351
        %v2363 = vadd.f32 %v2331, %v2353
        %s2364 = sld [smem:[#allocation9 + $0x24]]
        %v2365 = vstv %s2364
        %v2366 = vmul.f32 %v2164, %v2365
        %v2367 = vmul.f32 %v2165, %v2365
        %v2368 = vmul.f32 %v2166, %v2365
        %v2369 = vmul.f32 %v2167, %v2365
        %v2370 = vmul.f32 %v2168, %v2365
        %s2371 = sld [smem:[#allocation9 + $0x26]]
        %v2372 = vstv %s2371
        %v2373 = vmul.f32 %v2164, %v2372
        %v2374 = vmul.f32 %v2165, %v2372
        %v2375 = vmul.f32 %v2166, %v2372
        %v2376 = vmul.f32 %v2167, %v2372
        %v2377 = vmul.f32 %v2168, %v2372
        %2383 = vrot.lane.b32.xlu0 %v2373, 127
        %v2384 = vpop.permute.xlu0 %2383
        %2385 = vrot.lane.b32.xlu0 %v2374, 127
        %v2386 = vpop.permute.xlu0 %2385
        %2387 = vrot.lane.b32.xlu0 %v2375, 127
        %v2388 = vpop.permute.xlu0 %2387
        %2389 = vrot.lane.b32.xlu0 %v2376, 127
        %v2390 = vpop.permute.xlu0 %2389
        %2391 = vrot.lane.b32.xlu0 %v2377, 127
        %v2392 = vpop.permute.xlu0 %2391
        %v2398 = vadd.f32 %v2366, %v2384
        %v2399 = vadd.f32 %v2367, %v2386
        %v2400 = vadd.f32 %v2368, %v2388
        %v2401 = vadd.f32 %v2369, %v2390
        %v2402 = vadd.f32 %v2370, %v2392
        %s2403 = sld [smem:[#allocation9 + $0x2e]]
        %v2404 = vstv %s2403
        %v2405 = vmul.f32 %v2240, %v2404
        %v2406 = vmul.f32 %v2241, %v2404
        %v2407 = vmul.f32 %v2242, %v2404
        %v2408 = vmul.f32 %v2243, %v2404
        %v2409 = vmul.f32 %v2244, %v2404
        %s2410 = sld [smem:[#allocation9 + $0x30]]
        %v2411 = vstv %s2410
        %v2412 = vmul.f32 %v2240, %v2411
        %v2413 = vmul.f32 %v2241, %v2411
        %v2414 = vmul.f32 %v2242, %v2411
        %v2415 = vmul.f32 %v2243, %v2411
        %v2416 = vmul.f32 %v2244, %v2411
        %2422 = vrot.lane.b32.xlu0 %v2412, 127
        %v2423 = vpop.permute.xlu0 %2422
        %2424 = vrot.lane.b32.xlu0 %v2413, 127
        %v2425 = vpop.permute.xlu0 %2424
        %2426 = vrot.lane.b32.xlu0 %v2414, 127
        %v2427 = vpop.permute.xlu0 %2426
        %2428 = vrot.lane.b32.xlu0 %v2415, 127
        %v2429 = vpop.permute.xlu0 %2428
        %2430 = vrot.lane.b32.xlu0 %v2416, 127
        %v2431 = vpop.permute.xlu0 %2430
        %v2437 = vadd.f32 %v2405, %v2423
        %v2438 = vadd.f32 %v2406, %v2425
        %v2439 = vadd.f32 %v2407, %v2427
        %v2440 = vadd.f32 %v2408, %v2429
        %v2441 = vadd.f32 %v2409, %v2431
        %v2442 = vadd.f32 %v2359, %v2398
        %v2443 = vadd.f32 %v2360, %v2399
        %v2444 = vadd.f32 %v2361, %v2400
        %v2445 = vadd.f32 %v2362, %v2401
        %v2446 = vadd.f32 %v2363, %v2402
        %v2447 = vadd.f32 %v2442, %v2437
        %v2448 = vadd.f32 %v2443, %v2438
        %v2449 = vadd.f32 %v2444, %v2439
        %v2450 = vadd.f32 %v2445, %v2440
        %v2451 = vadd.f32 %v2446, %v2441
        %2457 = vrot.lane.b32.xlu0 %v1999, 127
        %v2458 = vpop.permute.xlu0 %2457
        %2459 = vrot.lane.b32.xlu0 %v2000, 127
        %v2460 = vpop.permute.xlu0 %2459
        %2461 = vrot.lane.b32.xlu0 %v2001, 127
        %v2462 = vpop.permute.xlu0 %2461
        %2463 = vrot.lane.b32.xlu0 %v2002, 127
        %v2464 = vpop.permute.xlu0 %2463
        %2465 = vrot.lane.b32.xlu0 %v2003, 127
        %v2466 = vpop.permute.xlu0 %2465
        %v2472 = vmax.f32 %v1999, %v2458
        %v2473 = vmax.f32 %v2000, %v2460
        %v2474 = vmax.f32 %v2001, %v2462
        %v2475 = vmax.f32 %v2002, %v2464
        %v2476 = vmax.f32 %v2003, %v2466
        %v2482 = vrot.slane %v2472, 1
        %v2483 = vrot.slane %v2473, 1
        %v2484 = vsel %vm1611, %v2482, %v2483
        %v2485 = vrot.slane %v2474, 1
        %v2486 = vsel %vm1611, %v2483, %v2485
        %v2487 = vrot.slane %v2475, 1
        %v2488 = vsel %vm1611, %v2485, %v2487
        %v2489 = vrot.slane %v2476, 1
        %v2490 = vsel %vm1611, %v2487, %v2489
        %v2496 = vmax.f32 %v2472, %v2484
        %v2497 = vmax.f32 %v2473, %v2486
        %v2498 = vmax.f32 %v2474, %v2488
        %v2499 = vmax.f32 %v2475, %v2490
        %v2500 = vmax.f32 %v2476, %v2489
        %2506 = vrot.lane.b32.xlu0 %v2082, 127
        %v2507 = vpop.permute.xlu0 %2506
        %2508 = vrot.lane.b32.xlu0 %v2083, 127
        %v2509 = vpop.permute.xlu0 %2508
        %2510 = vrot.lane.b32.xlu0 %v2084, 127
        %v2511 = vpop.permute.xlu0 %2510
        %2512 = vrot.lane.b32.xlu0 %v2085, 127
        %v2513 = vpop.permute.xlu0 %2512
        %2514 = vrot.lane.b32.xlu0 %v2086, 127
        %v2515 = vpop.permute.xlu0 %2514
        %v2521 = vmax.f32 %v2082, %v2507
        %v2522 = vmax.f32 %v2083, %v2509
        %v2523 = vmax.f32 %v2084, %v2511
        %v2524 = vmax.f32 %v2085, %v2513
        %v2525 = vmax.f32 %v2086, %v2515
        %v2531 = vrot.slane %v2521, 1
        %v2532 = vrot.slane %v2522, 1
        %v2533 = vsel %vm1611, %v2531, %v2532
        %v2534 = vrot.slane %v2523, 1
        %v2535 = vsel %vm1611, %v2532, %v2534
        %v2536 = vrot.slane %v2524, 1
        %v2537 = vsel %vm1611, %v2534, %v2536
        %v2538 = vrot.slane %v2525, 1
        %v2539 = vsel %vm1611, %v2536, %v2538
        %v2545 = vmax.f32 %v2521, %v2533
        %v2546 = vmax.f32 %v2522, %v2535
        %v2547 = vmax.f32 %v2523, %v2537
        %v2548 = vmax.f32 %v2524, %v2539
        %v2549 = vmax.f32 %v2525, %v2538
        %2555 = vrot.lane.b32.xlu0 %v2545, 127
        %v2556 = vpop.permute.xlu0 %2555
        %2557 = vrot.lane.b32.xlu0 %v2546, 127
        %v2558 = vpop.permute.xlu0 %2557
        %2559 = vrot.lane.b32.xlu0 %v2547, 127
        %v2560 = vpop.permute.xlu0 %2559
        %2561 = vrot.lane.b32.xlu0 %v2548, 127
        %v2562 = vpop.permute.xlu0 %2561
        %2563 = vrot.lane.b32.xlu0 %v2549, 127
        %v2564 = vpop.permute.xlu0 %2563
        %v2570 = vmax.f32 %v2496, %v2556
        %v2571 = vmax.f32 %v2497, %v2558
        %v2572 = vmax.f32 %v2498, %v2560
        %v2573 = vmax.f32 %v2499, %v2562
        %v2574 = vmax.f32 %v2500, %v2564
        %2580 = vrot.lane.b32.xlu0 %v2320, 127
        %v2581 = vpop.permute.xlu0 %2580
        %2582 = vrot.lane.b32.xlu0 %v2321, 127
        %v2583 = vpop.permute.xlu0 %2582
        %2584 = vrot.lane.b32.xlu0 %v2322, 127
        %v2585 = vpop.permute.xlu0 %2584
        %2586 = vrot.lane.b32.xlu0 %v2323, 127
        %v2587 = vpop.permute.xlu0 %2586
        %2588 = vrot.lane.b32.xlu0 %v2324, 127
        %v2589 = vpop.permute.xlu0 %2588
        %v2595 = vmax.f32 %v2320, %v2581
        %v2596 = vmax.f32 %v2321, %v2583
        %v2597 = vmax.f32 %v2322, %v2585
        %v2598 = vmax.f32 %v2323, %v2587
        %v2599 = vmax.f32 %v2324, %v2589
        %v2605 = vrot.slane %v2595, 1
        %v2606 = vrot.slane %v2596, 1
        %v2607 = vsel %vm1611, %v2605, %v2606
        %v2608 = vrot.slane %v2597, 1
        %v2609 = vsel %vm1611, %v2606, %v2608
        %v2610 = vrot.slane %v2598, 1
        %v2611 = vsel %vm1611, %v2608, %v2610
        %v2612 = vrot.slane %v2599, 1
        %v2613 = vsel %vm1611, %v2610, %v2612
        %v2619 = vmax.f32 %v2595, %v2607
        %v2620 = vmax.f32 %v2596, %v2609
        %v2621 = vmax.f32 %v2597, %v2611
        %v2622 = vmax.f32 %v2598, %v2613
        %v2623 = vmax.f32 %v2599, %v2612
        %2629 = vrot.lane.b32.xlu0 %v2447, 127
        %v2630 = vpop.permute.xlu0 %2629
        %2631 = vrot.lane.b32.xlu0 %v2448, 127
        %v2632 = vpop.permute.xlu0 %2631
        %2633 = vrot.lane.b32.xlu0 %v2449, 127
        %v2634 = vpop.permute.xlu0 %2633
        %2635 = vrot.lane.b32.xlu0 %v2450, 127
        %v2636 = vpop.permute.xlu0 %2635
        %2637 = vrot.lane.b32.xlu0 %v2451, 127
        %v2638 = vpop.permute.xlu0 %2637
        %v2644 = vmax.f32 %v2447, %v2630
        %v2645 = vmax.f32 %v2448, %v2632
        %v2646 = vmax.f32 %v2449, %v2634
        %v2647 = vmax.f32 %v2450, %v2636
        %v2648 = vmax.f32 %v2451, %v2638
        %v2654 = vrot.slane %v2644, 1
        %v2655 = vrot.slane %v2645, 1
        %v2656 = vsel %vm1611, %v2654, %v2655
        %v2657 = vrot.slane %v2646, 1
        %v2658 = vsel %vm1611, %v2655, %v2657
        %v2659 = vrot.slane %v2647, 1
        %v2660 = vsel %vm1611, %v2657, %v2659
        %v2661 = vrot.slane %v2648, 1
        %v2662 = vsel %vm1611, %v2659, %v2661
        %v2668 = vmax.f32 %v2644, %v2656
        %v2669 = vmax.f32 %v2645, %v2658
        %v2670 = vmax.f32 %v2646, %v2660
        %v2671 = vmax.f32 %v2647, %v2662
        %v2672 = vmax.f32 %v2648, %v2661
        %2678 = vrot.lane.b32.xlu0 %v2668, 127
        %v2679 = vpop.permute.xlu0 %2678
        %2680 = vrot.lane.b32.xlu0 %v2669, 127
        %v2681 = vpop.permute.xlu0 %2680
        %2682 = vrot.lane.b32.xlu0 %v2670, 127
        %v2683 = vpop.permute.xlu0 %2682
        %2684 = vrot.lane.b32.xlu0 %v2671, 127
        %v2685 = vpop.permute.xlu0 %2684
        %2686 = vrot.lane.b32.xlu0 %v2672, 127
        %v2687 = vpop.permute.xlu0 %2686
        %v2693 = vmax.f32 %v2619, %v2679
        %v2694 = vmax.f32 %v2620, %v2681
        %v2695 = vmax.f32 %v2621, %v2683
        %v2696 = vmax.f32 %v2622, %v2685
        %v2697 = vmax.f32 %v2623, %v2687
        %v2698 = vmax.f32 %v2570, %v2693
        %v2699 = vmax.f32 %v2571, %v2694
        %v2700 = vmax.f32 %v2572, %v2695
        %v2701 = vmax.f32 %v2573, %v2696
        %v2702 = vmax.f32 %v2574, %v2697
        %s2703 = sld [smem:[#allocation11 + $0x1]]
        %v2704 = vstv %s2703
        %v2705 = vadd.f32 %v2698, %v2704
        %v2706 = vadd.f32 %v2699, %v2704
        %v2707 = vadd.f32 %v2700, %v2704
        %v2708 = vadd.f32 %v2701, %v2704
        %v2709 = vadd.f32 %v2702, %v2704
        %s2710 = scalar_lea.vmem %s284, 40
        %2711 = vst.msk [vmem:[%s2710] sm:$0xff] %vm1840, %v2705
        %2712 = vst.msk [vmem:[%s2710 + $0x8] sm:$0xff] %vm1840, %v2706
        %2713 = vst.msk [vmem:[%s2710 + $0x10] sm:$0xff] %vm1840, %v2707
        %2714 = vst.msk [vmem:[%s2710 + $0x18] sm:$0xff] %vm1840, %v2708
        %2715 = vst.msk [vmem:[%s2710 + $0x20] sm:$0x3f] %vm1845, %v2709
        %s2716 = sld [smem:[#allocation9 + $0x37]]
        %v2717 = vld [vmem:[#allocation3] sm:$0xff]
        %v2718 = vld [vmem:[#allocation3 + $0x8] sm:$0xff]
        %v2719 = vld [vmem:[#allocation3 + $0x10] sm:$0xff]
        %v2720 = vld [vmem:[#allocation3 + $0x18] sm:$0xff]
        %v2721 = vld [vmem:[#allocation3 + $0x20] sm:$0xff]
        %v2722 = vstv %s2716
        %v2723 = vmul.f32 %v2717, %v2722
        %v2724 = vmul.f32 %v2718, %v2722
        %v2725 = vmul.f32 %v2719, %v2722
        %v2726 = vmul.f32 %v2720, %v2722
        %v2727 = vmul.f32 %v2721, %v2722
        %s2728 = sld [smem:[#allocation9 + $0x39]]
        %v2729 = vstv %s2728
        %v2730 = vmul.f32 %v2717, %v2729
        %v2731 = vmul.f32 %v2718, %v2729
        %v2732 = vmul.f32 %v2719, %v2729
        %v2733 = vmul.f32 %v2720, %v2729
        %v2734 = vmul.f32 %v2721, %v2729
        %2740 = vrot.lane.b32.xlu0 %v2730, 127
        %v2741 = vpop.permute.xlu0 %2740
        %2742 = vrot.lane.b32.xlu0 %v2731, 127
        %v2743 = vpop.permute.xlu0 %2742
        %2744 = vrot.lane.b32.xlu0 %v2732, 127
        %v2745 = vpop.permute.xlu0 %2744
        %2746 = vrot.lane.b32.xlu0 %v2733, 127
        %v2747 = vpop.permute.xlu0 %2746
        %2748 = vrot.lane.b32.xlu0 %v2734, 127
        %v2749 = vpop.permute.xlu0 %2748
        %v2755 = vadd.f32 %v2723, %v2741
        %v2756 = vadd.f32 %v2724, %v2743
        %v2757 = vadd.f32 %v2725, %v2745
        %v2758 = vadd.f32 %v2726, %v2747
        %v2759 = vadd.f32 %v2727, %v2749
        %s2760 = sld [smem:[#allocation9 + $0x3b]]
        %v2761 = vstv %s2760
        %v2762 = vmul.f32 %v2717, %v2761
        %v2763 = vmul.f32 %v2718, %v2761
        %v2764 = vmul.f32 %v2719, %v2761
        %v2765 = vmul.f32 %v2720, %v2761
        %v2766 = vmul.f32 %v2721, %v2761
        %2772 = vrot.lane.b32.xlu0 %v2762, 126
        %v2773 = vpop.permute.xlu0 %2772
        %2774 = vrot.lane.b32.xlu0 %v2763, 126
        %v2775 = vpop.permute.xlu0 %2774
        %2776 = vrot.lane.b32.xlu0 %v2764, 126
        %v2777 = vpop.permute.xlu0 %2776
        %2778 = vrot.lane.b32.xlu0 %v2765, 126
        %v2779 = vpop.permute.xlu0 %2778
        %2780 = vrot.lane.b32.xlu0 %v2766, 126
        %v2781 = vpop.permute.xlu0 %2780
        %v2787 = vadd.f32 %v2755, %v2773
        %v2788 = vadd.f32 %v2756, %v2775
        %v2789 = vadd.f32 %v2757, %v2777
        %v2790 = vadd.f32 %v2758, %v2779
        %v2791 = vadd.f32 %v2759, %v2781
        %s2792 = sld [smem:[#allocation9 + $0x41]]
        %v2793 = vld [vmem:[#allocation3 + $0x1] sm:$0xff]
        %v2794 = vld [vmem:[#allocation3 + $0x9] sm:$0xff]
        %v2795 = vld [vmem:[#allocation3 + $0x11] sm:$0xff]
        %v2796 = vld [vmem:[#allocation3 + $0x19] sm:$0xff]
        %v2797 = vld [vmem:[#allocation3 + $0x21] sm:$0xff]
        %v2798 = vstv %s2792
        %v2799 = vmul.f32 %v2793, %v2798
        %v2800 = vmul.f32 %v2794, %v2798
        %v2801 = vmul.f32 %v2795, %v2798
        %v2802 = vmul.f32 %v2796, %v2798
        %v2803 = vmul.f32 %v2797, %v2798
        %s2804 = sld [smem:[#allocation9 + $0x43]]
        %v2805 = vstv %s2804
        %v2806 = vmul.f32 %v2793, %v2805
        %v2807 = vmul.f32 %v2794, %v2805
        %v2808 = vmul.f32 %v2795, %v2805
        %v2809 = vmul.f32 %v2796, %v2805
        %v2810 = vmul.f32 %v2797, %v2805
        %2816 = vrot.lane.b32.xlu0 %v2806, 127
        %v2817 = vpop.permute.xlu0 %2816
        %2818 = vrot.lane.b32.xlu0 %v2807, 127
        %v2819 = vpop.permute.xlu0 %2818
        %2820 = vrot.lane.b32.xlu0 %v2808, 127
        %v2821 = vpop.permute.xlu0 %2820
        %2822 = vrot.lane.b32.xlu0 %v2809, 127
        %v2823 = vpop.permute.xlu0 %2822
        %2824 = vrot.lane.b32.xlu0 %v2810, 127
        %v2825 = vpop.permute.xlu0 %2824
        %v2831 = vadd.f32 %v2799, %v2817
        %v2832 = vadd.f32 %v2800, %v2819
        %v2833 = vadd.f32 %v2801, %v2821
        %v2834 = vadd.f32 %v2802, %v2823
        %v2835 = vadd.f32 %v2803, %v2825
        %s2836 = sld [smem:[#allocation9 + $0x45]]
        %v2837 = vstv %s2836
        %v2838 = vmul.f32 %v2793, %v2837
        %v2839 = vmul.f32 %v2794, %v2837
        %v2840 = vmul.f32 %v2795, %v2837
        %v2841 = vmul.f32 %v2796, %v2837
        %v2842 = vmul.f32 %v2797, %v2837
        %2848 = vrot.lane.b32.xlu0 %v2838, 126
        %v2849 = vpop.permute.xlu0 %2848
        %2850 = vrot.lane.b32.xlu0 %v2839, 126
        %v2851 = vpop.permute.xlu0 %2850
        %2852 = vrot.lane.b32.xlu0 %v2840, 126
        %v2853 = vpop.permute.xlu0 %2852
        %2854 = vrot.lane.b32.xlu0 %v2841, 126
        %v2855 = vpop.permute.xlu0 %2854
        %2856 = vrot.lane.b32.xlu0 %v2842, 126
        %v2857 = vpop.permute.xlu0 %2856
        %v2863 = vadd.f32 %v2831, %v2849
        %v2864 = vadd.f32 %v2832, %v2851
        %v2865 = vadd.f32 %v2833, %v2853
        %v2866 = vadd.f32 %v2834, %v2855
        %v2867 = vadd.f32 %v2835, %v2857
        %v2868 = vadd.f32 %v2787, %v2863
        %v2869 = vadd.f32 %v2788, %v2864
        %v2870 = vadd.f32 %v2789, %v2865
        %v2871 = vadd.f32 %v2790, %v2866
        %v2872 = vadd.f32 %v2791, %v2867
        %s2873 = sld [smem:[#allocation9 + $0x38]]
        %v2874 = vstv %s2873
        %v2875 = vmul.f32 %v2717, %v2874
        %v2876 = vmul.f32 %v2718, %v2874
        %v2877 = vmul.f32 %v2719, %v2874
        %v2878 = vmul.f32 %v2720, %v2874
        %v2879 = vmul.f32 %v2721, %v2874
        %s2880 = sld [smem:[#allocation9 + $0x3a]]
        %v2881 = vstv %s2880
        %v2882 = vmul.f32 %v2717, %v2881
        %v2883 = vmul.f32 %v2718, %v2881
        %v2884 = vmul.f32 %v2719, %v2881
        %v2885 = vmul.f32 %v2720, %v2881
        %v2886 = vmul.f32 %v2721, %v2881
        %2892 = vrot.lane.b32.xlu0 %v2882, 127
        %v2893 = vpop.permute.xlu0 %2892
        %2894 = vrot.lane.b32.xlu0 %v2883, 127
        %v2895 = vpop.permute.xlu0 %2894
        %2896 = vrot.lane.b32.xlu0 %v2884, 127
        %v2897 = vpop.permute.xlu0 %2896
        %2898 = vrot.lane.b32.xlu0 %v2885, 127
        %v2899 = vpop.permute.xlu0 %2898
        %2900 = vrot.lane.b32.xlu0 %v2886, 127
        %v2901 = vpop.permute.xlu0 %2900
        %v2907 = vadd.f32 %v2875, %v2893
        %v2908 = vadd.f32 %v2876, %v2895
        %v2909 = vadd.f32 %v2877, %v2897
        %v2910 = vadd.f32 %v2878, %v2899
        %v2911 = vadd.f32 %v2879, %v2901
        %s2912 = sld [smem:[#allocation9 + $0x42]]
        %v2913 = vstv %s2912
        %v2914 = vmul.f32 %v2793, %v2913
        %v2915 = vmul.f32 %v2794, %v2913
        %v2916 = vmul.f32 %v2795, %v2913
        %v2917 = vmul.f32 %v2796, %v2913
        %v2918 = vmul.f32 %v2797, %v2913
        %s2919 = sld [smem:[#allocation9 + $0x44]]
        %v2920 = vstv %s2919
        %v2921 = vmul.f32 %v2793, %v2920
        %v2922 = vmul.f32 %v2794, %v2920
        %v2923 = vmul.f32 %v2795, %v2920
        %v2924 = vmul.f32 %v2796, %v2920
        %v2925 = vmul.f32 %v2797, %v2920
        %2931 = vrot.lane.b32.xlu0 %v2921, 127
        %v2932 = vpop.permute.xlu0 %2931
        %2933 = vrot.lane.b32.xlu0 %v2922, 127
        %v2934 = vpop.permute.xlu0 %2933
        %2935 = vrot.lane.b32.xlu0 %v2923, 127
        %v2936 = vpop.permute.xlu0 %2935
        %2937 = vrot.lane.b32.xlu0 %v2924, 127
        %v2938 = vpop.permute.xlu0 %2937
        %2939 = vrot.lane.b32.xlu0 %v2925, 127
        %v2940 = vpop.permute.xlu0 %2939
        %v2946 = vadd.f32 %v2914, %v2932
        %v2947 = vadd.f32 %v2915, %v2934
        %v2948 = vadd.f32 %v2916, %v2936
        %v2949 = vadd.f32 %v2917, %v2938
        %v2950 = vadd.f32 %v2918, %v2940
        %v2951 = vadd.f32 %v2907, %v2946
        %v2952 = vadd.f32 %v2908, %v2947
        %v2953 = vadd.f32 %v2909, %v2948
        %v2954 = vadd.f32 %v2910, %v2949
        %v2955 = vadd.f32 %v2911, %v2950
        %s2956 = sld [smem:[#allocation9 + $0x32]]
        %v2957 = vld [vmem:[#allocation3] sm:$0xff]
        %v2958 = vld [vmem:[#allocation3 + $0x8] sm:$0xff]
        %v2959 = vld [vmem:[#allocation3 + $0x10] sm:$0xff]
        %v2960 = vld [vmem:[#allocation3 + $0x18] sm:$0xff]
        %v2961 = vld [vmem:[#allocation3 + $0x20] sm:$0x7f]
        %v2962 = vstv %s2956
        %v2963 = vmul.f32 %v2957, %v2962
        %v2964 = vmul.f32 %v2958, %v2962
        %v2965 = vmul.f32 %v2959, %v2962
        %v2966 = vmul.f32 %v2960, %v2962
        %v2967 = vmul.f32 %v2961, %v2962
        %s2968 = sld [smem:[#allocation9 + $0x34]]
        %v2969 = vstv %s2968
        %v2970 = vmul.f32 %v2957, %v2969
        %v2971 = vmul.f32 %v2958, %v2969
        %v2972 = vmul.f32 %v2959, %v2969
        %v2973 = vmul.f32 %v2960, %v2969
        %v2974 = vmul.f32 %v2961, %v2969
        %2980 = vrot.lane.b32.xlu0 %v2970, 127
        %v2981 = vpop.permute.xlu0 %2980
        %2982 = vrot.lane.b32.xlu0 %v2971, 127
        %v2983 = vpop.permute.xlu0 %2982
        %2984 = vrot.lane.b32.xlu0 %v2972, 127
        %v2985 = vpop.permute.xlu0 %2984
        %2986 = vrot.lane.b32.xlu0 %v2973, 127
        %v2987 = vpop.permute.xlu0 %2986
        %2988 = vrot.lane.b32.xlu0 %v2974, 127
        %v2989 = vpop.permute.xlu0 %2988
        %v2995 = vadd.f32 %v2963, %v2981
        %v2996 = vadd.f32 %v2964, %v2983
        %v2997 = vadd.f32 %v2965, %v2985
        %v2998 = vadd.f32 %v2966, %v2987
        %v2999 = vadd.f32 %v2967, %v2989
        %s3000 = sld [smem:[#allocation9 + $0x36]]
        %v3001 = vstv %s3000
        %v3002 = vmul.f32 %v2957, %v3001
        %v3003 = vmul.f32 %v2958, %v3001
        %v3004 = vmul.f32 %v2959, %v3001
        %v3005 = vmul.f32 %v2960, %v3001
        %v3006 = vmul.f32 %v2961, %v3001
        %3012 = vrot.lane.b32.xlu0 %v3002, 126
        %v3013 = vpop.permute.xlu0 %3012
        %3014 = vrot.lane.b32.xlu0 %v3003, 126
        %v3015 = vpop.permute.xlu0 %3014
        %3016 = vrot.lane.b32.xlu0 %v3004, 126
        %v3017 = vpop.permute.xlu0 %3016
        %3018 = vrot.lane.b32.xlu0 %v3005, 126
        %v3019 = vpop.permute.xlu0 %3018
        %3020 = vrot.lane.b32.xlu0 %v3006, 126
        %v3021 = vpop.permute.xlu0 %3020
        %v3027 = vadd.f32 %v2995, %v3013
        %v3028 = vadd.f32 %v2996, %v3015
        %v3029 = vadd.f32 %v2997, %v3017
        %v3030 = vadd.f32 %v2998, %v3019
        %v3031 = vadd.f32 %v2999, %v3021
        %s3032 = sld [smem:[#allocation9 + $0x3c]]
        %v3033 = vld [vmem:[#allocation3 + $0x1] sm:$0xff]
        %v3034 = vld [vmem:[#allocation3 + $0x9] sm:$0xff]
        %v3035 = vld [vmem:[#allocation3 + $0x11] sm:$0xff]
        %v3036 = vld [vmem:[#allocation3 + $0x19] sm:$0xff]
        %v3037 = vld [vmem:[#allocation3 + $0x21] sm:$0x7f]
        %v3038 = vstv %s3032
        %v3039 = vmul.f32 %v3033, %v3038
        %v3040 = vmul.f32 %v3034, %v3038
        %v3041 = vmul.f32 %v3035, %v3038
        %v3042 = vmul.f32 %v3036, %v3038
        %v3043 = vmul.f32 %v3037, %v3038
        %s3044 = sld [smem:[#allocation9 + $0x3e]]
        %v3045 = vstv %s3044
        %v3046 = vmul.f32 %v3033, %v3045
        %v3047 = vmul.f32 %v3034, %v3045
        %v3048 = vmul.f32 %v3035, %v3045
        %v3049 = vmul.f32 %v3036, %v3045
        %v3050 = vmul.f32 %v3037, %v3045
        %3056 = vrot.lane.b32.xlu0 %v3046, 127
        %v3057 = vpop.permute.xlu0 %3056
        %3058 = vrot.lane.b32.xlu0 %v3047, 127
        %v3059 = vpop.permute.xlu0 %3058
        %3060 = vrot.lane.b32.xlu0 %v3048, 127
        %v3061 = vpop.permute.xlu0 %3060
        %3062 = vrot.lane.b32.xlu0 %v3049, 127
        %v3063 = vpop.permute.xlu0 %3062
        %3064 = vrot.lane.b32.xlu0 %v3050, 127
        %v3065 = vpop.permute.xlu0 %3064
        %v3071 = vadd.f32 %v3039, %v3057
        %v3072 = vadd.f32 %v3040, %v3059
        %v3073 = vadd.f32 %v3041, %v3061
        %v3074 = vadd.f32 %v3042, %v3063
        %v3075 = vadd.f32 %v3043, %v3065
        %s3076 = sld [smem:[#allocation9 + $0x40]]
        %v3077 = vstv %s3076
        %v3078 = vmul.f32 %v3033, %v3077
        %v3079 = vmul.f32 %v3034, %v3077
        %v3080 = vmul.f32 %v3035, %v3077
        %v3081 = vmul.f32 %v3036, %v3077
        %v3082 = vmul.f32 %v3037, %v3077
        %3088 = vrot.lane.b32.xlu0 %v3078, 126
        %v3089 = vpop.permute.xlu0 %3088
        %3090 = vrot.lane.b32.xlu0 %v3079, 126
        %v3091 = vpop.permute.xlu0 %3090
        %3092 = vrot.lane.b32.xlu0 %v3080, 126
        %v3093 = vpop.permute.xlu0 %3092
        %3094 = vrot.lane.b32.xlu0 %v3081, 126
        %v3095 = vpop.permute.xlu0 %3094
        %3096 = vrot.lane.b32.xlu0 %v3082, 126
        %v3097 = vpop.permute.xlu0 %3096
        %v3103 = vadd.f32 %v3071, %v3089
        %v3104 = vadd.f32 %v3072, %v3091
        %v3105 = vadd.f32 %v3073, %v3093
        %v3106 = vadd.f32 %v3074, %v3095
        %v3107 = vadd.f32 %v3075, %v3097
        %s3108 = sld [smem:[#allocation9 + $0x46]]
        %v3109 = vld [vmem:[#allocation3 + $0x2] sm:$0xff]
        %v3110 = vld [vmem:[#allocation3 + $0xa] sm:$0xff]
        %v3111 = vld [vmem:[#allocation3 + $0x12] sm:$0xff]
        %v3112 = vld [vmem:[#allocation3 + $0x1a] sm:$0xff]
        %v3113 = vld [vmem:[#allocation3 + $0x22] sm:$0x7f]
        %v3114 = vstv %s3108
        %v3115 = vmul.f32 %v3109, %v3114
        %v3116 = vmul.f32 %v3110, %v3114
        %v3117 = vmul.f32 %v3111, %v3114
        %v3118 = vmul.f32 %v3112, %v3114
        %v3119 = vmul.f32 %v3113, %v3114
        %s3120 = sld [smem:[#allocation9 + $0x48]]
        %v3121 = vstv %s3120
        %v3122 = vmul.f32 %v3109, %v3121
        %v3123 = vmul.f32 %v3110, %v3121
        %v3124 = vmul.f32 %v3111, %v3121
        %v3125 = vmul.f32 %v3112, %v3121
        %v3126 = vmul.f32 %v3113, %v3121
        %3132 = vrot.lane.b32.xlu0 %v3122, 127
        %v3133 = vpop.permute.xlu0 %3132
        %3134 = vrot.lane.b32.xlu0 %v3123, 127
        %v3135 = vpop.permute.xlu0 %3134
        %3136 = vrot.lane.b32.xlu0 %v3124, 127
        %v3137 = vpop.permute.xlu0 %3136
        %3138 = vrot.lane.b32.xlu0 %v3125, 127
        %v3139 = vpop.permute.xlu0 %3138
        %3140 = vrot.lane.b32.xlu0 %v3126, 127
        %v3141 = vpop.permute.xlu0 %3140
        %v3147 = vadd.f32 %v3115, %v3133
        %v3148 = vadd.f32 %v3116, %v3135
        %v3149 = vadd.f32 %v3117, %v3137
        %v3150 = vadd.f32 %v3118, %v3139
        %v3151 = vadd.f32 %v3119, %v3141
        %s3152 = sld [smem:[#allocation9 + $0x4a]]
        %v3153 = vstv %s3152
        %v3154 = vmul.f32 %v3109, %v3153
        %v3155 = vmul.f32 %v3110, %v3153
        %v3156 = vmul.f32 %v3111, %v3153
        %v3157 = vmul.f32 %v3112, %v3153
        %v3158 = vmul.f32 %v3113, %v3153
        %3164 = vrot.lane.b32.xlu0 %v3154, 126
        %v3165 = vpop.permute.xlu0 %3164
        %3166 = vrot.lane.b32.xlu0 %v3155, 126
        %v3167 = vpop.permute.xlu0 %3166
        %3168 = vrot.lane.b32.xlu0 %v3156, 126
        %v3169 = vpop.permute.xlu0 %3168
        %3170 = vrot.lane.b32.xlu0 %v3157, 126
        %v3171 = vpop.permute.xlu0 %3170
        %3172 = vrot.lane.b32.xlu0 %v3158, 126
        %v3173 = vpop.permute.xlu0 %3172
        %v3179 = vadd.f32 %v3147, %v3165
        %v3180 = vadd.f32 %v3148, %v3167
        %v3181 = vadd.f32 %v3149, %v3169
        %v3182 = vadd.f32 %v3150, %v3171
        %v3183 = vadd.f32 %v3151, %v3173
        %v3184 = vadd.f32 %v3027, %v3103
        %v3185 = vadd.f32 %v3028, %v3104
        %v3186 = vadd.f32 %v3029, %v3105
        %v3187 = vadd.f32 %v3030, %v3106
        %v3188 = vadd.f32 %v3031, %v3107
        %v3189 = vadd.f32 %v3184, %v3179
        %v3190 = vadd.f32 %v3185, %v3180
        %v3191 = vadd.f32 %v3186, %v3181
        %v3192 = vadd.f32 %v3187, %v3182
        %v3193 = vadd.f32 %v3188, %v3183
        %s3194 = sld [smem:[#allocation9 + $0x33]]
        %v3195 = vstv %s3194
        %v3196 = vmul.f32 %v2957, %v3195
        %v3197 = vmul.f32 %v2958, %v3195
        %v3198 = vmul.f32 %v2959, %v3195
        %v3199 = vmul.f32 %v2960, %v3195
        %v3200 = vmul.f32 %v2961, %v3195
        %s3201 = sld [smem:[#allocation9 + $0x35]]
        %v3202 = vstv %s3201
        %v3203 = vmul.f32 %v2957, %v3202
        %v3204 = vmul.f32 %v2958, %v3202
        %v3205 = vmul.f32 %v2959, %v3202
        %v3206 = vmul.f32 %v2960, %v3202
        %v3207 = vmul.f32 %v2961, %v3202
        %3213 = vrot.lane.b32.xlu0 %v3203, 127
        %v3214 = vpop.permute.xlu0 %3213
        %3215 = vrot.lane.b32.xlu0 %v3204, 127
        %v3216 = vpop.permute.xlu0 %3215
        %3217 = vrot.lane.b32.xlu0 %v3205, 127
        %v3218 = vpop.permute.xlu0 %3217
        %3219 = vrot.lane.b32.xlu0 %v3206, 127
        %v3220 = vpop.permute.xlu0 %3219
        %3221 = vrot.lane.b32.xlu0 %v3207, 127
        %v3222 = vpop.permute.xlu0 %3221
        %v3228 = vadd.f32 %v3196, %v3214
        %v3229 = vadd.f32 %v3197, %v3216
        %v3230 = vadd.f32 %v3198, %v3218
        %v3231 = vadd.f32 %v3199, %v3220
        %v3232 = vadd.f32 %v3200, %v3222
        %s3233 = sld [smem:[#allocation9 + $0x3d]]
        %v3234 = vstv %s3233
        %v3235 = vmul.f32 %v3033, %v3234
        %v3236 = vmul.f32 %v3034, %v3234
        %v3237 = vmul.f32 %v3035, %v3234
        %v3238 = vmul.f32 %v3036, %v3234
        %v3239 = vmul.f32 %v3037, %v3234
        %s3240 = sld [smem:[#allocation9 + $0x3f]]
        %v3241 = vstv %s3240
        %v3242 = vmul.f32 %v3033, %v3241
        %v3243 = vmul.f32 %v3034, %v3241
        %v3244 = vmul.f32 %v3035, %v3241
        %v3245 = vmul.f32 %v3036, %v3241
        %v3246 = vmul.f32 %v3037, %v3241
        %3252 = vrot.lane.b32.xlu0 %v3242, 127
        %v3253 = vpop.permute.xlu0 %3252
        %3254 = vrot.lane.b32.xlu0 %v3243, 127
        %v3255 = vpop.permute.xlu0 %3254
        %3256 = vrot.lane.b32.xlu0 %v3244, 127
        %v3257 = vpop.permute.xlu0 %3256
        %3258 = vrot.lane.b32.xlu0 %v3245, 127
        %v3259 = vpop.permute.xlu0 %3258
        %3260 = vrot.lane.b32.xlu0 %v3246, 127
        %v3261 = vpop.permute.xlu0 %3260
        %v3267 = vadd.f32 %v3235, %v3253
        %v3268 = vadd.f32 %v3236, %v3255
        %v3269 = vadd.f32 %v3237, %v3257
        %v3270 = vadd.f32 %v3238, %v3259
        %v3271 = vadd.f32 %v3239, %v3261
        %s3272 = sld [smem:[#allocation9 + $0x47]]
        %v3273 = vstv %s3272
        %v3274 = vmul.f32 %v3109, %v3273
        %v3275 = vmul.f32 %v3110, %v3273
        %v3276 = vmul.f32 %v3111, %v3273
        %v3277 = vmul.f32 %v3112, %v3273
        %v3278 = vmul.f32 %v3113, %v3273
        %s3279 = sld [smem:[#allocation9 + $0x49]]
        %v3280 = vstv %s3279
        %v3281 = vmul.f32 %v3109, %v3280
        %v3282 = vmul.f32 %v3110, %v3280
        %v3283 = vmul.f32 %v3111, %v3280
        %v3284 = vmul.f32 %v3112, %v3280
        %v3285 = vmul.f32 %v3113, %v3280
        %3291 = vrot.lane.b32.xlu0 %v3281, 127
        %v3292 = vpop.permute.xlu0 %3291
        %3293 = vrot.lane.b32.xlu0 %v3282, 127
        %v3294 = vpop.permute.xlu0 %3293
        %3295 = vrot.lane.b32.xlu0 %v3283, 127
        %v3296 = vpop.permute.xlu0 %3295
        %3297 = vrot.lane.b32.xlu0 %v3284, 127
        %v3298 = vpop.permute.xlu0 %3297
        %3299 = vrot.lane.b32.xlu0 %v3285, 127
        %v3300 = vpop.permute.xlu0 %3299
        %v3306 = vadd.f32 %v3274, %v3292
        %v3307 = vadd.f32 %v3275, %v3294
        %v3308 = vadd.f32 %v3276, %v3296
        %v3309 = vadd.f32 %v3277, %v3298
        %v3310 = vadd.f32 %v3278, %v3300
        %v3311 = vadd.f32 %v3228, %v3267
        %v3312 = vadd.f32 %v3229, %v3268
        %v3313 = vadd.f32 %v3230, %v3269
        %v3314 = vadd.f32 %v3231, %v3270
        %v3315 = vadd.f32 %v3232, %v3271
        %v3316 = vadd.f32 %v3311, %v3306
        %v3317 = vadd.f32 %v3312, %v3307
        %v3318 = vadd.f32 %v3313, %v3308
        %v3319 = vadd.f32 %v3314, %v3309
        %v3320 = vadd.f32 %v3315, %v3310
        %3326 = vrot.lane.b32.xlu0 %v2868, 127
        %v3327 = vpop.permute.xlu0 %3326
        %3328 = vrot.lane.b32.xlu0 %v2869, 127
        %v3329 = vpop.permute.xlu0 %3328
        %3330 = vrot.lane.b32.xlu0 %v2870, 127
        %v3331 = vpop.permute.xlu0 %3330
        %3332 = vrot.lane.b32.xlu0 %v2871, 127
        %v3333 = vpop.permute.xlu0 %3332
        %3334 = vrot.lane.b32.xlu0 %v2872, 127
        %v3335 = vpop.permute.xlu0 %3334
        %v3341 = vmax.f32 %v2868, %v3327
        %v3342 = vmax.f32 %v2869, %v3329
        %v3343 = vmax.f32 %v2870, %v3331
        %v3344 = vmax.f32 %v2871, %v3333
        %v3345 = vmax.f32 %v2872, %v3335
        %v3351 = vrot.slane %v3341, 1
        %v3352 = vrot.slane %v3342, 1
        %v3353 = vsel %vm1611, %v3351, %v3352
        %v3354 = vrot.slane %v3343, 1
        %v3355 = vsel %vm1611, %v3352, %v3354
        %v3356 = vrot.slane %v3344, 1
        %v3357 = vsel %vm1611, %v3354, %v3356
        %v3358 = vrot.slane %v3345, 1
        %v3359 = vsel %vm1611, %v3356, %v3358
        %v3365 = vmax.f32 %v3341, %v3353
        %v3366 = vmax.f32 %v3342, %v3355
        %v3367 = vmax.f32 %v3343, %v3357
        %v3368 = vmax.f32 %v3344, %v3359
        %v3369 = vmax.f32 %v3345, %v3358
        %3375 = vrot.lane.b32.xlu0 %v2951, 127
        %v3376 = vpop.permute.xlu0 %3375
        %3377 = vrot.lane.b32.xlu0 %v2952, 127
        %v3378 = vpop.permute.xlu0 %3377
        %3379 = vrot.lane.b32.xlu0 %v2953, 127
        %v3380 = vpop.permute.xlu0 %3379
        %3381 = vrot.lane.b32.xlu0 %v2954, 127
        %v3382 = vpop.permute.xlu0 %3381
        %3383 = vrot.lane.b32.xlu0 %v2955, 127
        %v3384 = vpop.permute.xlu0 %3383
        %v3390 = vmax.f32 %v2951, %v3376
        %v3391 = vmax.f32 %v2952, %v3378
        %v3392 = vmax.f32 %v2953, %v3380
        %v3393 = vmax.f32 %v2954, %v3382
        %v3394 = vmax.f32 %v2955, %v3384
        %v3400 = vrot.slane %v3390, 1
        %v3401 = vrot.slane %v3391, 1
        %v3402 = vsel %vm1611, %v3400, %v3401
        %v3403 = vrot.slane %v3392, 1
        %v3404 = vsel %vm1611, %v3401, %v3403
        %v3405 = vrot.slane %v3393, 1
        %v3406 = vsel %vm1611, %v3403, %v3405
        %v3407 = vrot.slane %v3394, 1
        %v3408 = vsel %vm1611, %v3405, %v3407
        %v3414 = vmax.f32 %v3390, %v3402
        %v3415 = vmax.f32 %v3391, %v3404
        %v3416 = vmax.f32 %v3392, %v3406
        %v3417 = vmax.f32 %v3393, %v3408
        %v3418 = vmax.f32 %v3394, %v3407
        %3424 = vrot.lane.b32.xlu0 %v3414, 127
        %v3425 = vpop.permute.xlu0 %3424
        %3426 = vrot.lane.b32.xlu0 %v3415, 127
        %v3427 = vpop.permute.xlu0 %3426
        %3428 = vrot.lane.b32.xlu0 %v3416, 127
        %v3429 = vpop.permute.xlu0 %3428
        %3430 = vrot.lane.b32.xlu0 %v3417, 127
        %v3431 = vpop.permute.xlu0 %3430
        %3432 = vrot.lane.b32.xlu0 %v3418, 127
        %v3433 = vpop.permute.xlu0 %3432
        %v3439 = vmax.f32 %v3365, %v3425
        %v3440 = vmax.f32 %v3366, %v3427
        %v3441 = vmax.f32 %v3367, %v3429
        %v3442 = vmax.f32 %v3368, %v3431
        %v3443 = vmax.f32 %v3369, %v3433
        %3449 = vrot.lane.b32.xlu0 %v3189, 127
        %v3450 = vpop.permute.xlu0 %3449
        %3451 = vrot.lane.b32.xlu0 %v3190, 127
        %v3452 = vpop.permute.xlu0 %3451
        %3453 = vrot.lane.b32.xlu0 %v3191, 127
        %v3454 = vpop.permute.xlu0 %3453
        %3455 = vrot.lane.b32.xlu0 %v3192, 127
        %v3456 = vpop.permute.xlu0 %3455
        %3457 = vrot.lane.b32.xlu0 %v3193, 127
        %v3458 = vpop.permute.xlu0 %3457
        %v3464 = vmax.f32 %v3189, %v3450
        %v3465 = vmax.f32 %v3190, %v3452
        %v3466 = vmax.f32 %v3191, %v3454
        %v3467 = vmax.f32 %v3192, %v3456
        %v3468 = vmax.f32 %v3193, %v3458
        %v3474 = vrot.slane %v3464, 1
        %v3475 = vrot.slane %v3465, 1
        %v3476 = vsel %vm1611, %v3474, %v3475
        %v3477 = vrot.slane %v3466, 1
        %v3478 = vsel %vm1611, %v3475, %v3477
        %v3479 = vrot.slane %v3467, 1
        %v3480 = vsel %vm1611, %v3477, %v3479
        %v3481 = vrot.slane %v3468, 1
        %v3482 = vsel %vm1611, %v3479, %v3481
        %v3488 = vmax.f32 %v3464, %v3476
        %v3489 = vmax.f32 %v3465, %v3478
        %v3490 = vmax.f32 %v3466, %v3480
        %v3491 = vmax.f32 %v3467, %v3482
        %v3492 = vmax.f32 %v3468, %v3481
        %3498 = vrot.lane.b32.xlu0 %v3316, 127
        %v3499 = vpop.permute.xlu0 %3498
        %3500 = vrot.lane.b32.xlu0 %v3317, 127
        %v3501 = vpop.permute.xlu0 %3500
        %3502 = vrot.lane.b32.xlu0 %v3318, 127
        %v3503 = vpop.permute.xlu0 %3502
        %3504 = vrot.lane.b32.xlu0 %v3319, 127
        %v3505 = vpop.permute.xlu0 %3504
        %3506 = vrot.lane.b32.xlu0 %v3320, 127
        %v3507 = vpop.permute.xlu0 %3506
        %v3513 = vmax.f32 %v3316, %v3499
        %v3514 = vmax.f32 %v3317, %v3501
        %v3515 = vmax.f32 %v3318, %v3503
        %v3516 = vmax.f32 %v3319, %v3505
        %v3517 = vmax.f32 %v3320, %v3507
        %v3523 = vrot.slane %v3513, 1
        %v3524 = vrot.slane %v3514, 1
        %v3525 = vsel %vm1611, %v3523, %v3524
        %v3526 = vrot.slane %v3515, 1
        %v3527 = vsel %vm1611, %v3524, %v3526
        %v3528 = vrot.slane %v3516, 1
        %v3529 = vsel %vm1611, %v3526, %v3528
        %v3530 = vrot.slane %v3517, 1
        %v3531 = vsel %vm1611, %v3528, %v3530
        %v3537 = vmax.f32 %v3513, %v3525
        %v3538 = vmax.f32 %v3514, %v3527
        %v3539 = vmax.f32 %v3515, %v3529
        %v3540 = vmax.f32 %v3516, %v3531
        %v3541 = vmax.f32 %v3517, %v3530
        %3547 = vrot.lane.b32.xlu0 %v3537, 127
        %v3548 = vpop.permute.xlu0 %3547
        %3549 = vrot.lane.b32.xlu0 %v3538, 127
        %v3550 = vpop.permute.xlu0 %3549
        %3551 = vrot.lane.b32.xlu0 %v3539, 127
        %v3552 = vpop.permute.xlu0 %3551
        %3553 = vrot.lane.b32.xlu0 %v3540, 127
        %v3554 = vpop.permute.xlu0 %3553
        %3555 = vrot.lane.b32.xlu0 %v3541, 127
        %v3556 = vpop.permute.xlu0 %3555
        %v3562 = vmax.f32 %v3488, %v3548
        %v3563 = vmax.f32 %v3489, %v3550
        %v3564 = vmax.f32 %v3490, %v3552
        %v3565 = vmax.f32 %v3491, %v3554
        %v3566 = vmax.f32 %v3492, %v3556
        %v3567 = vmax.f32 %v3439, %v3562
        %v3568 = vmax.f32 %v3440, %v3563
        %v3569 = vmax.f32 %v3441, %v3564
        %v3570 = vmax.f32 %v3442, %v3565
        %v3571 = vmax.f32 %v3443, %v3566
        %s3572 = sld [smem:[#allocation11 + $0x2]]
        %v3573 = vstv %s3572
        %v3574 = vadd.f32 %v3567, %v3573
        %v3575 = vadd.f32 %v3568, %v3573
        %v3576 = vadd.f32 %v3569, %v3573
        %v3577 = vadd.f32 %v3570, %v3573
        %v3578 = vadd.f32 %v3571, %v3573
        %s3579 = scalar_lea.vmem %s284, 80
        %3580 = vst.msk [vmem:[%s3579] sm:$0xff] %vm1840, %v3574
        %3581 = vst.msk [vmem:[%s3579 + $0x8] sm:$0xff] %vm1840, %v3575
        %3582 = vst.msk [vmem:[%s3579 + $0x10] sm:$0xff] %vm1840, %v3576
        %3583 = vst.msk [vmem:[%s3579 + $0x18] sm:$0xff] %vm1840, %v3577
        %3584 = vst.msk [vmem:[%s3579 + $0x20] sm:$0x3f] %vm1845, %v3578
        %p3585 = scmp.lt.s32.totalorder %s22, 1
        %s3586 = scalar_select %p3585, %s22, 1
        %s3587 = smul.addr %s3586, 15
        %s3588 = smul.addr %s3587, 8
        %s3589 = scalar_lea.vmem %s5, %s3588
        // Predicated region
        $region57: #{model_forward.1} parent=39 // pred_check
          %p3590 = pneg %p150
        $region58: #{model_forward.1} parent=39 // pred_check_branch
          %3592 = sbr.rel (%p3590) target = $region60
        $region59: #{model_forward.1} parent=39 // pred_region
          _
        $region60: #{model_forward.1} parent=39 // pred_fallthru
          _
      $region40: #{model_forward.1} parent=5 // pred_fallthru
        _
      %p3593 = scmp.le.s32.totalorder 2, %s17
      // Predicated region
      $region61: #{model_forward.1} parent=5 // pred_check
        %p3594 = pneg %p3593
      $region62: #{model_forward.1} parent=5 // pred_check_branch
        %3596 = sbr.rel (%p3594) target = $region64
      $region63: #{model_forward.1} parent=5 // pred_region
        %s3597 = ssub.s32 %s17, 2
        // Predicated region
        $region65: #{model_forward.1} parent=63 // pred_check
          %p3598 = pneg %p156
        $region66: #{model_forward.1} parent=63 // pred_check_branch
          %3600 = sbr.rel (%p3598) target = $region68
        $region67: #{model_forward.1} parent=63 // pred_region
          %p3601 = scmp.lt.s32.totalorder %s23, 1
          %s3602 = scalar_select %p3601, %s23, 1
          %s3603 = smul.addr %s3602, 15
          %s3604 = smul.addr %s3603, 8
          %s3605 = scalar_lea.vmem %s5, %s3604
        $region68: #{model_forward.1} parent=63 // pred_fallthru
          _
      $region64: #{model_forward.1} parent=5 // pred_fallthru
        _
    $region6: #{model_forward.1} parent=1 // loop_footer
      %s21 = sadd.s32 1, %s17
    $region7: #{model_forward.1} parent=1 // loop_footer_branch
      %16 = sbr.rel target = $region3
    $region8: #{model_forward.1} parent=1 // loop_exit
      _
    %3606 = vsyncpa [#allocation6], 1
    %s3607 = scalar_lea.sflag [#allocation6], 1
    %3608 = vsyncpa %s3607, 1
    %3609 = vsyncpa [#allocation7], 1
    %s3610 = scalar_lea.sflag [#allocation7], 1
    %3611 = vsyncpa %s3610, 1
    %3612 = vsyncpa [#allocation10], 1

</llo_original>
